<compile_context>
chip_gen: v5e
topology: v5e:2x2
jax: 0.10.0
libtpu: 0.0.40
codegen_flags: <defaults>
</compile_context>

<pallas_src>
import jax
import jax.numpy as jnp
from jax.experimental import pallas as pl
from jax.experimental.pallas import tpu as pltpu

# ---------------- scaled-down configuration ----------------
NUM_CATS = 142          # nn.Embedding(num_embeddings=142, ...)  (exact)
CAT_DIM  = 8            # embedding_dim=8                        (exact)
IMG_RES  = 64           # scaled from 224
PATCH    = 32           # ViT-B/32 patch size                    (exact)
GRID     = IMG_RES // PATCH
N_PATCH  = GRID * GRID
SEQ      = N_PATCH + 1  # + class token
WIDTH    = 64           # scaled from 768
HEADS    = 2            # scaled from 12
HEAD_DIM = WIDTH // HEADS
LAYERS   = 2            # scaled from 12
VIT_OUT  = 64           # scaled from 512
PROJ_DIM = 32           # scaled from 128 (img_proj)
FFN_HID  = 32           # scaled from 128 (merged_ffn hidden)
OUT_DIM  = 3            # final 3 sigmoid outputs                (exact)
EPS      = 1e-5
PATCH_F  = 3 * PATCH * PATCH

# TODO(synk): clip._transform(224) (PIL resize / center-crop / per-channel normalize) and the
# bbox-crop training helpers are host-side image preprocessing with no Pallas equivalent; the
# kernel consumes already-preprocessed NCHW float tensors.


# ---------------- in-kernel helpers (pure value math) ----------------
def _ln(x, gb):
    """LayerNorm in f32; gb is (2, D): row 0 gamma, row 1 beta."""
    g = gb[0:1, :]
    b = gb[1:2, :]
    mu = jnp.mean(x, axis=-1, keepdims=True)
    xc = x - mu
    var = jnp.mean(xc * xc, axis=-1, keepdims=True)
    return xc * jax.lax.rsqrt(var + EPS) * g + b


def _mm(x, w_bf16):
    """bf16 MXU matmul with f32 accumulation."""
    return jnp.dot(x.astype(jnp.bfloat16), w_bf16, preferred_element_type=jnp.float32)


# ---------------- the single fused kernel (one grid step per batch sample) ----------------
def _fused_kernel(patch_ref, cat_ref,
                  conv1_ref, cls_ref, pos_ref, lnpre_ref,
                  ln1_ref, qkvw_ref, qkvb_ref, outw_ref, outb_ref,
                  ln2_ref, fcw_ref, fcb_ref, prjw_ref, prjb_ref,
                  lnpost_ref, vprj_ref, iprjw_ref, iprjb_ref,
                  f1w_ref, f1b_ref, f2w_ref, f2b_ref,
                  o_ref):
    # ---- conv1 (stride==kernel) as unfold+matmul (no bias), class token, positional emb ----
    tok = jnp.dot(patch_ref[0], conv1_ref[...],                     # bf16 @ bf16 -> f32
                  preferred_element_type=jnp.float32)               # (N_PATCH, WIDTH)
    x = jnp.concatenate([cls_ref[...], tok], axis=0) + pos_ref[...]  # (SEQ, WIDTH) f32
    x = _ln(x, lnpre_ref[...])                                       # ln_pre

    scale = HEAD_DIM ** -0.5
    for l in range(LAYERS):                                          # static unroll (LAYERS=2)
        # ---- multi-head self-attention (pre-LN, residual) ----
        h = _ln(x, ln1_ref[l])
        qkv = _mm(h, qkvw_ref[l]) + qkvb_ref[l]                      # (SEQ, 3*WIDTH), order q|k|v
        ow = outw_ref[l]                                             # (WIDTH, WIDTH) bf16
        attn_out = jnp.zeros((SEQ, WIDTH), jnp.float32)
        for hd in range(HEADS):
            lo = hd * HEAD_DIM
            q = qkv[:, lo:lo + HEAD_DIM]
            k = qkv[:, WIDTH + lo:WIDTH + lo + HEAD_DIM]
            v = qkv[:, 2 * WIDTH + lo:2 * WIDTH + lo + HEAD_DIM]
            s = jax.lax.dot_general(                                 # q @ k^T, no transpose
                q.astype(jnp.bfloat16), k.astype(jnp.bfloat16),
                (((1,), (1,)), ((), ())),
                preferred_element_type=jnp.float32) * scale          # (SEQ, SEQ) f32
            m = jnp.max(s, axis=-1, keepdims=True)
            e = jnp.exp(s - m)
            inv = pl.reciprocal(jnp.sum(e, axis=-1, keepdims=True), approx=True)
            o = jnp.dot(e.astype(jnp.bfloat16), v.astype(jnp.bfloat16),
                        preferred_element_type=jnp.float32) * inv    # (SEQ, HEAD_DIM)
            # head-merge folded into the output projection (avoids lane-dim concat)
            attn_out = attn_out + _mm(o, ow[lo:lo + HEAD_DIM, :])
        x = x + attn_out + outb_ref[l]
        # ---- MLP with QuickGELU (pre-LN, residual) ----
        h = _ln(x, ln2_ref[l])
        h = _mm(h, fcw_ref[l]) + fcb_ref[l]
        h = h * jax.nn.sigmoid(1.702 * h)                            # QuickGELU, f32
        x = x + _mm(h, prjw_ref[l]) + prjb_ref[l]

    # ---- ln_post on the class token, ViT output projection (no bias) ----
    cls_tok = _ln(x[0:1, :], lnpost_ref[...])                        # (1, WIDTH)
    img = _mm(cls_tok, vprj_ref[...])                                # (1, VIT_OUT)
    # ---- img_proj: Linear + ReLU ----
    img = jnp.maximum(_mm(img, iprjw_ref[...]) + iprjb_ref[...], 0.0)   # (1, PROJ_DIM)
    # ---- merged_ffn: [img, cat] concat folded into a split matmul; Linear+ReLU, Linear+Sigmoid
    cat = cat_ref[0]                                                 # (1, CAT_DIM) f32
    w1_img = f1w_ref[pl.ds(0, PROJ_DIM), :]
    w1_cat = f1w_ref[pl.ds(PROJ_DIM, CAT_DIM), :]
    hm = _mm(img, w1_img) + _mm(cat, w1_cat) + f1b_ref[...]
    hm = jnp.maximum(hm, 0.0)                                        # (1, FFN_HID)
    out = jax.nn.sigmoid(_mm(hm, f2w_ref[...]) + f2b_ref[...])       # (1, OUT_DIM)
    o_ref[0] = out.astype(o_ref.dtype)


# ---------------- pallas_call wrapper ----------------
def _resident(shape):
    """Whole-array block, same block every grid step -> weight stays resident in VMEM."""
    if len(shape) == 2:
        return pl.BlockSpec(shape, lambda b: (0, 0))
    return pl.BlockSpec(shape, lambda b: (0, 0, 0))


def _make_patches(imgs):
    """NCHW -> (B, N_PATCH, 3*PATCH*PATCH) with (c, py, px) feature order; bf16 for the MXU."""
    B = imgs.shape[0]
    x = imgs.reshape(B, 3, GRID, PATCH, GRID, PATCH)
    x = x.transpose(0, 2, 4, 1, 3, 5).reshape(B, N_PATCH, PATCH_F)
    return x.astype(jnp.bfloat16)


@jax.jit
def state_estimator_forward(imgs, cat_idxs, p):
    B = imgs.shape[0]
    patches = _make_patches(imgs)
    # cat_embedder: plain gather (replaces the one-hot @ table matmul)
    cat_feats = jnp.take(p["cat_emb"], cat_idxs, axis=0).reshape(B, 1, CAT_DIM)

    in_specs = [
        pl.BlockSpec((1, N_PATCH, PATCH_F), lambda b: (b, 0, 0)),    # per-sample patches
        pl.BlockSpec((1, 1, CAT_DIM), lambda b: (b, 0, 0)),          # per-sample cat feature
        _resident((PATCH_F, WIDTH)),                                 # conv1_w (bf16)
        _resident((1, WIDTH)),                                       # class embedding
        _resident((SEQ, WIDTH)),                                     # positional embedding
        _resident((2, WIDTH)),                                       # ln_pre (gamma, beta)
        _resident((LAYERS, 2, WIDTH)),                               # ln_1
        _resident((LAYERS, WIDTH, 3 * WIDTH)),                       # qkv_w (bf16)
        _resident((LAYERS, 1, 3 * WIDTH)),                           # qkv_b
        _resident((LAYERS, WIDTH, WIDTH)),                           # out_w (bf16)
        _resident((LAYERS, 1, WIDTH)),                               # out_b
        _resident((LAYERS, 2, WIDTH)),                               # ln_2
        _resident((LAYERS, WIDTH, 4 * WIDTH)),                       # fc_w (bf16)
        _resident((LAYERS, 1, 4 * WIDTH)),                           # fc_b
        _resident((LAYERS, 4 * WIDTH, WIDTH)),                       # prj_w (bf16)
        _resident((LAYERS, 1, WIDTH)),                               # prj_b
        _resident((2, WIDTH)),                                       # ln_post
        _resident((WIDTH, VIT_OUT)),                                 # vit proj (bf16)
        _resident((VIT_OUT, PROJ_DIM)),                              # img_proj_w (bf16)
        _resident((1, PROJ_DIM)),                                    # img_proj_b
        _resident((PROJ_DIM + CAT_DIM, FFN_HID)),                    # ffn1_w (bf16)
        _resident((1, FFN_HID)),                                     # ffn1_b
        _resident((FFN_HID, OUT_DIM)),                               # ffn2_w (bf16)
        _resident((1, OUT_DIM)),                                     # ffn2_b
    ]

    out = pl.pallas_call(
        _fused_kernel,
        grid=(B,),
        in_specs=in_specs,
        out_specs=pl.BlockSpec((1, 1, OUT_DIM), lambda b: (b, 0, 0)),
        out_shape=jax.ShapeDtypeStruct((B, 1, OUT_DIM), jnp.float32),
        compiler_params=pltpu.CompilerParams(dimension_semantics=("parallel",)),
    )(patches, cat_feats,
      p["conv1_w"], p["cls"], p["pos"], p["ln_pre"],
      p["ln1"], p["qkv_w"], p["qkv_b"], p["out_w"], p["out_b"],
      p["ln2"], p["fc_w"], p["fc_b"], p["prj_w"], p["prj_b"],
      p["ln_post"], p["vit_proj"], p["img_proj_w"], p["img_proj_b"],
      p["ffn1_w"], p["ffn1_b"], p["ffn2_w"], p["ffn2_b"])
    return out.reshape(B, OUT_DIM)


# ---------------- parameter init (deterministic, synthetic) ----------------
def init_params(key):
    keys = iter(jax.random.split(key, 16))
    bf = jnp.bfloat16

    def nrm(shape, scale=0.02, dtype=jnp.float32):
        return (scale * jax.random.normal(next(keys), shape)).astype(dtype)

    def ln_stack(n=None):
        gb = jnp.stack([jnp.ones((WIDTH,), jnp.float32),
                        jnp.zeros((WIDTH,), jnp.float32)], axis=0)    # (2, WIDTH)
        if n is None:
            return gb
        return jnp.tile(gb[None], (n, 1, 1))                          # (n, 2, WIDTH)

    w_scale = WIDTH ** -0.5
    return {
        "cat_emb":    nrm((NUM_CATS, CAT_DIM), 1.0),
        # conv1 (Conv2d(3, width, kernel=patch, stride=patch, bias=False)) reshaped to a matmul
        "conv1_w":    nrm((PATCH_F, WIDTH), 0.02, bf),
        "cls":        nrm((1, WIDTH), w_scale),
        "pos":        nrm((SEQ, WIDTH), w_scale),
        "ln_pre":     ln_stack(),
        "ln_post":    ln_stack(),
        "vit_proj":   nrm((WIDTH, VIT_OUT), w_scale, bf),             # x @ proj, no bias
        "img_proj_w": nrm((VIT_OUT, PROJ_DIM), 0.02, bf),
        "img_proj_b": jnp.zeros((1, PROJ_DIM), jnp.float32),
        "ffn1_w":     nrm((PROJ_DIM + CAT_DIM, FFN_HID), 0.02, bf),
        "ffn1_b":     jnp.zeros((1, FFN_HID), jnp.float32),
        "ffn2_w":     nrm((FFN_HID, OUT_DIM), 0.02, bf),
        "ffn2_b":     jnp.zeros((1, OUT_DIM), jnp.float32),
        # stacked per-layer transformer weights
        "ln1":        ln_stack(LAYERS),
        "qkv_w":      nrm((LAYERS, WIDTH, 3 * WIDTH), 0.02, bf),
        "qkv_b":      jnp.zeros((LAYERS, 1, 3 * WIDTH), jnp.float32),
        "out_w":      nrm((LAYERS, WIDTH, WIDTH), 0.02, bf),
        "out_b":      jnp.zeros((LAYERS, 1, WIDTH), jnp.float32),
        "ln2":        ln_stack(LAYERS),
        "fc_w":       nrm((LAYERS, WIDTH, 4 * WIDTH), 0.02, bf),
        "fc_b":       jnp.zeros((LAYERS, 1, 4 * WIDTH), jnp.float32),
        "prj_w":      nrm((LAYERS, 4 * WIDTH, WIDTH), 0.02, bf),
        "prj_b":      jnp.zeros((LAYERS, 1, WIDTH), jnp.float32),
    }


if __name__ == "__main__":
    key = jax.random.PRNGKey(0)
    k_img, k_idx, k_par = jax.random.split(key, 3)
    B = 2
    imgs = jax.random.normal(k_img, (B, 3, IMG_RES, IMG_RES), dtype=jnp.float32)
    cat_idxs = jax.random.randint(k_idx, (B,), 0, NUM_CATS)
    params = init_params(k_par)

    preds = state_estimator_forward(imgs, cat_idxs, params)
    jax.block_until_ready(preds)
    assert preds.shape == (B, OUT_DIM) and preds.dtype == jnp.float32
    assert bool(jnp.all((preds >= 0.0) & (preds <= 1.0)))   # sigmoid output range
    print("KERNEL_OK")
</pallas_src>

<mosaic_0001>
module attributes {stable_mosaic.version = 11 : i64} {
  func.func @_fused_kernel(%arg0: i32, %arg1: memref<1x4x3072xbf16, #tpu.memory_space<vmem>>, %arg2: memref<1x1x8xf32, #tpu.memory_space<vmem>>, %arg3: memref<3072x64xbf16, #tpu.memory_space<vmem>>, %arg4: memref<1x64xf32, #tpu.memory_space<vmem>>, %arg5: memref<5x64xf32, #tpu.memory_space<vmem>>, %arg6: memref<2x64xf32, #tpu.memory_space<vmem>>, %arg7: memref<2x2x64xf32, #tpu.memory_space<vmem>>, %arg8: memref<2x64x192xbf16, #tpu.memory_space<vmem>>, %arg9: memref<2x1x192xf32, #tpu.memory_space<vmem>>, %arg10: memref<2x64x64xbf16, #tpu.memory_space<vmem>>, %arg11: memref<2x1x64xf32, #tpu.memory_space<vmem>>, %arg12: memref<2x2x64xf32, #tpu.memory_space<vmem>>, %arg13: memref<2x64x256xbf16, #tpu.memory_space<vmem>>, %arg14: memref<2x1x256xf32, #tpu.memory_space<vmem>>, %arg15: memref<2x256x64xbf16, #tpu.memory_space<vmem>>, %arg16: memref<2x1x64xf32, #tpu.memory_space<vmem>>, %arg17: memref<2x64xf32, #tpu.memory_space<vmem>>, %arg18: memref<64x64xbf16, #tpu.memory_space<vmem>>, %arg19: memref<64x32xbf16, #tpu.memory_space<vmem>>, %arg20: memref<1x32xf32, #tpu.memory_space<vmem>>, %arg21: memref<40x32xbf16, #tpu.memory_space<vmem>>, %arg22: memref<1x32xf32, #tpu.memory_space<vmem>>, %arg23: memref<32x3xbf16, #tpu.memory_space<vmem>>, %arg24: memref<1x3xf32, #tpu.memory_space<vmem>>, %arg25: memref<1x1x3xf32, #tpu.memory_space<vmem>>) attributes {dimension_semantics = [#tpu.dimension_semantics<parallel>], iteration_bounds = array<i64: 2>, scalar_prefetch = 0 : i64, scratch_operands = 0 : i64, tpu.core_type = #tpu.core_type<tc>, window_params = [{transform_indices = @transform_0, window_bounds = array<i64: 1, 4, 3072>}, {transform_indices = @transform_1, window_bounds = array<i64: 1, 1, 8>}, {pipeline_mode = #tpu.pipeline_mode<synchronous>, transform_indices = @transform_2, window_bounds = array<i64: 3072, 64>}, {pipeline_mode = #tpu.pipeline_mode<synchronous>, transform_indices = @transform_3, window_bounds = array<i64: 1, 64>}, {pipeline_mode = #tpu.pipeline_mode<synchronous>, transform_indices = @transform_4, window_bounds = array<i64: 5, 64>}, {pipeline_mode = #tpu.pipeline_mode<synchronous>, transform_indices = @transform_5, window_bounds = array<i64: 2, 64>}, {pipeline_mode = #tpu.pipeline_mode<synchronous>, transform_indices = @transform_6, window_bounds = array<i64: 2, 2, 64>}, {pipeline_mode = #tpu.pipeline_mode<synchronous>, transform_indices = @transform_7, window_bounds = array<i64: 2, 64, 192>}, {pipeline_mode = #tpu.pipeline_mode<synchronous>, transform_indices = @transform_8, window_bounds = array<i64: 2, 1, 192>}, {pipeline_mode = #tpu.pipeline_mode<synchronous>, transform_indices = @transform_9, window_bounds = array<i64: 2, 64, 64>}, {pipeline_mode = #tpu.pipeline_mode<synchronous>, transform_indices = @transform_10, window_bounds = array<i64: 2, 1, 64>}, {pipeline_mode = #tpu.pipeline_mode<synchronous>, transform_indices = @transform_11, window_bounds = array<i64: 2, 2, 64>}, {pipeline_mode = #tpu.pipeline_mode<synchronous>, transform_indices = @transform_12, window_bounds = array<i64: 2, 64, 256>}, {pipeline_mode = #tpu.pipeline_mode<synchronous>, transform_indices = @transform_13, window_bounds = array<i64: 2, 1, 256>}, {pipeline_mode = #tpu.pipeline_mode<synchronous>, transform_indices = @transform_14, window_bounds = array<i64: 2, 256, 64>}, {pipeline_mode = #tpu.pipeline_mode<synchronous>, transform_indices = @transform_15, window_bounds = array<i64: 2, 1, 64>}, {pipeline_mode = #tpu.pipeline_mode<synchronous>, transform_indices = @transform_16, window_bounds = array<i64: 2, 64>}, {pipeline_mode = #tpu.pipeline_mode<synchronous>, transform_indices = @transform_17, window_bounds = array<i64: 64, 64>}, {pipeline_mode = #tpu.pipeline_mode<synchronous>, transform_indices = @transform_18, window_bounds = array<i64: 64, 32>}, {pipeline_mode = #tpu.pipeline_mode<synchronous>, transform_indices = @transform_19, window_bounds = array<i64: 1, 32>}, {pipeline_mode = #tpu.pipeline_mode<synchronous>, transform_indices = @transform_20, window_bounds = array<i64: 40, 32>}, {pipeline_mode = #tpu.pipeline_mode<synchronous>, transform_indices = @transform_21, window_bounds = array<i64: 1, 32>}, {pipeline_mode = #tpu.pipeline_mode<synchronous>, transform_indices = @transform_22, window_bounds = array<i64: 32, 3>}, {pipeline_mode = #tpu.pipeline_mode<synchronous>, transform_indices = @transform_23, window_bounds = array<i64: 1, 3>}, {transform_indices = @transform_24, window_bounds = array<i64: 1, 1, 3>}]} {
    %c0 = arith.constant 0 : index
    %c0_0 = arith.constant 0 : index
    %c0_1 = arith.constant 0 : index
    %0 = vector.load %arg1[%c0, %c0_0, %c0_1] : memref<1x4x3072xbf16, #tpu.memory_space<vmem>>, vector<1x4x3072xbf16>
    %1 = vector.shape_cast %0 : vector<1x4x3072xbf16> to vector<4x3072xbf16>
    %c0_2 = arith.constant 0 : index
    %c0_3 = arith.constant 0 : index
    %2 = vector.load %arg3[%c0_2, %c0_3] : memref<3072x64xbf16, #tpu.memory_space<vmem>>, vector<3072x64xbf16>
    %cst = arith.constant dense<0.000000e+00> : vector<4x64xf32>
    %3 = tpu.matmul %1, %2, %cst {dimension_numbers = #tpu.dot_dimension_numbers<[1], [0], [0], [1], [0, 0, 1, 1], [], []>} : vector<4x3072xbf16>, vector<3072x64xbf16>, vector<4x64xf32> -> vector<4x64xf32>
    %c0_4 = arith.constant 0 : index
    %c0_5 = arith.constant 0 : index
    %4 = vector.load %arg4[%c0_4, %c0_5] : memref<1x64xf32, #tpu.memory_space<vmem>>, vector<1x64xf32>
    %5 = tpu.concatenate %4, %3 in 0 : vector<1x64xf32>, vector<4x64xf32> -> vector<5x64xf32>
    %c0_6 = arith.constant 0 : index
    %c0_7 = arith.constant 0 : index
    %6 = vector.load %arg5[%c0_6, %c0_7] : memref<5x64xf32, #tpu.memory_space<vmem>>, vector<5x64xf32>
    %7 = arith.addf %5, %6 : vector<5x64xf32>
    %c0_8 = arith.constant 0 : index
    %c0_9 = arith.constant 0 : index
    %8 = vector.load %arg6[%c0_8, %c0_9] : memref<2x64xf32, #tpu.memory_space<vmem>>, vector<2x64xf32>
    %9 = vector.extract_strided_slice %8 {offsets = [0, 0], sizes = [1, 64], strides = [1, 1]} : vector<2x64xf32> to vector<1x64xf32>
    %10 = vector.extract_strided_slice %8 {offsets = [1, 0], sizes = [1, 64], strides = [1, 1]} : vector<2x64xf32> to vector<1x64xf32>
    %cst_10 = arith.constant dense<0.000000e+00> : vector<5xf32>
    %11 = vector.multi_reduction <add>, %7, %cst_10 [1] : vector<5x64xf32> to vector<5xf32>
    %12 = vector.shape_cast %11 : vector<5xf32> to vector<5x1xf32>
    %cst_11 = arith.constant 6.400000e+01 : f32
    %13 = vector.broadcast %cst_11 : f32 to vector<5x1xf32>
    %14 = arith.divf %12, %13 : vector<5x1xf32>
    %15 = vector.broadcast %14 : vector<5x1xf32> to vector<5x64xf32>
    %16 = arith.subf %7, %15 : vector<5x64xf32>
    %17 = arith.mulf %16, %16 : vector<5x64xf32>
    %cst_12 = arith.constant dense<0.000000e+00> : vector<5xf32>
    %18 = vector.multi_reduction <add>, %17, %cst_12 [1] : vector<5x64xf32> to vector<5xf32>
    %19 = vector.shape_cast %18 : vector<5xf32> to vector<5x1xf32>
    %cst_13 = arith.constant 6.400000e+01 : f32
    %20 = vector.broadcast %cst_13 : f32 to vector<5x1xf32>
    %21 = arith.divf %19, %20 : vector<5x1xf32>
    %cst_14 = arith.constant 9.99999974E-6 : f32
    %22 = vector.broadcast %cst_14 : f32 to vector<5x1xf32>
    %23 = arith.addf %21, %22 : vector<5x1xf32>
    %24 = math.rsqrt %23 : vector<5x1xf32>
    %25 = vector.broadcast %24 : vector<5x1xf32> to vector<5x64xf32>
    %26 = arith.mulf %16, %25 : vector<5x64xf32>
    %27 = vector.broadcast %9 : vector<1x64xf32> to vector<5x64xf32>
    %28 = arith.mulf %26, %27 : vector<5x64xf32>
    %29 = vector.broadcast %10 : vector<1x64xf32> to vector<5x64xf32>
    %30 = arith.addf %28, %29 : vector<5x64xf32>
    %c0_15 = arith.constant 0 : index
    %c0_16 = arith.constant 0 : index
    %c0_17 = arith.constant 0 : index
    %31 = vector.load %arg7[%c0_15, %c0_16, %c0_17] : memref<2x2x64xf32, #tpu.memory_space<vmem>>, vector<1x2x64xf32>
    %32 = vector.shape_cast %31 : vector<1x2x64xf32> to vector<2x64xf32>
    %33 = vector.extract_strided_slice %32 {offsets = [0, 0], sizes = [1, 64], strides = [1, 1]} : vector<2x64xf32> to vector<1x64xf32>
    %34 = vector.extract_strided_slice %32 {offsets = [1, 0], sizes = [1, 64], strides = [1, 1]} : vector<2x64xf32> to vector<1x64xf32>
    %cst_18 = arith.constant dense<0.000000e+00> : vector<5xf32>
    %35 = vector.multi_reduction <add>, %30, %cst_18 [1] : vector<5x64xf32> to vector<5xf32>
    %36 = vector.shape_cast %35 : vector<5xf32> to vector<5x1xf32>
    %cst_19 = arith.constant 6.400000e+01 : f32
    %37 = vector.broadcast %cst_19 : f32 to vector<5x1xf32>
    %38 = arith.divf %36, %37 : vector<5x1xf32>
    %39 = vector.broadcast %38 : vector<5x1xf32> to vector<5x64xf32>
    %40 = arith.subf %30, %39 : vector<5x64xf32>
    %41 = arith.mulf %40, %40 : vector<5x64xf32>
    %cst_20 = arith.constant dense<0.000000e+00> : vector<5xf32>
    %42 = vector.multi_reduction <add>, %41, %cst_20 [1] : vector<5x64xf32> to vector<5xf32>
    %43 = vector.shape_cast %42 : vector<5xf32> to vector<5x1xf32>
    %cst_21 = arith.constant 6.400000e+01 : f32
    %44 = vector.broadcast %cst_21 : f32 to vector<5x1xf32>
    %45 = arith.divf %43, %44 : vector<5x1xf32>
    %cst_22 = arith.constant 9.99999974E-6 : f32
    %46 = vector.broadcast %cst_22 : f32 to vector<5x1xf32>
    %47 = arith.addf %45, %46 : vector<5x1xf32>
    %48 = math.rsqrt %47 : vector<5x1xf32>
    %49 = vector.broadcast %48 : vector<5x1xf32> to vector<5x64xf32>
    %50 = arith.mulf %40, %49 : vector<5x64xf32>
    %51 = vector.broadcast %33 : vector<1x64xf32> to vector<5x64xf32>
    %52 = arith.mulf %50, %51 : vector<5x64xf32>
    %53 = vector.broadcast %34 : vector<1x64xf32> to vector<5x64xf32>
    %54 = arith.addf %52, %53 : vector<5x64xf32>
    %c0_23 = arith.constant 0 : index
    %c0_24 = arith.constant 0 : index
    %c0_25 = arith.constant 0 : index
    %55 = vector.load %arg8[%c0_23, %c0_24, %c0_25] : memref<2x64x192xbf16, #tpu.memory_space<vmem>>, vector<1x64x192xbf16>
    %56 = vector.shape_cast %55 : vector<1x64x192xbf16> to vector<64x192xbf16>
    %57 = arith.truncf %54 : vector<5x64xf32> to vector<5x64xbf16>
    %cst_26 = arith.constant dense<0.000000e+00> : vector<5x192xf32>
    %58 = tpu.matmul %57, %56, %cst_26 {dimension_numbers = #tpu.dot_dimension_numbers<[1], [0], [0], [1], [0, 0, 1, 1], [], []>} : vector<5x64xbf16>, vector<64x192xbf16>, vector<5x192xf32> -> vector<5x192xf32>
    %c0_27 = arith.constant 0 : index
    %c0_28 = arith.constant 0 : index
    %c0_29 = arith.constant 0 : index
    %59 = vector.load %arg9[%c0_27, %c0_28, %c0_29] : memref<2x1x192xf32, #tpu.memory_space<vmem>>, vector<1x1x192xf32>
    %60 = vector.shape_cast %59 : vector<1x1x192xf32> to vector<1x192xf32>
    %61 = vector.broadcast %60 : vector<1x192xf32> to vector<5x192xf32>
    %62 = arith.addf %58, %61 : vector<5x192xf32>
    %c0_30 = arith.constant 0 : index
    %c0_31 = arith.constant 0 : index
    %c0_32 = arith.constant 0 : index
    %63 = vector.load %arg10[%c0_30, %c0_31, %c0_32] : memref<2x64x64xbf16, #tpu.memory_space<vmem>>, vector<1x64x64xbf16>
    %64 = vector.shape_cast %63 : vector<1x64x64xbf16> to vector<64x64xbf16>
    %cst_33 = arith.constant 0.000000e+00 : f32
    %65 = vector.broadcast %cst_33 : f32 to vector<5x64xf32>
    %66 = vector.extract_strided_slice %62 {offsets = [0, 0], sizes = [5, 32], strides = [1, 1]} : vector<5x192xf32> to vector<5x32xf32>
    %67 = vector.extract_strided_slice %62 {offsets = [0, 64], sizes = [5, 32], strides = [1, 1]} : vector<5x192xf32> to vector<5x32xf32>
    %68 = vector.extract_strided_slice %62 {offsets = [0, 128], sizes = [5, 32], strides = [1, 1]} : vector<5x192xf32> to vector<5x32xf32>
    %69 = arith.truncf %66 : vector<5x32xf32> to vector<5x32xbf16>
    %70 = arith.truncf %67 : vector<5x32xf32> to vector<5x32xbf16>
    %cst_34 = arith.constant dense<0.000000e+00> : vector<5x5xf32>
    %71 = tpu.matmul %69, %70, %cst_34 {dimension_numbers = #tpu.dot_dimension_numbers<[1], [1], [0], [0], [0, 0, 1, 0], [], []>} : vector<5x32xbf16>, vector<5x32xbf16>, vector<5x5xf32> -> vector<5x5xf32>
    %cst_35 = arith.constant 0.176776692 : f32
    %72 = vector.broadcast %cst_35 : f32 to vector<5x5xf32>
    %73 = arith.mulf %71, %72 : vector<5x5xf32>
    %cst_36 = arith.constant dense<0xFF800000> : vector<5xf32>
    %74 = vector.multi_reduction <maximumf>, %73, %cst_36 [1] : vector<5x5xf32> to vector<5xf32>
    %75 = vector.shape_cast %74 : vector<5xf32> to vector<5x1xf32>
    %76 = vector.broadcast %75 : vector<5x1xf32> to vector<5x5xf32>
    %77 = arith.subf %73, %76 : vector<5x5xf32>
    %78 = math.exp %77 : vector<5x5xf32>
    %cst_37 = arith.constant dense<0.000000e+00> : vector<5xf32>
    %79 = vector.multi_reduction <add>, %78, %cst_37 [1] : vector<5x5xf32> to vector<5xf32>
    %80 = vector.shape_cast %79 : vector<5xf32> to vector<5x1xf32>
    %81 = tpu.reciprocal %80 {approx = true} : vector<5x1xf32> -> vector<5x1xf32>
    %82 = arith.truncf %78 : vector<5x5xf32> to vector<5x5xbf16>
    %83 = arith.truncf %68 : vector<5x32xf32> to vector<5x32xbf16>
    %cst_38 = arith.constant dense<0.000000e+00> : vector<5x32xf32>
    %84 = tpu.matmul %82, %83, %cst_38 {dimension_numbers = #tpu.dot_dimension_numbers<[1], [0], [0], [1], [0, 0, 1, 1], [], []>} : vector<5x5xbf16>, vector<5x32xbf16>, vector<5x32xf32> -> vector<5x32xf32>
    %85 = vector.broadcast %81 : vector<5x1xf32> to vector<5x32xf32>
    %86 = arith.mulf %84, %85 : vector<5x32xf32>
    %87 = vector.extract_strided_slice %64 {offsets = [0, 0], sizes = [32, 64], strides = [1, 1]} : vector<64x64xbf16> to vector<32x64xbf16>
    %88 = arith.truncf %86 : vector<5x32xf32> to vector<5x32xbf16>
    %cst_39 = arith.constant dense<0.000000e+00> : vector<5x64xf32>
    %89 = tpu.matmul %88, %87, %cst_39 {dimension_numbers = #tpu.dot_dimension_numbers<[1], [0], [0], [1], [0, 0, 1, 1], [], []>} : vector<5x32xbf16>, vector<32x64xbf16>, vector<5x64xf32> -> vector<5x64xf32>
    %90 = arith.addf %65, %89 : vector<5x64xf32>
    %91 = vector.extract_strided_slice %62 {offsets = [0, 32], sizes = [5, 32], strides = [1, 1]} : vector<5x192xf32> to vector<5x32xf32>
    %92 = vector.extract_strided_slice %62 {offsets = [0, 96], sizes = [5, 32], strides = [1, 1]} : vector<5x192xf32> to vector<5x32xf32>
    %93 = vector.extract_strided_slice %62 {offsets = [0, 160], sizes = [5, 32], strides = [1, 1]} : vector<5x192xf32> to vector<5x32xf32>
    %94 = arith.truncf %91 : vector<5x32xf32> to vector<5x32xbf16>
    %95 = arith.truncf %92 : vector<5x32xf32> to vector<5x32xbf16>
    %cst_40 = arith.constant dense<0.000000e+00> : vector<5x5xf32>
    %96 = tpu.matmul %94, %95, %cst_40 {dimension_numbers = #tpu.dot_dimension_numbers<[1], [1], [0], [0], [0, 0, 1, 0], [], []>} : vector<5x32xbf16>, vector<5x32xbf16>, vector<5x5xf32> -> vector<5x5xf32>
    %cst_41 = arith.constant 0.176776692 : f32
    %97 = vector.broadcast %cst_41 : f32 to vector<5x5xf32>
    %98 = arith.mulf %96, %97 : vector<5x5xf32>
    %cst_42 = arith.constant dense<0xFF800000> : vector<5xf32>
    %99 = vector.multi_reduction <maximumf>, %98, %cst_42 [1] : vector<5x5xf32> to vector<5xf32>
    %100 = vector.shape_cast %99 : vector<5xf32> to vector<5x1xf32>
    %101 = vector.broadcast %100 : vector<5x1xf32> to vector<5x5xf32>
    %102 = arith.subf %98, %101 : vector<5x5xf32>
    %103 = math.exp %102 : vector<5x5xf32>
    %cst_43 = arith.constant dense<0.000000e+00> : vector<5xf32>
    %104 = vector.multi_reduction <add>, %103, %cst_43 [1] : vector<5x5xf32> to vector<5xf32>
    %105 = vector.shape_cast %104 : vector<5xf32> to vector<5x1xf32>
    %106 = tpu.reciprocal %105 {approx = true} : vector<5x1xf32> -> vector<5x1xf32>
    %107 = arith.truncf %103 : vector<5x5xf32> to vector<5x5xbf16>
    %108 = arith.truncf %93 : vector<5x32xf32> to vector<5x32xbf16>
    %cst_44 = arith.constant dense<0.000000e+00> : vector<5x32xf32>
    %109 = tpu.matmul %107, %108, %cst_44 {dimension_numbers = #tpu.dot_dimension_numbers<[1], [0], [0], [1], [0, 0, 1, 1], [], []>} : vector<5x5xbf16>, vector<5x32xbf16>, vector<5x32xf32> -> vector<5x32xf32>
    %110 = vector.broadcast %106 : vector<5x1xf32> to vector<5x32xf32>
    %111 = arith.mulf %109, %110 : vector<5x32xf32>
    %112 = vector.extract_strided_slice %64 {offsets = [32, 0], sizes = [32, 64], strides = [1, 1]} : vector<64x64xbf16> to vector<32x64xbf16>
    %113 = arith.truncf %111 : vector<5x32xf32> to vector<5x32xbf16>
    %cst_45 = arith.constant dense<0.000000e+00> : vector<5x64xf32>
    %114 = tpu.matmul %113, %112, %cst_45 {dimension_numbers = #tpu.dot_dimension_numbers<[1], [0], [0], [1], [0, 0, 1, 1], [], []>} : vector<5x32xbf16>, vector<32x64xbf16>, vector<5x64xf32> -> vector<5x64xf32>
    %115 = arith.addf %90, %114 : vector<5x64xf32>
    %116 = arith.addf %30, %115 : vector<5x64xf32>
    %c0_46 = arith.constant 0 : index
    %c0_47 = arith.constant 0 : index
    %c0_48 = arith.constant 0 : index
    %117 = vector.load %arg11[%c0_46, %c0_47, %c0_48] : memref<2x1x64xf32, #tpu.memory_space<vmem>>, vector<1x1x64xf32>
    %118 = vector.shape_cast %117 : vector<1x1x64xf32> to vector<1x64xf32>
    %119 = vector.broadcast %118 : vector<1x64xf32> to vector<5x64xf32>
    %120 = arith.addf %116, %119 : vector<5x64xf32>
    %c0_49 = arith.constant 0 : index
    %c0_50 = arith.constant 0 : index
    %c0_51 = arith.constant 0 : index
    %121 = vector.load %arg12[%c0_49, %c0_50, %c0_51] : memref<2x2x64xf32, #tpu.memory_space<vmem>>, vector<1x2x64xf32>
    %122 = vector.shape_cast %121 : vector<1x2x64xf32> to vector<2x64xf32>
    %123 = vector.extract_strided_slice %122 {offsets = [0, 0], sizes = [1, 64], strides = [1, 1]} : vector<2x64xf32> to vector<1x64xf32>
    %124 = vector.extract_strided_slice %122 {offsets = [1, 0], sizes = [1, 64], strides = [1, 1]} : vector<2x64xf32> to vector<1x64xf32>
    %cst_52 = arith.constant dense<0.000000e+00> : vector<5xf32>
    %125 = vector.multi_reduction <add>, %120, %cst_52 [1] : vector<5x64xf32> to vector<5xf32>
    %126 = vector.shape_cast %125 : vector<5xf32> to vector<5x1xf32>
    %cst_53 = arith.constant 6.400000e+01 : f32
    %127 = vector.broadcast %cst_53 : f32 to vector<5x1xf32>
    %128 = arith.divf %126, %127 : vector<5x1xf32>
    %129 = vector.broadcast %128 : vector<5x1xf32> to vector<5x64xf32>
    %130 = arith.subf %120, %129 : vector<5x64xf32>
    %131 = arith.mulf %130, %130 : vector<5x64xf32>
    %cst_54 = arith.constant dense<0.000000e+00> : vector<5xf32>
    %132 = vector.multi_reduction <add>, %131, %cst_54 [1] : vector<5x64xf32> to vector<5xf32>
    %133 = vector.shape_cast %132 : vector<5xf32> to vector<5x1xf32>
    %cst_55 = arith.constant 6.400000e+01 : f32
    %134 = vector.broadcast %cst_55 : f32 to vector<5x1xf32>
    %135 = arith.divf %133, %134 : vector<5x1xf32>
    %cst_56 = arith.constant 9.99999974E-6 : f32
    %136 = vector.broadcast %cst_56 : f32 to vector<5x1xf32>
    %137 = arith.addf %135, %136 : vector<5x1xf32>
    %138 = math.rsqrt %137 : vector<5x1xf32>
    %139 = vector.broadcast %138 : vector<5x1xf32> to vector<5x64xf32>
    %140 = arith.mulf %130, %139 : vector<5x64xf32>
    %141 = vector.broadcast %123 : vector<1x64xf32> to vector<5x64xf32>
    %142 = arith.mulf %140, %141 : vector<5x64xf32>
    %143 = vector.broadcast %124 : vector<1x64xf32> to vector<5x64xf32>
    %144 = arith.addf %142, %143 : vector<5x64xf32>
    %c0_57 = arith.constant 0 : index
    %c0_58 = arith.constant 0 : index
    %c0_59 = arith.constant 0 : index
    %145 = vector.load %arg13[%c0_57, %c0_58, %c0_59] : memref<2x64x256xbf16, #tpu.memory_space<vmem>>, vector<1x64x256xbf16>
    %146 = vector.shape_cast %145 : vector<1x64x256xbf16> to vector<64x256xbf16>
    %147 = arith.truncf %144 : vector<5x64xf32> to vector<5x64xbf16>
    %cst_60 = arith.constant dense<0.000000e+00> : vector<5x256xf32>
    %148 = tpu.matmul %147, %146, %cst_60 {dimension_numbers = #tpu.dot_dimension_numbers<[1], [0], [0], [1], [0, 0, 1, 1], [], []>} : vector<5x64xbf16>, vector<64x256xbf16>, vector<5x256xf32> -> vector<5x256xf32>
    %c0_61 = arith.constant 0 : index
    %c0_62 = arith.constant 0 : index
    %c0_63 = arith.constant 0 : index
    %149 = vector.load %arg14[%c0_61, %c0_62, %c0_63] : memref<2x1x256xf32, #tpu.memory_space<vmem>>, vector<1x1x256xf32>
    %150 = vector.shape_cast %149 : vector<1x1x256xf32> to vector<1x256xf32>
    %151 = vector.broadcast %150 : vector<1x256xf32> to vector<5x256xf32>
    %152 = arith.addf %148, %151 : vector<5x256xf32>
    %cst_64 = arith.constant 1.702000e+00 : f32
    %153 = vector.broadcast %cst_64 : f32 to vector<5x256xf32>
    %154 = arith.mulf %153, %152 : vector<5x256xf32>
    %155 = arith.negf %154 : vector<5x256xf32>
    %156 = math.exp %155 : vector<5x256xf32>
    %cst_65 = arith.constant 1.000000e+00 : f32
    %157 = vector.broadcast %cst_65 : f32 to vector<5x256xf32>
    %158 = arith.addf %157, %156 : vector<5x256xf32>
    %159 = arith.divf %157, %158 : vector<5x256xf32>
    %160 = arith.mulf %152, %159 : vector<5x256xf32>
    %c0_66 = arith.constant 0 : index
    %c0_67 = arith.constant 0 : index
    %c0_68 = arith.constant 0 : index
    %161 = vector.load %arg15[%c0_66, %c0_67, %c0_68] : memref<2x256x64xbf16, #tpu.memory_space<vmem>>, vector<1x256x64xbf16>
    %162 = vector.shape_cast %161 : vector<1x256x64xbf16> to vector<256x64xbf16>
    %163 = arith.truncf %160 : vector<5x256xf32> to vector<5x256xbf16>
    %cst_69 = arith.constant dense<0.000000e+00> : vector<5x64xf32>
    %164 = tpu.matmul %163, %162, %cst_69 {dimension_numbers = #tpu.dot_dimension_numbers<[1], [0], [0], [1], [0, 0, 1, 1], [], []>} : vector<5x256xbf16>, vector<256x64xbf16>, vector<5x64xf32> -> vector<5x64xf32>
    %165 = arith.addf %120, %164 : vector<5x64xf32>
    %c0_70 = arith.constant 0 : index
    %c0_71 = arith.constant 0 : index
    %c0_72 = arith.constant 0 : index
    %166 = vector.load %arg16[%c0_70, %c0_71, %c0_72] : memref<2x1x64xf32, #tpu.memory_space<vmem>>, vector<1x1x64xf32>
    %167 = vector.shape_cast %166 : vector<1x1x64xf32> to vector<1x64xf32>
    %168 = vector.broadcast %167 : vector<1x64xf32> to vector<5x64xf32>
    %169 = arith.addf %165, %168 : vector<5x64xf32>
    %c1 = arith.constant 1 : index
    %c0_73 = arith.constant 0 : index
    %c0_74 = arith.constant 0 : index
    %170 = vector.load %arg7[%c1, %c0_73, %c0_74] : memref<2x2x64xf32, #tpu.memory_space<vmem>>, vector<1x2x64xf32>
    %171 = vector.shape_cast %170 : vector<1x2x64xf32> to vector<2x64xf32>
    %172 = vector.extract_strided_slice %171 {offsets = [0, 0], sizes = [1, 64], strides = [1, 1]} : vector<2x64xf32> to vector<1x64xf32>
    %173 = vector.extract_strided_slice %171 {offsets = [1, 0], sizes = [1, 64], strides = [1, 1]} : vector<2x64xf32> to vector<1x64xf32>
    %cst_75 = arith.constant dense<0.000000e+00> : vector<5xf32>
    %174 = vector.multi_reduction <add>, %169, %cst_75 [1] : vector<5x64xf32> to vector<5xf32>
    %175 = vector.shape_cast %174 : vector<5xf32> to vector<5x1xf32>
    %cst_76 = arith.constant 6.400000e+01 : f32
    %176 = vector.broadcast %cst_76 : f32 to vector<5x1xf32>
    %177 = arith.divf %175, %176 : vector<5x1xf32>
    %178 = vector.broadcast %177 : vector<5x1xf32> to vector<5x64xf32>
    %179 = arith.subf %169, %178 : vector<5x64xf32>
    %180 = arith.mulf %179, %179 : vector<5x64xf32>
    %cst_77 = arith.constant dense<0.000000e+00> : vector<5xf32>
    %181 = vector.multi_reduction <add>, %180, %cst_77 [1] : vector<5x64xf32> to vector<5xf32>
    %182 = vector.shape_cast %181 : vector<5xf32> to vector<5x1xf32>
    %cst_78 = arith.constant 6.400000e+01 : f32
    %183 = vector.broadcast %cst_78 : f32 to vector<5x1xf32>
    %184 = arith.divf %182, %183 : vector<5x1xf32>
    %cst_79 = arith.constant 9.99999974E-6 : f32
    %185 = vector.broadcast %cst_79 : f32 to vector<5x1xf32>
    %186 = arith.addf %184, %185 : vector<5x1xf32>
    %187 = math.rsqrt %186 : vector<5x1xf32>
    %188 = vector.broadcast %187 : vector<5x1xf32> to vector<5x64xf32>
    %189 = arith.mulf %179, %188 : vector<5x64xf32>
    %190 = vector.broadcast %172 : vector<1x64xf32> to vector<5x64xf32>
    %191 = arith.mulf %189, %190 : vector<5x64xf32>
    %192 = vector.broadcast %173 : vector<1x64xf32> to vector<5x64xf32>
    %193 = arith.addf %191, %192 : vector<5x64xf32>
    %c1_80 = arith.constant 1 : index
    %c0_81 = arith.constant 0 : index
    %c0_82 = arith.constant 0 : index
    %194 = vector.load %arg8[%c1_80, %c0_81, %c0_82] : memref<2x64x192xbf16, #tpu.memory_space<vmem>>, vector<1x64x192xbf16>
    %195 = vector.shape_cast %194 : vector<1x64x192xbf16> to vector<64x192xbf16>
    %196 = arith.truncf %193 : vector<5x64xf32> to vector<5x64xbf16>
    %cst_83 = arith.constant dense<0.000000e+00> : vector<5x192xf32>
    %197 = tpu.matmul %196, %195, %cst_83 {dimension_numbers = #tpu.dot_dimension_numbers<[1], [0], [0], [1], [0, 0, 1, 1], [], []>} : vector<5x64xbf16>, vector<64x192xbf16>, vector<5x192xf32> -> vector<5x192xf32>
    %c1_84 = arith.constant 1 : index
    %c0_85 = arith.constant 0 : index
    %c0_86 = arith.constant 0 : index
    %198 = vector.load %arg9[%c1_84, %c0_85, %c0_86] : memref<2x1x192xf32, #tpu.memory_space<vmem>>, vector<1x1x192xf32>
    %199 = vector.shape_cast %198 : vector<1x1x192xf32> to vector<1x192xf32>
    %200 = vector.broadcast %199 : vector<1x192xf32> to vector<5x192xf32>
    %201 = arith.addf %197, %200 : vector<5x192xf32>
    %c1_87 = arith.constant 1 : index
    %c0_88 = arith.constant 0 : index
    %c0_89 = arith.constant 0 : index
    %202 = vector.load %arg10[%c1_87, %c0_88, %c0_89] : memref<2x64x64xbf16, #tpu.memory_space<vmem>>, vector<1x64x64xbf16>
    %203 = vector.shape_cast %202 : vector<1x64x64xbf16> to vector<64x64xbf16>
    %cst_90 = arith.constant 0.000000e+00 : f32
    %204 = vector.broadcast %cst_90 : f32 to vector<5x64xf32>
    %205 = vector.extract_strided_slice %201 {offsets = [0, 0], sizes = [5, 32], strides = [1, 1]} : vector<5x192xf32> to vector<5x32xf32>
    %206 = vector.extract_strided_slice %201 {offsets = [0, 64], sizes = [5, 32], strides = [1, 1]} : vector<5x192xf32> to vector<5x32xf32>
    %207 = vector.extract_strided_slice %201 {offsets = [0, 128], sizes = [5, 32], strides = [1, 1]} : vector<5x192xf32> to vector<5x32xf32>
    %208 = arith.truncf %205 : vector<5x32xf32> to vector<5x32xbf16>
    %209 = arith.truncf %206 : vector<5x32xf32> to vector<5x32xbf16>
    %cst_91 = arith.constant dense<0.000000e+00> : vector<5x5xf32>
    %210 = tpu.matmul %208, %209, %cst_91 {dimension_numbers = #tpu.dot_dimension_numbers<[1], [1], [0], [0], [0, 0, 1, 0], [], []>} : vector<5x32xbf16>, vector<5x32xbf16>, vector<5x5xf32> -> vector<5x5xf32>
    %cst_92 = arith.constant 0.176776692 : f32
    %211 = vector.broadcast %cst_92 : f32 to vector<5x5xf32>
    %212 = arith.mulf %210, %211 : vector<5x5xf32>
    %cst_93 = arith.constant dense<0xFF800000> : vector<5xf32>
    %213 = vector.multi_reduction <maximumf>, %212, %cst_93 [1] : vector<5x5xf32> to vector<5xf32>
    %214 = vector.shape_cast %213 : vector<5xf32> to vector<5x1xf32>
    %215 = vector.broadcast %214 : vector<5x1xf32> to vector<5x5xf32>
    %216 = arith.subf %212, %215 : vector<5x5xf32>
    %217 = math.exp %216 : vector<5x5xf32>
    %cst_94 = arith.constant dense<0.000000e+00> : vector<5xf32>
    %218 = vector.multi_reduction <add>, %217, %cst_94 [1] : vector<5x5xf32> to vector<5xf32>
    %219 = vector.shape_cast %218 : vector<5xf32> to vector<5x1xf32>
    %220 = tpu.reciprocal %219 {approx = true} : vector<5x1xf32> -> vector<5x1xf32>
    %221 = arith.truncf %217 : vector<5x5xf32> to vector<5x5xbf16>
    %222 = arith.truncf %207 : vector<5x32xf32> to vector<5x32xbf16>
    %cst_95 = arith.constant dense<0.000000e+00> : vector<5x32xf32>
    %223 = tpu.matmul %221, %222, %cst_95 {dimension_numbers = #tpu.dot_dimension_numbers<[1], [0], [0], [1], [0, 0, 1, 1], [], []>} : vector<5x5xbf16>, vector<5x32xbf16>, vector<5x32xf32> -> vector<5x32xf32>
    %224 = vector.broadcast %220 : vector<5x1xf32> to vector<5x32xf32>
    %225 = arith.mulf %223, %224 : vector<5x32xf32>
    %226 = vector.extract_strided_slice %203 {offsets = [0, 0], sizes = [32, 64], strides = [1, 1]} : vector<64x64xbf16> to vector<32x64xbf16>
    %227 = arith.truncf %225 : vector<5x32xf32> to vector<5x32xbf16>
    %cst_96 = arith.constant dense<0.000000e+00> : vector<5x64xf32>
    %228 = tpu.matmul %227, %226, %cst_96 {dimension_numbers = #tpu.dot_dimension_numbers<[1], [0], [0], [1], [0, 0, 1, 1], [], []>} : vector<5x32xbf16>, vector<32x64xbf16>, vector<5x64xf32> -> vector<5x64xf32>
    %229 = arith.addf %204, %228 : vector<5x64xf32>
    %230 = vector.extract_strided_slice %201 {offsets = [0, 32], sizes = [5, 32], strides = [1, 1]} : vector<5x192xf32> to vector<5x32xf32>
    %231 = vector.extract_strided_slice %201 {offsets = [0, 96], sizes = [5, 32], strides = [1, 1]} : vector<5x192xf32> to vector<5x32xf32>
    %232 = vector.extract_strided_slice %201 {offsets = [0, 160], sizes = [5, 32], strides = [1, 1]} : vector<5x192xf32> to vector<5x32xf32>
    %233 = arith.truncf %230 : vector<5x32xf32> to vector<5x32xbf16>
    %234 = arith.truncf %231 : vector<5x32xf32> to vector<5x32xbf16>
    %cst_97 = arith.constant dense<0.000000e+00> : vector<5x5xf32>
    %235 = tpu.matmul %233, %234, %cst_97 {dimension_numbers = #tpu.dot_dimension_numbers<[1], [1], [0], [0], [0, 0, 1, 0], [], []>} : vector<5x32xbf16>, vector<5x32xbf16>, vector<5x5xf32> -> vector<5x5xf32>
    %cst_98 = arith.constant 0.176776692 : f32
    %236 = vector.broadcast %cst_98 : f32 to vector<5x5xf32>
    %237 = arith.mulf %235, %236 : vector<5x5xf32>
    %cst_99 = arith.constant dense<0xFF800000> : vector<5xf32>
    %238 = vector.multi_reduction <maximumf>, %237, %cst_99 [1] : vector<5x5xf32> to vector<5xf32>
    %239 = vector.shape_cast %238 : vector<5xf32> to vector<5x1xf32>
    %240 = vector.broadcast %239 : vector<5x1xf32> to vector<5x5xf32>
    %241 = arith.subf %237, %240 : vector<5x5xf32>
    %242 = math.exp %241 : vector<5x5xf32>
    %cst_100 = arith.constant dense<0.000000e+00> : vector<5xf32>
    %243 = vector.multi_reduction <add>, %242, %cst_100 [1] : vector<5x5xf32> to vector<5xf32>
    %244 = vector.shape_cast %243 : vector<5xf32> to vector<5x1xf32>
    %245 = tpu.reciprocal %244 {approx = true} : vector<5x1xf32> -> vector<5x1xf32>
    %246 = arith.truncf %242 : vector<5x5xf32> to vector<5x5xbf16>
    %247 = arith.truncf %232 : vector<5x32xf32> to vector<5x32xbf16>
    %cst_101 = arith.constant dense<0.000000e+00> : vector<5x32xf32>
    %248 = tpu.matmul %246, %247, %cst_101 {dimension_numbers = #tpu.dot_dimension_numbers<[1], [0], [0], [1], [0, 0, 1, 1], [], []>} : vector<5x5xbf16>, vector<5x32xbf16>, vector<5x32xf32> -> vector<5x32xf32>
    %249 = vector.broadcast %245 : vector<5x1xf32> to vector<5x32xf32>
    %250 = arith.mulf %248, %249 : vector<5x32xf32>
    %251 = vector.extract_strided_slice %203 {offsets = [32, 0], sizes = [32, 64], strides = [1, 1]} : vector<64x64xbf16> to vector<32x64xbf16>
    %252 = arith.truncf %250 : vector<5x32xf32> to vector<5x32xbf16>
    %cst_102 = arith.constant dense<0.000000e+00> : vector<5x64xf32>
    %253 = tpu.matmul %252, %251, %cst_102 {dimension_numbers = #tpu.dot_dimension_numbers<[1], [0], [0], [1], [0, 0, 1, 1], [], []>} : vector<5x32xbf16>, vector<32x64xbf16>, vector<5x64xf32> -> vector<5x64xf32>
    %254 = arith.addf %229, %253 : vector<5x64xf32>
    %255 = arith.addf %169, %254 : vector<5x64xf32>
    %c1_103 = arith.constant 1 : index
    %c0_104 = arith.constant 0 : index
    %c0_105 = arith.constant 0 : index
    %256 = vector.load %arg11[%c1_103, %c0_104, %c0_105] : memref<2x1x64xf32, #tpu.memory_space<vmem>>, vector<1x1x64xf32>
    %257 = vector.shape_cast %256 : vector<1x1x64xf32> to vector<1x64xf32>
    %258 = vector.broadcast %257 : vector<1x64xf32> to vector<5x64xf32>
    %259 = arith.addf %255, %258 : vector<5x64xf32>
    %c1_106 = arith.constant 1 : index
    %c0_107 = arith.constant 0 : index
    %c0_108 = arith.constant 0 : index
    %260 = vector.load %arg12[%c1_106, %c0_107, %c0_108] : memref<2x2x64xf32, #tpu.memory_space<vmem>>, vector<1x2x64xf32>
    %261 = vector.shape_cast %260 : vector<1x2x64xf32> to vector<2x64xf32>
    %262 = vector.extract_strided_slice %261 {offsets = [0, 0], sizes = [1, 64], strides = [1, 1]} : vector<2x64xf32> to vector<1x64xf32>
    %263 = vector.extract_strided_slice %261 {offsets = [1, 0], sizes = [1, 64], strides = [1, 1]} : vector<2x64xf32> to vector<1x64xf32>
    %cst_109 = arith.constant dense<0.000000e+00> : vector<5xf32>
    %264 = vector.multi_reduction <add>, %259, %cst_109 [1] : vector<5x64xf32> to vector<5xf32>
    %265 = vector.shape_cast %264 : vector<5xf32> to vector<5x1xf32>
    %cst_110 = arith.constant 6.400000e+01 : f32
    %266 = vector.broadcast %cst_110 : f32 to vector<5x1xf32>
    %267 = arith.divf %265, %266 : vector<5x1xf32>
    %268 = vector.broadcast %267 : vector<5x1xf32> to vector<5x64xf32>
    %269 = arith.subf %259, %268 : vector<5x64xf32>
    %270 = arith.mulf %269, %269 : vector<5x64xf32>
    %cst_111 = arith.constant dense<0.000000e+00> : vector<5xf32>
    %271 = vector.multi_reduction <add>, %270, %cst_111 [1] : vector<5x64xf32> to vector<5xf32>
    %272 = vector.shape_cast %271 : vector<5xf32> to vector<5x1xf32>
    %cst_112 = arith.constant 6.400000e+01 : f32
    %273 = vector.broadcast %cst_112 : f32 to vector<5x1xf32>
    %274 = arith.divf %272, %273 : vector<5x1xf32>
    %cst_113 = arith.constant 9.99999974E-6 : f32
    %275 = vector.broadcast %cst_113 : f32 to vector<5x1xf32>
    %276 = arith.addf %274, %275 : vector<5x1xf32>
    %277 = math.rsqrt %276 : vector<5x1xf32>
    %278 = vector.broadcast %277 : vector<5x1xf32> to vector<5x64xf32>
    %279 = arith.mulf %269, %278 : vector<5x64xf32>
    %280 = vector.broadcast %262 : vector<1x64xf32> to vector<5x64xf32>
    %281 = arith.mulf %279, %280 : vector<5x64xf32>
    %282 = vector.broadcast %263 : vector<1x64xf32> to vector<5x64xf32>
    %283 = arith.addf %281, %282 : vector<5x64xf32>
    %c1_114 = arith.constant 1 : index
    %c0_115 = arith.constant 0 : index
    %c0_116 = arith.constant 0 : index
    %284 = vector.load %arg13[%c1_114, %c0_115, %c0_116] : memref<2x64x256xbf16, #tpu.memory_space<vmem>>, vector<1x64x256xbf16>
    %285 = vector.shape_cast %284 : vector<1x64x256xbf16> to vector<64x256xbf16>
    %286 = arith.truncf %283 : vector<5x64xf32> to vector<5x64xbf16>
    %cst_117 = arith.constant dense<0.000000e+00> : vector<5x256xf32>
    %287 = tpu.matmul %286, %285, %cst_117 {dimension_numbers = #tpu.dot_dimension_numbers<[1], [0], [0], [1], [0, 0, 1, 1], [], []>} : vector<5x64xbf16>, vector<64x256xbf16>, vector<5x256xf32> -> vector<5x256xf32>
    %c1_118 = arith.constant 1 : index
    %c0_119 = arith.constant 0 : index
    %c0_120 = arith.constant 0 : index
    %288 = vector.load %arg14[%c1_118, %c0_119, %c0_120] : memref<2x1x256xf32, #tpu.memory_space<vmem>>, vector<1x1x256xf32>
    %289 = vector.shape_cast %288 : vector<1x1x256xf32> to vector<1x256xf32>
    %290 = vector.broadcast %289 : vector<1x256xf32> to vector<5x256xf32>
    %291 = arith.addf %287, %290 : vector<5x256xf32>
    %cst_121 = arith.constant 1.702000e+00 : f32
    %292 = vector.broadcast %cst_121 : f32 to vector<5x256xf32>
    %293 = arith.mulf %292, %291 : vector<5x256xf32>
    %294 = arith.negf %293 : vector<5x256xf32>
    %295 = math.exp %294 : vector<5x256xf32>
    %cst_122 = arith.constant 1.000000e+00 : f32
    %296 = vector.broadcast %cst_122 : f32 to vector<5x256xf32>
    %297 = arith.addf %296, %295 : vector<5x256xf32>
    %298 = arith.divf %296, %297 : vector<5x256xf32>
    %299 = arith.mulf %291, %298 : vector<5x256xf32>
    %c1_123 = arith.constant 1 : index
    %c0_124 = arith.constant 0 : index
    %c0_125 = arith.constant 0 : index
    %300 = vector.load %arg15[%c1_123, %c0_124, %c0_125] : memref<2x256x64xbf16, #tpu.memory_space<vmem>>, vector<1x256x64xbf16>
    %301 = vector.shape_cast %300 : vector<1x256x64xbf16> to vector<256x64xbf16>
    %302 = arith.truncf %299 : vector<5x256xf32> to vector<5x256xbf16>
    %cst_126 = arith.constant dense<0.000000e+00> : vector<5x64xf32>
    %303 = tpu.matmul %302, %301, %cst_126 {dimension_numbers = #tpu.dot_dimension_numbers<[1], [0], [0], [1], [0, 0, 1, 1], [], []>} : vector<5x256xbf16>, vector<256x64xbf16>, vector<5x64xf32> -> vector<5x64xf32>
    %304 = arith.addf %259, %303 : vector<5x64xf32>
    %c1_127 = arith.constant 1 : index
    %c0_128 = arith.constant 0 : index
    %c0_129 = arith.constant 0 : index
    %305 = vector.load %arg16[%c1_127, %c0_128, %c0_129] : memref<2x1x64xf32, #tpu.memory_space<vmem>>, vector<1x1x64xf32>
    %306 = vector.shape_cast %305 : vector<1x1x64xf32> to vector<1x64xf32>
    %307 = vector.broadcast %306 : vector<1x64xf32> to vector<5x64xf32>
    %308 = arith.addf %304, %307 : vector<5x64xf32>
    %309 = vector.extract_strided_slice %308 {offsets = [0, 0], sizes = [1, 64], strides = [1, 1]} : vector<5x64xf32> to vector<1x64xf32>
    %c0_130 = arith.constant 0 : index
    %c0_131 = arith.constant 0 : index
    %310 = vector.load %arg17[%c0_130, %c0_131] : memref<2x64xf32, #tpu.memory_space<vmem>>, vector<2x64xf32>
    %311 = vector.extract_strided_slice %310 {offsets = [0, 0], sizes = [1, 64], strides = [1, 1]} : vector<2x64xf32> to vector<1x64xf32>
    %312 = vector.extract_strided_slice %310 {offsets = [1, 0], sizes = [1, 64], strides = [1, 1]} : vector<2x64xf32> to vector<1x64xf32>
    %cst_132 = arith.constant dense<0.000000e+00> : vector<1xf32>
    %313 = vector.multi_reduction <add>, %309, %cst_132 [1] : vector<1x64xf32> to vector<1xf32>
    %314 = vector.shape_cast %313 : vector<1xf32> to vector<1x1xf32>
    %cst_133 = arith.constant 6.400000e+01 : f32
    %315 = vector.broadcast %cst_133 : f32 to vector<1x1xf32>
    %316 = arith.divf %314, %315 : vector<1x1xf32>
    %317 = vector.broadcast %316 : vector<1x1xf32> to vector<1x64xf32>
    %318 = arith.subf %309, %317 : vector<1x64xf32>
    %319 = arith.mulf %318, %318 : vector<1x64xf32>
    %cst_134 = arith.constant dense<0.000000e+00> : vector<1xf32>
    %320 = vector.multi_reduction <add>, %319, %cst_134 [1] : vector<1x64xf32> to vector<1xf32>
    %321 = vector.shape_cast %320 : vector<1xf32> to vector<1x1xf32>
    %cst_135 = arith.constant 6.400000e+01 : f32
    %322 = vector.broadcast %cst_135 : f32 to vector<1x1xf32>
    %323 = arith.divf %321, %322 : vector<1x1xf32>
    %cst_136 = arith.constant 9.99999974E-6 : f32
    %324 = vector.broadcast %cst_136 : f32 to vector<1x1xf32>
    %325 = arith.addf %323, %324 : vector<1x1xf32>
    %326 = math.rsqrt %325 : vector<1x1xf32>
    %327 = vector.broadcast %326 : vector<1x1xf32> to vector<1x64xf32>
    %328 = arith.mulf %318, %327 : vector<1x64xf32>
    %329 = arith.mulf %328, %311 : vector<1x64xf32>
    %330 = arith.addf %329, %312 : vector<1x64xf32>
    %c0_137 = arith.constant 0 : index
    %c0_138 = arith.constant 0 : index
    %331 = vector.load %arg18[%c0_137, %c0_138] : memref<64x64xbf16, #tpu.memory_space<vmem>>, vector<64x64xbf16>
    %332 = arith.truncf %330 : vector<1x64xf32> to vector<1x64xbf16>
    %cst_139 = arith.constant dense<0.000000e+00> : vector<1x64xf32>
    %333 = tpu.matmul %332, %331, %cst_139 {dimension_numbers = #tpu.dot_dimension_numbers<[1], [0], [0], [1], [0, 0, 1, 1], [], []>} : vector<1x64xbf16>, vector<64x64xbf16>, vector<1x64xf32> -> vector<1x64xf32>
    %c0_140 = arith.constant 0 : index
    %c0_141 = arith.constant 0 : index
    %334 = vector.load %arg19[%c0_140, %c0_141] : memref<64x32xbf16, #tpu.memory_space<vmem>>, vector<64x32xbf16>
    %335 = arith.truncf %333 : vector<1x64xf32> to vector<1x64xbf16>
    %cst_142 = arith.constant dense<0.000000e+00> : vector<1x32xf32>
    %336 = tpu.matmul %335, %334, %cst_142 {dimension_numbers = #tpu.dot_dimension_numbers<[1], [0], [0], [1], [0, 0, 1, 1], [], []>} : vector<1x64xbf16>, vector<64x32xbf16>, vector<1x32xf32> -> vector<1x32xf32>
    %c0_143 = arith.constant 0 : index
    %c0_144 = arith.constant 0 : index
    %337 = vector.load %arg20[%c0_143, %c0_144] : memref<1x32xf32, #tpu.memory_space<vmem>>, vector<1x32xf32>
    %338 = arith.addf %336, %337 : vector<1x32xf32>
    %cst_145 = arith.constant 0.000000e+00 : f32
    %339 = vector.broadcast %cst_145 : f32 to vector<1x32xf32>
    %340 = arith.maximumf %338, %339 : vector<1x32xf32>
    %c0_146 = arith.constant 0 : index
    %c0_147 = arith.constant 0 : index
    %c0_148 = arith.constant 0 : index
    %341 = vector.load %arg2[%c0_146, %c0_147, %c0_148] : memref<1x1x8xf32, #tpu.memory_space<vmem>>, vector<1x1x8xf32>
    %342 = vector.shape_cast %341 : vector<1x1x8xf32> to vector<1x8xf32>
    %c0_149 = arith.constant 0 : index
    %c0_150 = arith.constant 0 : index
    %343 = vector.load %arg21[%c0_149, %c0_150] : memref<40x32xbf16, #tpu.memory_space<vmem>>, vector<32x32xbf16>
    %c32 = arith.constant 32 : index
    %c0_151 = arith.constant 0 : index
    %344 = vector.load %arg21[%c32, %c0_151] : memref<40x32xbf16, #tpu.memory_space<vmem>>, vector<8x32xbf16>
    %345 = arith.truncf %340 : vector<1x32xf32> to vector<1x32xbf16>
    %cst_152 = arith.constant dense<0.000000e+00> : vector<1x32xf32>
    %346 = tpu.matmul %345, %343, %cst_152 {dimension_numbers = #tpu.dot_dimension_numbers<[1], [0], [0], [1], [0, 0, 1, 1], [], []>} : vector<1x32xbf16>, vector<32x32xbf16>, vector<1x32xf32> -> vector<1x32xf32>
    %347 = arith.truncf %342 : vector<1x8xf32> to vector<1x8xbf16>
    %cst_153 = arith.constant dense<0.000000e+00> : vector<1x32xf32>
    %348 = tpu.matmul %347, %344, %cst_153 {dimension_numbers = #tpu.dot_dimension_numbers<[1], [0], [0], [1], [0, 0, 1, 1], [], []>} : vector<1x8xbf16>, vector<8x32xbf16>, vector<1x32xf32> -> vector<1x32xf32>
    %349 = arith.addf %346, %348 : vector<1x32xf32>
    %c0_154 = arith.constant 0 : index
    %c0_155 = arith.constant 0 : index
    %350 = vector.load %arg22[%c0_154, %c0_155] : memref<1x32xf32, #tpu.memory_space<vmem>>, vector<1x32xf32>
    %351 = arith.addf %349, %350 : vector<1x32xf32>
    %cst_156 = arith.constant 0.000000e+00 : f32
    %352 = vector.broadcast %cst_156 : f32 to vector<1x32xf32>
    %353 = arith.maximumf %351, %352 : vector<1x32xf32>
    %c0_157 = arith.constant 0 : index
    %c0_158 = arith.constant 0 : index
    %354 = vector.load %arg23[%c0_157, %c0_158] : memref<32x3xbf16, #tpu.memory_space<vmem>>, vector<32x3xbf16>
    %355 = arith.truncf %353 : vector<1x32xf32> to vector<1x32xbf16>
    %cst_159 = arith.constant dense<0.000000e+00> : vector<1x3xf32>
    %356 = tpu.matmul %355, %354, %cst_159 {dimension_numbers = #tpu.dot_dimension_numbers<[1], [0], [0], [1], [0, 0, 1, 1], [], []>} : vector<1x32xbf16>, vector<32x3xbf16>, vector<1x3xf32> -> vector<1x3xf32>
    %c0_160 = arith.constant 0 : index
    %c0_161 = arith.constant 0 : index
    %357 = vector.load %arg24[%c0_160, %c0_161] : memref<1x3xf32, #tpu.memory_space<vmem>>, vector<1x3xf32>
    %358 = arith.addf %356, %357 : vector<1x3xf32>
    %359 = arith.negf %358 : vector<1x3xf32>
    %360 = math.exp %359 : vector<1x3xf32>
    %cst_162 = arith.constant 1.000000e+00 : f32
    %361 = vector.broadcast %cst_162 : f32 to vector<1x3xf32>
    %362 = arith.addf %361, %360 : vector<1x3xf32>
    %363 = arith.divf %361, %362 : vector<1x3xf32>
    %c0_163 = arith.constant 0 : index
    %c0_164 = arith.constant 0 : index
    %c0_165 = arith.constant 0 : index
    %364 = vector.load %arg25[%c0_163, %c0_164, %c0_165] : memref<1x1x3xf32, #tpu.memory_space<vmem>>, vector<1x1x3xf32>
    %365 = vector.shape_cast %364 : vector<1x1x3xf32> to vector<1x3xf32>
    %366 = vector.shape_cast %363 : vector<1x3xf32> to vector<1x1x3xf32>
    tpu.vector_store %arg25[%c0_163, %c0_164, %c0_165], %366 {strides = array<i32>} : memref<1x1x3xf32, #tpu.memory_space<vmem>>, vector<1x1x3xf32>,
    return
  }
  func.func @transform_0(%arg0: i32) -> (i32, i32, i32) {
    %c0_i32 = arith.constant 0 : i32
    %c0_i32_0 = arith.constant 0 : i32
    %c0_i32_1 = arith.constant 0 : i32
    return %arg0, %c0_i32, %c0_i32_0 : i32, i32, i32
  }
  func.func @transform_1(%arg0: i32) -> (i32, i32, i32) {
    %c0_i32 = arith.constant 0 : i32
    %c0_i32_0 = arith.constant 0 : i32
    %c0_i32_1 = arith.constant 0 : i32
    return %arg0, %c0_i32, %c0_i32_0 : i32, i32, i32
  }
  func.func @transform_2(%arg0: i32) -> (i32, i32) {
    %c0_i32 = arith.constant 0 : i32
    %c0_i32_0 = arith.constant 0 : i32
    %c0_i32_1 = arith.constant 0 : i32
    return %c0_i32, %c0_i32_0 : i32, i32
  }
  func.func @transform_3(%arg0: i32) -> (i32, i32) {
    %c0_i32 = arith.constant 0 : i32
    %c0_i32_0 = arith.constant 0 : i32
    %c0_i32_1 = arith.constant 0 : i32
    return %c0_i32, %c0_i32_0 : i32, i32
  }
  func.func @transform_4(%arg0: i32) -> (i32, i32) {
    %c0_i32 = arith.constant 0 : i32
    %c0_i32_0 = arith.constant 0 : i32
    %c0_i32_1 = arith.constant 0 : i32
    return %c0_i32, %c0_i32_0 : i32, i32
  }
  func.func @transform_5(%arg0: i32) -> (i32, i32) {
    %c0_i32 = arith.constant 0 : i32
    %c0_i32_0 = arith.constant 0 : i32
    %c0_i32_1 = arith.constant 0 : i32
    return %c0_i32, %c0_i32_0 : i32, i32
  }
  func.func @transform_6(%arg0: i32) -> (i32, i32, i32) {
    %c0_i32 = arith.constant 0 : i32
    %c0_i32_0 = arith.constant 0 : i32
    %c0_i32_1 = arith.constant 0 : i32
    %c0_i32_2 = arith.constant 0 : i32
    return %c0_i32, %c0_i32_0, %c0_i32_1 : i32, i32, i32
  }
  func.func @transform_7(%arg0: i32) -> (i32, i32, i32) {
    %c0_i32 = arith.constant 0 : i32
    %c0_i32_0 = arith.constant 0 : i32
    %c0_i32_1 = arith.constant 0 : i32
    %c0_i32_2 = arith.constant 0 : i32
    return %c0_i32, %c0_i32_0, %c0_i32_1 : i32, i32, i32
  }
  func.func @transform_8(%arg0: i32) -> (i32, i32, i32) {
    %c0_i32 = arith.constant 0 : i32
    %c0_i32_0 = arith.constant 0 : i32
    %c0_i32_1 = arith.constant 0 : i32
    %c0_i32_2 = arith.constant 0 : i32
    return %c0_i32, %c0_i32_0, %c0_i32_1 : i32, i32, i32
  }
  func.func @transform_9(%arg0: i32) -> (i32, i32, i32) {
    %c0_i32 = arith.constant 0 : i32
    %c0_i32_0 = arith.constant 0 : i32
    %c0_i32_1 = arith.constant 0 : i32
    %c0_i32_2 = arith.constant 0 : i32
    return %c0_i32, %c0_i32_0, %c0_i32_1 : i32, i32, i32
  }
  func.func @transform_10(%arg0: i32) -> (i32, i32, i32) {
    %c0_i32 = arith.constant 0 : i32
    %c0_i32_0 = arith.constant 0 : i32
    %c0_i32_1 = arith.constant 0 : i32
    %c0_i32_2 = arith.constant 0 : i32
    return %c0_i32, %c0_i32_0, %c0_i32_1 : i32, i32, i32
  }
  func.func @transform_11(%arg0: i32) -> (i32, i32, i32) {
    %c0_i32 = arith.constant 0 : i32
    %c0_i32_0 = arith.constant 0 : i32
    %c0_i32_1 = arith.constant 0 : i32
    %c0_i32_2 = arith.constant 0 : i32
    return %c0_i32, %c0_i32_0, %c0_i32_1 : i32, i32, i32
  }
  func.func @transform_12(%arg0: i32) -> (i32, i32, i32) {
    %c0_i32 = arith.constant 0 : i32
    %c0_i32_0 = arith.constant 0 : i32
    %c0_i32_1 = arith.constant 0 : i32
    %c0_i32_2 = arith.constant 0 : i32
    return %c0_i32, %c0_i32_0, %c0_i32_1 : i32, i32, i32
  }
  func.func @transform_13(%arg0: i32) -> (i32, i32, i32) {
    %c0_i32 = arith.constant 0 : i32
    %c0_i32_0 = arith.constant 0 : i32
    %c0_i32_1 = arith.constant 0 : i32
    %c0_i32_2 = arith.constant 0 : i32
    return %c0_i32, %c0_i32_0, %c0_i32_1 : i32, i32, i32
  }
  func.func @transform_14(%arg0: i32) -> (i32, i32, i32) {
    %c0_i32 = arith.constant 0 : i32
    %c0_i32_0 = arith.constant 0 : i32
    %c0_i32_1 = arith.constant 0 : i32
    %c0_i32_2 = arith.constant 0 : i32
    return %c0_i32, %c0_i32_0, %c0_i32_1 : i32, i32, i32
  }
  func.func @transform_15(%arg0: i32) -> (i32, i32, i32) {
    %c0_i32 = arith.constant 0 : i32
    %c0_i32_0 = arith.constant 0 : i32
    %c0_i32_1 = arith.constant 0 : i32
    %c0_i32_2 = arith.constant 0 : i32
    return %c0_i32, %c0_i32_0, %c0_i32_1 : i32, i32, i32
  }
  func.func @transform_16(%arg0: i32) -> (i32, i32) {
    %c0_i32 = arith.constant 0 : i32
    %c0_i32_0 = arith.constant 0 : i32
    %c0_i32_1 = arith.constant 0 : i32
    return %c0_i32, %c0_i32_0 : i32, i32
  }
  func.func @transform_17(%arg0: i32) -> (i32, i32) {
    %c0_i32 = arith.constant 0 : i32
    %c0_i32_0 = arith.constant 0 : i32
    %c0_i32_1 = arith.constant 0 : i32
    return %c0_i32, %c0_i32_0 : i32, i32
  }
  func.func @transform_18(%arg0: i32) -> (i32, i32) {
    %c0_i32 = arith.constant 0 : i32
    %c0_i32_0 = arith.constant 0 : i32
    %c0_i32_1 = arith.constant 0 : i32
    return %c0_i32, %c0_i32_0 : i32, i32
  }
  func.func @transform_19(%arg0: i32) -> (i32, i32) {
    %c0_i32 = arith.constant 0 : i32
    %c0_i32_0 = arith.constant 0 : i32
    %c0_i32_1 = arith.constant 0 : i32
    return %c0_i32, %c0_i32_0 : i32, i32
  }
  func.func @transform_20(%arg0: i32) -> (i32, i32) {
    %c0_i32 = arith.constant 0 : i32
    %c0_i32_0 = arith.constant 0 : i32
    %c0_i32_1 = arith.constant 0 : i32
    return %c0_i32, %c0_i32_0 : i32, i32
  }
  func.func @transform_21(%arg0: i32) -> (i32, i32) {
    %c0_i32 = arith.constant 0 : i32
    %c0_i32_0 = arith.constant 0 : i32
    %c0_i32_1 = arith.constant 0 : i32
    return %c0_i32, %c0_i32_0 : i32, i32
  }
  func.func @transform_22(%arg0: i32) -> (i32, i32) {
    %c0_i32 = arith.constant 0 : i32
    %c0_i32_0 = arith.constant 0 : i32
    %c0_i32_1 = arith.constant 0 : i32
    return %c0_i32, %c0_i32_0 : i32, i32
  }
  func.func @transform_23(%arg0: i32) -> (i32, i32) {
    %c0_i32 = arith.constant 0 : i32
    %c0_i32_0 = arith.constant 0 : i32
    %c0_i32_1 = arith.constant 0 : i32
    return %c0_i32, %c0_i32_0 : i32, i32
  }
  func.func @transform_24(%arg0: i32) -> (i32, i32, i32) {
    %c0_i32 = arith.constant 0 : i32
    %c0_i32_0 = arith.constant 0 : i32
    %c0_i32_1 = arith.constant 0 : i32
    return %arg0, %c0_i32, %c0_i32_0 : i32, i32, i32
  }
}

</mosaic_0001>

<llo_original>
// kernel: state_estimator_forward.1
$region0: #{state_estimator_forward.1}
  #allocation0 [shape = 'u32[]', space=smem, size = 0x4, offset = 0x4, fixed_abs, tag = 'smem constant byte address 0x4 - core index']
  #allocation1 [shape = 'u32[72,128]{1,0:T(1,128)}', space=vmem, size = 0x9000, scoped, tag = 'internal scratch']
  %s0 = inlined_call_operand.vmem [shape: bf16[2,4,3072], index: 0, kind: input, shape index: {}]
  %s1 = inlined_call_operand.vmem [shape: f32[2,1,8], index: 1, kind: input, shape index: {}]
  %s2 = inlined_call_operand.vmem [shape: bf16[3072,64], index: 2, kind: input, shape index: {}]
  %s3 = inlined_call_operand.vmem [shape: f32[1,64], index: 3, kind: input, shape index: {}]
  %s4 = inlined_call_operand.vmem [shape: f32[5,64], index: 4, kind: input, shape index: {}]
  %s5 = inlined_call_operand.vmem [shape: f32[2,64], index: 5, kind: input, shape index: {}]
  %s6 = inlined_call_operand.vmem [shape: f32[2,2,64], index: 6, kind: input, shape index: {}]
  %s7 = inlined_call_operand.vmem [shape: bf16[2,64,192], index: 7, kind: input, shape index: {}]
  %s8 = inlined_call_operand.vmem [shape: f32[2,1,192], index: 8, kind: input, shape index: {}]
  %s9 = inlined_call_operand.vmem [shape: bf16[2,64,64], index: 9, kind: input, shape index: {}]
  %s10 = inlined_call_operand.vmem [shape: f32[2,1,64], index: 10, kind: input, shape index: {}]
  %s11 = inlined_call_operand.vmem [shape: f32[2,2,64], index: 11, kind: input, shape index: {}]
  %s12 = inlined_call_operand.vmem [shape: bf16[2,64,256], index: 12, kind: input, shape index: {}]
  %s13 = inlined_call_operand.vmem [shape: f32[2,1,256], index: 13, kind: input, shape index: {}]
  %s14 = inlined_call_operand.vmem [shape: bf16[2,256,64], index: 14, kind: input, shape index: {}]
  %s15 = inlined_call_operand.vmem [shape: f32[2,1,64], index: 15, kind: input, shape index: {}]
  %s16 = inlined_call_operand.vmem [shape: f32[2,64], index: 16, kind: input, shape index: {}]
  %s17 = inlined_call_operand.vmem [shape: bf16[64,64], index: 17, kind: input, shape index: {}]
  %s18 = inlined_call_operand.vmem [shape: bf16[64,32], index: 18, kind: input, shape index: {}]
  %s19 = inlined_call_operand.vmem [shape: f32[1,32], index: 19, kind: input, shape index: {}]
  %s20 = inlined_call_operand.vmem [shape: bf16[40,32], index: 20, kind: input, shape index: {}]
  %s21 = inlined_call_operand.vmem [shape: f32[1,32], index: 21, kind: input, shape index: {}]
  %s22 = inlined_call_operand.vmem [shape: bf16[32,3], index: 22, kind: input, shape index: {}]
  %s23 = inlined_call_operand.vmem [shape: f32[1,3], index: 23, kind: input, shape index: {}]
  %s24 = inlined_call_operand.hbm [shape: f32[2,1,3], index: 24, kind: output, shape index: {}]
  %s25 = sld [smem:[#allocation0]]
  $region129: #{state_estimator_forward.1} parent=0
    _
  %s27 = ssub.s32 1, %s25
  %s28 = scalar_select 0, %s27, %s25
  $region1: #{state_estimator_forward.1} parent=0
    #allocation2 [shape = 'u8[1024]{0}', space=vmem, size = 0x400, scoped, tag = 'output window, operand 0']
    #allocation3 [shape = 's32[2]{0}', space=sflag, size = 0x8, scoped, tag = 'scoped memory for state_estimator_forward.1']
    %29 = vsyncpa [#allocation3], 0
    %s30 = scalar_lea.sflag [#allocation3], 1
    %31 = vsyncpa %s30, 0
    loop: start=0, step=1, limit=4
    $region2: #{state_estimator_forward.1} parent=1 // loop_pre_header
      _
    $region3: #{state_estimator_forward.1} parent=1 // loop_header
      %s33 = sphi 0, %s37
      %p34 = scmp.ge.s32.totalorder %s33, 4
      %s43 = sphi 0, %s45
      %s46 = sphi 0, %s43
      %s47 = sphi 0, %s46
      %s63 = sphi 0, %s47
      %s69 = sphi 0, %s71
      %s72 = sphi 0, %s69
      %s73 = sphi 0, %s72
      %s89 = sphi 0, %s73
      %s93 = sphi 0, %s93
      %s95 = sphi 0, %s93
      %s96 = sphi 0, %s95
      %s110 = sphi 0, %s96
      %s114 = sphi 0, %s114
      %s116 = sphi 0, %s114
      %s117 = sphi 0, %s116
      %s131 = sphi 0, %s117
      %s135 = sphi 0, %s135
      %s137 = sphi 0, %s135
      %s138 = sphi 0, %s137
      %s152 = sphi 0, %s138
      %s156 = sphi 0, %s156
      %s158 = sphi 0, %s156
      %s159 = sphi 0, %s158
      %s173 = sphi 0, %s159
      %s177 = sphi 0, %s177
      %s179 = sphi 0, %s177
      %s180 = sphi 0, %s179
      %s194 = sphi 0, %s180
      %s198 = sphi 0, %s198
      %s200 = sphi 0, %s198
      %s201 = sphi 0, %s200
      %s215 = sphi 0, %s201
      %s219 = sphi 0, %s219
      %s221 = sphi 0, %s219
      %s222 = sphi 0, %s221
      %s236 = sphi 0, %s222
      %s240 = sphi 0, %s240
      %s242 = sphi 0, %s240
      %s243 = sphi 0, %s242
      %s257 = sphi 0, %s243
      %s261 = sphi 0, %s261
      %s263 = sphi 0, %s261
      %s264 = sphi 0, %s263
      %s278 = sphi 0, %s264
      %s282 = sphi 0, %s282
      %s284 = sphi 0, %s282
      %s285 = sphi 0, %s284
      %s299 = sphi 0, %s285
      %s303 = sphi 0, %s303
      %s305 = sphi 0, %s303
      %s306 = sphi 0, %s305
      %s320 = sphi 0, %s306
      %s324 = sphi 0, %s324
      %s326 = sphi 0, %s324
      %s327 = sphi 0, %s326
      %s341 = sphi 0, %s327
      %s345 = sphi 0, %s345
      %s347 = sphi 0, %s345
      %s348 = sphi 0, %s347
      %s362 = sphi 0, %s348
      %s366 = sphi 0, %s366
      %s368 = sphi 0, %s366
      %s369 = sphi 0, %s368
      %s383 = sphi 0, %s369
      %s387 = sphi 0, %s387
      %s389 = sphi 0, %s387
      %s390 = sphi 0, %s389
      %s404 = sphi 0, %s390
      %s408 = sphi 0, %s408
      %s410 = sphi 0, %s408
      %s411 = sphi 0, %s410
      %s425 = sphi 0, %s411
      %s429 = sphi 0, %s429
      %s431 = sphi 0, %s429
      %s432 = sphi 0, %s431
      %s446 = sphi 0, %s432
      %s450 = sphi 0, %s450
      %s452 = sphi 0, %s450
      %s453 = sphi 0, %s452
      %s467 = sphi 0, %s453
      %s471 = sphi 0, %s471
      %s473 = sphi 0, %s471
      %s474 = sphi 0, %s473
      %s488 = sphi 0, %s474
      %s492 = sphi 0, %s492
      %s494 = sphi 0, %s492
      %s495 = sphi 0, %s494
      %s509 = sphi 0, %s495
      %s513 = sphi 0, %s513
      %s515 = sphi 0, %s513
      %s516 = sphi 0, %s515
      %s530 = sphi 0, %s516
      %s534 = sphi 0, %s534
      %s536 = sphi 0, %s534
      %s537 = sphi 0, %s536
      %s551 = sphi 0, %s537
      %s557 = sphi 0, %s559
      %s560 = sphi 0, %s557
      %s561 = sphi 0, %s560
      %s577 = sphi 0, %s561
    $region4: #{state_estimator_forward.1} parent=1 // loop_header_branch
      %36 = sbr.rel (%p34) target = $region8
    $region5: #{state_estimator_forward.1} parent=1 // loop_body
      %s38 = ssub.s32 %s33, 1
      %s39 = ssub.s32 %s33, 2
      %s40 = sadd.s32 %s33, 1
      %s41 = ssub.s32 %s33, %s40
      %p42 = scmp.eq.s32.totalorder %s41, 0
      %s44 = sadd.s32 %s43, 1
      %s45 = scalar_select %p42, %s43, %s44
      %p48 = pneg %p42
      %p49 = scmp.eq.s32.totalorder %s33, 1
      %p50 = por %p48, %p49
      %p51 = scmp.ne.s32.totalorder %s43, %s46
      %p52 = scmp.eq.s32.totalorder %s33, 0
      %p53 = por %p51, %p52
      %p54 = scmp.ne.s32.totalorder %s43, %s46
      %p55 = scmp.eq.s32.totalorder %s38, 1
      %p56 = por %p54, %p55
      %p57 = scmp.ne.s32.totalorder %s46, %s47
      %p58 = scmp.eq.s32.totalorder %s38, 0
      %p59 = por %p57, %p58
      %p60 = scmp.ne.s32.totalorder %s46, %s47
      %p61 = scmp.eq.s32.totalorder %s39, 1
      %p62 = por %p60, %p61
      %p64 = scmp.ne.s32.totalorder %s47, %s63
      %p65 = scmp.eq.s32.totalorder %s39, 0
      %p66 = por %p64, %p65
      %s67 = ssub.s32 %s33, %s40
      %p68 = scmp.eq.s32.totalorder %s67, 0
      %s70 = sadd.s32 %s69, 1
      %s71 = scalar_select %p68, %s69, %s70
      %p74 = pneg %p68
      %p75 = scmp.eq.s32.totalorder %s33, 1
      %p76 = por %p74, %p75
      %p77 = scmp.ne.s32.totalorder %s69, %s72
      %p78 = scmp.eq.s32.totalorder %s33, 0
      %p79 = por %p77, %p78
      %p80 = scmp.ne.s32.totalorder %s69, %s72
      %p81 = scmp.eq.s32.totalorder %s38, 1
      %p82 = por %p80, %p81
      %p83 = scmp.ne.s32.totalorder %s72, %s73
      %p84 = scmp.eq.s32.totalorder %s38, 0
      %p85 = por %p83, %p84
      %p86 = scmp.ne.s32.totalorder %s72, %s73
      %p87 = scmp.eq.s32.totalorder %s39, 1
      %p88 = por %p86, %p87
      %p90 = scmp.ne.s32.totalorder %s73, %s89
      %p91 = scmp.eq.s32.totalorder %s39, 0
      %p92 = por %p90, %p91
      %s94 = sadd.s32 %s93, 1
      %p97 = scmp.eq.s32.totalorder %s33, 1
      %p98 = scmp.ne.s32.totalorder %s93, %s95
      %p99 = scmp.eq.s32.totalorder %s33, 0
      %p100 = por %p98, %p99
      %p101 = scmp.ne.s32.totalorder %s93, %s95
      %p102 = scmp.eq.s32.totalorder %s38, 1
      %p103 = por %p101, %p102
      %p104 = scmp.ne.s32.totalorder %s95, %s96
      %p105 = scmp.eq.s32.totalorder %s38, 0
      %p106 = por %p104, %p105
      %p107 = scmp.ne.s32.totalorder %s95, %s96
      %p108 = scmp.eq.s32.totalorder %s39, 1
      %p109 = por %p107, %p108
      %p111 = scmp.ne.s32.totalorder %s96, %s110
      %p112 = scmp.eq.s32.totalorder %s39, 0
      %p113 = por %p111, %p112
      %s115 = sadd.s32 %s114, 1
      %p118 = scmp.eq.s32.totalorder %s33, 1
      %p119 = scmp.ne.s32.totalorder %s114, %s116
      %p120 = scmp.eq.s32.totalorder %s33, 0
      %p121 = por %p119, %p120
      %p122 = scmp.ne.s32.totalorder %s114, %s116
      %p123 = scmp.eq.s32.totalorder %s38, 1
      %p124 = por %p122, %p123
      %p125 = scmp.ne.s32.totalorder %s116, %s117
      %p126 = scmp.eq.s32.totalorder %s38, 0
      %p127 = por %p125, %p126
      %p128 = scmp.ne.s32.totalorder %s116, %s117
      %p129 = scmp.eq.s32.totalorder %s39, 1
      %p130 = por %p128, %p129
      %p132 = scmp.ne.s32.totalorder %s117, %s131
      %p133 = scmp.eq.s32.totalorder %s39, 0
      %p134 = por %p132, %p133
      %s136 = sadd.s32 %s135, 1
      %p139 = scmp.eq.s32.totalorder %s33, 1
      %p140 = scmp.ne.s32.totalorder %s135, %s137
      %p141 = scmp.eq.s32.totalorder %s33, 0
      %p142 = por %p140, %p141
      %p143 = scmp.ne.s32.totalorder %s135, %s137
      %p144 = scmp.eq.s32.totalorder %s38, 1
      %p145 = por %p143, %p144
      %p146 = scmp.ne.s32.totalorder %s137, %s138
      %p147 = scmp.eq.s32.totalorder %s38, 0
      %p148 = por %p146, %p147
      %p149 = scmp.ne.s32.totalorder %s137, %s138
      %p150 = scmp.eq.s32.totalorder %s39, 1
      %p151 = por %p149, %p150
      %p153 = scmp.ne.s32.totalorder %s138, %s152
      %p154 = scmp.eq.s32.totalorder %s39, 0
      %p155 = por %p153, %p154
      %s157 = sadd.s32 %s156, 1
      %p160 = scmp.eq.s32.totalorder %s33, 1
      %p161 = scmp.ne.s32.totalorder %s156, %s158
      %p162 = scmp.eq.s32.totalorder %s33, 0
      %p163 = por %p161, %p162
      %p164 = scmp.ne.s32.totalorder %s156, %s158
      %p165 = scmp.eq.s32.totalorder %s38, 1
      %p166 = por %p164, %p165
      %p167 = scmp.ne.s32.totalorder %s158, %s159
      %p168 = scmp.eq.s32.totalorder %s38, 0
      %p169 = por %p167, %p168
      %p170 = scmp.ne.s32.totalorder %s158, %s159
      %p171 = scmp.eq.s32.totalorder %s39, 1
      %p172 = por %p170, %p171
      %p174 = scmp.ne.s32.totalorder %s159, %s173
      %p175 = scmp.eq.s32.totalorder %s39, 0
      %p176 = por %p174, %p175
      %s178 = sadd.s32 %s177, 1
      %p181 = scmp.eq.s32.totalorder %s33, 1
      %p182 = scmp.ne.s32.totalorder %s177, %s179
      %p183 = scmp.eq.s32.totalorder %s33, 0
      %p184 = por %p182, %p183
      %p185 = scmp.ne.s32.totalorder %s177, %s179
      %p186 = scmp.eq.s32.totalorder %s38, 1
      %p187 = por %p185, %p186
      %p188 = scmp.ne.s32.totalorder %s179, %s180
      %p189 = scmp.eq.s32.totalorder %s38, 0
      %p190 = por %p188, %p189
      %p191 = scmp.ne.s32.totalorder %s179, %s180
      %p192 = scmp.eq.s32.totalorder %s39, 1
      %p193 = por %p191, %p192
      %p195 = scmp.ne.s32.totalorder %s180, %s194
      %p196 = scmp.eq.s32.totalorder %s39, 0
      %p197 = por %p195, %p196
      %s199 = sadd.s32 %s198, 1
      %p202 = scmp.eq.s32.totalorder %s33, 1
      %p203 = scmp.ne.s32.totalorder %s198, %s200
      %p204 = scmp.eq.s32.totalorder %s33, 0
      %p205 = por %p203, %p204
      %p206 = scmp.ne.s32.totalorder %s198, %s200
      %p207 = scmp.eq.s32.totalorder %s38, 1
      %p208 = por %p206, %p207
      %p209 = scmp.ne.s32.totalorder %s200, %s201
      %p210 = scmp.eq.s32.totalorder %s38, 0
      %p211 = por %p209, %p210
      %p212 = scmp.ne.s32.totalorder %s200, %s201
      %p213 = scmp.eq.s32.totalorder %s39, 1
      %p214 = por %p212, %p213
      %p216 = scmp.ne.s32.totalorder %s201, %s215
      %p217 = scmp.eq.s32.totalorder %s39, 0
      %p218 = por %p216, %p217
      %s220 = sadd.s32 %s219, 1
      %p223 = scmp.eq.s32.totalorder %s33, 1
      %p224 = scmp.ne.s32.totalorder %s219, %s221
      %p225 = scmp.eq.s32.totalorder %s33, 0
      %p226 = por %p224, %p225
      %p227 = scmp.ne.s32.totalorder %s219, %s221
      %p228 = scmp.eq.s32.totalorder %s38, 1
      %p229 = por %p227, %p228
      %p230 = scmp.ne.s32.totalorder %s221, %s222
      %p231 = scmp.eq.s32.totalorder %s38, 0
      %p232 = por %p230, %p231
      %p233 = scmp.ne.s32.totalorder %s221, %s222
      %p234 = scmp.eq.s32.totalorder %s39, 1
      %p235 = por %p233, %p234
      %p237 = scmp.ne.s32.totalorder %s222, %s236
      %p238 = scmp.eq.s32.totalorder %s39, 0
      %p239 = por %p237, %p238
      %s241 = sadd.s32 %s240, 1
      %p244 = scmp.eq.s32.totalorder %s33, 1
      %p245 = scmp.ne.s32.totalorder %s240, %s242
      %p246 = scmp.eq.s32.totalorder %s33, 0
      %p247 = por %p245, %p246
      %p248 = scmp.ne.s32.totalorder %s240, %s242
      %p249 = scmp.eq.s32.totalorder %s38, 1
      %p250 = por %p248, %p249
      %p251 = scmp.ne.s32.totalorder %s242, %s243
      %p252 = scmp.eq.s32.totalorder %s38, 0
      %p253 = por %p251, %p252
      %p254 = scmp.ne.s32.totalorder %s242, %s243
      %p255 = scmp.eq.s32.totalorder %s39, 1
      %p256 = por %p254, %p255
      %p258 = scmp.ne.s32.totalorder %s243, %s257
      %p259 = scmp.eq.s32.totalorder %s39, 0
      %p260 = por %p258, %p259
      %s262 = sadd.s32 %s261, 1
      %p265 = scmp.eq.s32.totalorder %s33, 1
      %p266 = scmp.ne.s32.totalorder %s261, %s263
      %p267 = scmp.eq.s32.totalorder %s33, 0
      %p268 = por %p266, %p267
      %p269 = scmp.ne.s32.totalorder %s261, %s263
      %p270 = scmp.eq.s32.totalorder %s38, 1
      %p271 = por %p269, %p270
      %p272 = scmp.ne.s32.totalorder %s263, %s264
      %p273 = scmp.eq.s32.totalorder %s38, 0
      %p274 = por %p272, %p273
      %p275 = scmp.ne.s32.totalorder %s263, %s264
      %p276 = scmp.eq.s32.totalorder %s39, 1
      %p277 = por %p275, %p276
      %p279 = scmp.ne.s32.totalorder %s264, %s278
      %p280 = scmp.eq.s32.totalorder %s39, 0
      %p281 = por %p279, %p280
      %s283 = sadd.s32 %s282, 1
      %p286 = scmp.eq.s32.totalorder %s33, 1
      %p287 = scmp.ne.s32.totalorder %s282, %s284
      %p288 = scmp.eq.s32.totalorder %s33, 0
      %p289 = por %p287, %p288
      %p290 = scmp.ne.s32.totalorder %s282, %s284
      %p291 = scmp.eq.s32.totalorder %s38, 1
      %p292 = por %p290, %p291
      %p293 = scmp.ne.s32.totalorder %s284, %s285
      %p294 = scmp.eq.s32.totalorder %s38, 0
      %p295 = por %p293, %p294
      %p296 = scmp.ne.s32.totalorder %s284, %s285
      %p297 = scmp.eq.s32.totalorder %s39, 1
      %p298 = por %p296, %p297
      %p300 = scmp.ne.s32.totalorder %s285, %s299
      %p301 = scmp.eq.s32.totalorder %s39, 0
      %p302 = por %p300, %p301
      %s304 = sadd.s32 %s303, 1
      %p307 = scmp.eq.s32.totalorder %s33, 1
      %p308 = scmp.ne.s32.totalorder %s303, %s305
      %p309 = scmp.eq.s32.totalorder %s33, 0
      %p310 = por %p308, %p309
      %p311 = scmp.ne.s32.totalorder %s303, %s305
      %p312 = scmp.eq.s32.totalorder %s38, 1
      %p313 = por %p311, %p312
      %p314 = scmp.ne.s32.totalorder %s305, %s306
      %p315 = scmp.eq.s32.totalorder %s38, 0
      %p316 = por %p314, %p315
      %p317 = scmp.ne.s32.totalorder %s305, %s306
      %p318 = scmp.eq.s32.totalorder %s39, 1
      %p319 = por %p317, %p318
      %p321 = scmp.ne.s32.totalorder %s306, %s320
      %p322 = scmp.eq.s32.totalorder %s39, 0
      %p323 = por %p321, %p322
      %s325 = sadd.s32 %s324, 1
      %p328 = scmp.eq.s32.totalorder %s33, 1
      %p329 = scmp.ne.s32.totalorder %s324, %s326
      %p330 = scmp.eq.s32.totalorder %s33, 0
      %p331 = por %p329, %p330
      %p332 = scmp.ne.s32.totalorder %s324, %s326
      %p333 = scmp.eq.s32.totalorder %s38, 1
      %p334 = por %p332, %p333
      %p335 = scmp.ne.s32.totalorder %s326, %s327
      %p336 = scmp.eq.s32.totalorder %s38, 0
      %p337 = por %p335, %p336
      %p338 = scmp.ne.s32.totalorder %s326, %s327
      %p339 = scmp.eq.s32.totalorder %s39, 1
      %p340 = por %p338, %p339
      %p342 = scmp.ne.s32.totalorder %s327, %s341
      %p343 = scmp.eq.s32.totalorder %s39, 0
      %p344 = por %p342, %p343
      %s346 = sadd.s32 %s345, 1
      %p349 = scmp.eq.s32.totalorder %s33, 1
      %p350 = scmp.ne.s32.totalorder %s345, %s347
      %p351 = scmp.eq.s32.totalorder %s33, 0
      %p352 = por %p350, %p351
      %p353 = scmp.ne.s32.totalorder %s345, %s347
      %p354 = scmp.eq.s32.totalorder %s38, 1
      %p355 = por %p353, %p354
      %p356 = scmp.ne.s32.totalorder %s347, %s348
      %p357 = scmp.eq.s32.totalorder %s38, 0
      %p358 = por %p356, %p357
      %p359 = scmp.ne.s32.totalorder %s347, %s348
      %p360 = scmp.eq.s32.totalorder %s39, 1
      %p361 = por %p359, %p360
      %p363 = scmp.ne.s32.totalorder %s348, %s362
      %p364 = scmp.eq.s32.totalorder %s39, 0
      %p365 = por %p363, %p364
      %s367 = sadd.s32 %s366, 1
      %p370 = scmp.eq.s32.totalorder %s33, 1
      %p371 = scmp.ne.s32.totalorder %s366, %s368
      %p372 = scmp.eq.s32.totalorder %s33, 0
      %p373 = por %p371, %p372
      %p374 = scmp.ne.s32.totalorder %s366, %s368
      %p375 = scmp.eq.s32.totalorder %s38, 1
      %p376 = por %p374, %p375
      %p377 = scmp.ne.s32.totalorder %s368, %s369
      %p378 = scmp.eq.s32.totalorder %s38, 0
      %p379 = por %p377, %p378
      %p380 = scmp.ne.s32.totalorder %s368, %s369
      %p381 = scmp.eq.s32.totalorder %s39, 1
      %p382 = por %p380, %p381
      %p384 = scmp.ne.s32.totalorder %s369, %s383
      %p385 = scmp.eq.s32.totalorder %s39, 0
      %p386 = por %p384, %p385
      %s388 = sadd.s32 %s387, 1
      %p391 = scmp.eq.s32.totalorder %s33, 1
      %p392 = scmp.ne.s32.totalorder %s387, %s389
      %p393 = scmp.eq.s32.totalorder %s33, 0
      %p394 = por %p392, %p393
      %p395 = scmp.ne.s32.totalorder %s387, %s389
      %p396 = scmp.eq.s32.totalorder %s38, 1
      %p397 = por %p395, %p396
      %p398 = scmp.ne.s32.totalorder %s389, %s390
      %p399 = scmp.eq.s32.totalorder %s38, 0
      %p400 = por %p398, %p399
      %p401 = scmp.ne.s32.totalorder %s389, %s390
      %p402 = scmp.eq.s32.totalorder %s39, 1
      %p403 = por %p401, %p402
      %p405 = scmp.ne.s32.totalorder %s390, %s404
      %p406 = scmp.eq.s32.totalorder %s39, 0
      %p407 = por %p405, %p406
      %s409 = sadd.s32 %s408, 1
      %p412 = scmp.eq.s32.totalorder %s33, 1
      %p413 = scmp.ne.s32.totalorder %s408, %s410
      %p414 = scmp.eq.s32.totalorder %s33, 0
      %p415 = por %p413, %p414
      %p416 = scmp.ne.s32.totalorder %s408, %s410
      %p417 = scmp.eq.s32.totalorder %s38, 1
      %p418 = por %p416, %p417
      %p419 = scmp.ne.s32.totalorder %s410, %s411
      %p420 = scmp.eq.s32.totalorder %s38, 0
      %p421 = por %p419, %p420
      %p422 = scmp.ne.s32.totalorder %s410, %s411
      %p423 = scmp.eq.s32.totalorder %s39, 1
      %p424 = por %p422, %p423
      %p426 = scmp.ne.s32.totalorder %s411, %s425
      %p427 = scmp.eq.s32.totalorder %s39, 0
      %p428 = por %p426, %p427
      %s430 = sadd.s32 %s429, 1
      %p433 = scmp.eq.s32.totalorder %s33, 1
      %p434 = scmp.ne.s32.totalorder %s429, %s431
      %p435 = scmp.eq.s32.totalorder %s33, 0
      %p436 = por %p434, %p435
      %p437 = scmp.ne.s32.totalorder %s429, %s431
      %p438 = scmp.eq.s32.totalorder %s38, 1
      %p439 = por %p437, %p438
      %p440 = scmp.ne.s32.totalorder %s431, %s432
      %p441 = scmp.eq.s32.totalorder %s38, 0
      %p442 = por %p440, %p441
      %p443 = scmp.ne.s32.totalorder %s431, %s432
      %p444 = scmp.eq.s32.totalorder %s39, 1
      %p445 = por %p443, %p444
      %p447 = scmp.ne.s32.totalorder %s432, %s446
      %p448 = scmp.eq.s32.totalorder %s39, 0
      %p449 = por %p447, %p448
      %s451 = sadd.s32 %s450, 1
      %p454 = scmp.eq.s32.totalorder %s33, 1
      %p455 = scmp.ne.s32.totalorder %s450, %s452
      %p456 = scmp.eq.s32.totalorder %s33, 0
      %p457 = por %p455, %p456
      %p458 = scmp.ne.s32.totalorder %s450, %s452
      %p459 = scmp.eq.s32.totalorder %s38, 1
      %p460 = por %p458, %p459
      %p461 = scmp.ne.s32.totalorder %s452, %s453
      %p462 = scmp.eq.s32.totalorder %s38, 0
      %p463 = por %p461, %p462
      %p464 = scmp.ne.s32.totalorder %s452, %s453
      %p465 = scmp.eq.s32.totalorder %s39, 1
      %p466 = por %p464, %p465
      %p468 = scmp.ne.s32.totalorder %s453, %s467
      %p469 = scmp.eq.s32.totalorder %s39, 0
      %p470 = por %p468, %p469
      %s472 = sadd.s32 %s471, 1
      %p475 = scmp.eq.s32.totalorder %s33, 1
      %p476 = scmp.ne.s32.totalorder %s471, %s473
      %p477 = scmp.eq.s32.totalorder %s33, 0
      %p478 = por %p476, %p477
      %p479 = scmp.ne.s32.totalorder %s471, %s473
      %p480 = scmp.eq.s32.totalorder %s38, 1
      %p481 = por %p479, %p480
      %p482 = scmp.ne.s32.totalorder %s473, %s474
      %p483 = scmp.eq.s32.totalorder %s38, 0
      %p484 = por %p482, %p483
      %p485 = scmp.ne.s32.totalorder %s473, %s474
      %p486 = scmp.eq.s32.totalorder %s39, 1
      %p487 = por %p485, %p486
      %p489 = scmp.ne.s32.totalorder %s474, %s488
      %p490 = scmp.eq.s32.totalorder %s39, 0
      %p491 = por %p489, %p490
      %s493 = sadd.s32 %s492, 1
      %p496 = scmp.eq.s32.totalorder %s33, 1
      %p497 = scmp.ne.s32.totalorder %s492, %s494
      %p498 = scmp.eq.s32.totalorder %s33, 0
      %p499 = por %p497, %p498
      %p500 = scmp.ne.s32.totalorder %s492, %s494
      %p501 = scmp.eq.s32.totalorder %s38, 1
      %p502 = por %p500, %p501
      %p503 = scmp.ne.s32.totalorder %s494, %s495
      %p504 = scmp.eq.s32.totalorder %s38, 0
      %p505 = por %p503, %p504
      %p506 = scmp.ne.s32.totalorder %s494, %s495
      %p507 = scmp.eq.s32.totalorder %s39, 1
      %p508 = por %p506, %p507
      %p510 = scmp.ne.s32.totalorder %s495, %s509
      %p511 = scmp.eq.s32.totalorder %s39, 0
      %p512 = por %p510, %p511
      %s514 = sadd.s32 %s513, 1
      %p517 = scmp.eq.s32.totalorder %s33, 1
      %p518 = scmp.ne.s32.totalorder %s513, %s515
      %p519 = scmp.eq.s32.totalorder %s33, 0
      %p520 = por %p518, %p519
      %p521 = scmp.ne.s32.totalorder %s513, %s515
      %p522 = scmp.eq.s32.totalorder %s38, 1
      %p523 = por %p521, %p522
      %p524 = scmp.ne.s32.totalorder %s515, %s516
      %p525 = scmp.eq.s32.totalorder %s38, 0
      %p526 = por %p524, %p525
      %p527 = scmp.ne.s32.totalorder %s515, %s516
      %p528 = scmp.eq.s32.totalorder %s39, 1
      %p529 = por %p527, %p528
      %p531 = scmp.ne.s32.totalorder %s516, %s530
      %p532 = scmp.eq.s32.totalorder %s39, 0
      %p533 = por %p531, %p532
      %s535 = sadd.s32 %s534, 1
      %p538 = scmp.eq.s32.totalorder %s33, 1
      %p539 = scmp.ne.s32.totalorder %s534, %s536
      %p540 = scmp.eq.s32.totalorder %s33, 0
      %p541 = por %p539, %p540
      %p542 = scmp.ne.s32.totalorder %s534, %s536
      %p543 = scmp.eq.s32.totalorder %s38, 1
      %p544 = por %p542, %p543
      %p545 = scmp.ne.s32.totalorder %s536, %s537
      %p546 = scmp.eq.s32.totalorder %s38, 0
      %p547 = por %p545, %p546
      %p548 = scmp.ne.s32.totalorder %s536, %s537
      %p549 = scmp.eq.s32.totalorder %s39, 1
      %p550 = por %p548, %p549
      %p552 = scmp.ne.s32.totalorder %s537, %s551
      %p553 = scmp.eq.s32.totalorder %s39, 0
      %p554 = por %p552, %p553
      %s555 = ssub.s32 %s33, %s40
      %p556 = scmp.eq.s32.totalorder %s555, 0
      %s558 = sadd.s32 %s557, 1
      %s559 = scalar_select %p556, %s557, %s558
      %p562 = pneg %p556
      %p563 = scmp.eq.s32.totalorder %s33, 1
      %p564 = por %p562, %p563
      %p565 = scmp.ne.s32.totalorder %s557, %s560
      %p566 = scmp.eq.s32.totalorder %s33, 0
      %p567 = por %p565, %p566
      %p568 = scmp.ne.s32.totalorder %s557, %s560
      %p569 = scmp.eq.s32.totalorder %s38, 1
      %p570 = por %p568, %p569
      %p571 = scmp.ne.s32.totalorder %s560, %s561
      %p572 = scmp.eq.s32.totalorder %s38, 0
      %p573 = por %p571, %p572
      %p574 = scmp.ne.s32.totalorder %s560, %s561
      %p575 = scmp.eq.s32.totalorder %s39, 1
      %p576 = por %p574, %p575
      %p578 = scmp.ne.s32.totalorder %s561, %s577
      %p579 = scmp.eq.s32.totalorder %s39, 0
      %p580 = por %p578, %p579
      %p581 = scmp.le.s32.totalorder 1, %s33
      %p582 = scmp.lt.s32.totalorder %s33, 3
      %p583 = pnand %p581, %p582
      %p584 = pneg %p583
      // Predicated region
      $region9: #{state_estimator_forward.1} parent=5 // pred_check
        _
      $region10: #{state_estimator_forward.1} parent=5 // pred_check_branch
        %586 = sbr.rel (%p583) target = $region12
      $region11: #{state_estimator_forward.1} parent=5 // pred_region
        %s587 = ssub.s32 %s33, 1
        // Predicated region
        $region13: #{state_estimator_forward.1} parent=11 // pred_check
          %p588 = pneg %p106
        $region14: #{state_estimator_forward.1} parent=11 // pred_check_branch
          %590 = sbr.rel (%p588) target = $region16
        $region15: #{state_estimator_forward.1} parent=11 // pred_region
          _
        $region16: #{state_estimator_forward.1} parent=11 // pred_fallthru
          _
        // Predicated region
        $region17: #{state_estimator_forward.1} parent=11 // pred_check
          %p591 = pneg %p127
        $region18: #{state_estimator_forward.1} parent=11 // pred_check_branch
          %593 = sbr.rel (%p591) target = $region20
        $region19: #{state_estimator_forward.1} parent=11 // pred_region
          _
        $region20: #{state_estimator_forward.1} parent=11 // pred_fallthru
          _
        // Predicated region
        $region21: #{state_estimator_forward.1} parent=11 // pred_check
          %p594 = pneg %p148
        $region22: #{state_estimator_forward.1} parent=11 // pred_check_branch
          %596 = sbr.rel (%p594) target = $region24
        $region23: #{state_estimator_forward.1} parent=11 // pred_region
          _
        $region24: #{state_estimator_forward.1} parent=11 // pred_fallthru
          _
        // Predicated region
        $region25: #{state_estimator_forward.1} parent=11 // pred_check
          %p597 = pneg %p169
        $region26: #{state_estimator_forward.1} parent=11 // pred_check_branch
          %599 = sbr.rel (%p597) target = $region28
        $region27: #{state_estimator_forward.1} parent=11 // pred_region
          _
        $region28: #{state_estimator_forward.1} parent=11 // pred_fallthru
          _
        // Predicated region
        $region29: #{state_estimator_forward.1} parent=11 // pred_check
          %p600 = pneg %p190
        $region30: #{state_estimator_forward.1} parent=11 // pred_check_branch
          %602 = sbr.rel (%p600) target = $region32
        $region31: #{state_estimator_forward.1} parent=11 // pred_region
          _
        $region32: #{state_estimator_forward.1} parent=11 // pred_fallthru
          _
        // Predicated region
        $region33: #{state_estimator_forward.1} parent=11 // pred_check
          %p603 = pneg %p211
        $region34: #{state_estimator_forward.1} parent=11 // pred_check_branch
          %605 = sbr.rel (%p603) target = $region36
        $region35: #{state_estimator_forward.1} parent=11 // pred_region
          _
        $region36: #{state_estimator_forward.1} parent=11 // pred_fallthru
          _
        // Predicated region
        $region37: #{state_estimator_forward.1} parent=11 // pred_check
          %p606 = pneg %p232
        $region38: #{state_estimator_forward.1} parent=11 // pred_check_branch
          %608 = sbr.rel (%p606) target = $region40
        $region39: #{state_estimator_forward.1} parent=11 // pred_region
          _
        $region40: #{state_estimator_forward.1} parent=11 // pred_fallthru
          _
        // Predicated region
        $region41: #{state_estimator_forward.1} parent=11 // pred_check
          %p609 = pneg %p253
        $region42: #{state_estimator_forward.1} parent=11 // pred_check_branch
          %611 = sbr.rel (%p609) target = $region44
        $region43: #{state_estimator_forward.1} parent=11 // pred_region
          _
        $region44: #{state_estimator_forward.1} parent=11 // pred_fallthru
          _
        // Predicated region
        $region45: #{state_estimator_forward.1} parent=11 // pred_check
          %p612 = pneg %p274
        $region46: #{state_estimator_forward.1} parent=11 // pred_check_branch
          %614 = sbr.rel (%p612) target = $region48
        $region47: #{state_estimator_forward.1} parent=11 // pred_region
          _
        $region48: #{state_estimator_forward.1} parent=11 // pred_fallthru
          _
        // Predicated region
        $region49: #{state_estimator_forward.1} parent=11 // pred_check
          %p615 = pneg %p295
        $region50: #{state_estimator_forward.1} parent=11 // pred_check_branch
          %617 = sbr.rel (%p615) target = $region52
        $region51: #{state_estimator_forward.1} parent=11 // pred_region
          _
        $region52: #{state_estimator_forward.1} parent=11 // pred_fallthru
          _
        // Predicated region
        $region53: #{state_estimator_forward.1} parent=11 // pred_check
          %p618 = pneg %p316
        $region54: #{state_estimator_forward.1} parent=11 // pred_check_branch
          %620 = sbr.rel (%p618) target = $region56
        $region55: #{state_estimator_forward.1} parent=11 // pred_region
          _
        $region56: #{state_estimator_forward.1} parent=11 // pred_fallthru
          _
        // Predicated region
        $region57: #{state_estimator_forward.1} parent=11 // pred_check
          %p621 = pneg %p337
        $region58: #{state_estimator_forward.1} parent=11 // pred_check_branch
          %623 = sbr.rel (%p621) target = $region60
        $region59: #{state_estimator_forward.1} parent=11 // pred_region
          _
        $region60: #{state_estimator_forward.1} parent=11 // pred_fallthru
          _
        // Predicated region
        $region61: #{state_estimator_forward.1} parent=11 // pred_check
          %p624 = pneg %p358
        $region62: #{state_estimator_forward.1} parent=11 // pred_check_branch
          %626 = sbr.rel (%p624) target = $region64
        $region63: #{state_estimator_forward.1} parent=11 // pred_region
          _
        $region64: #{state_estimator_forward.1} parent=11 // pred_fallthru
          _
        // Predicated region
        $region65: #{state_estimator_forward.1} parent=11 // pred_check
          %p627 = pneg %p379
        $region66: #{state_estimator_forward.1} parent=11 // pred_check_branch
          %629 = sbr.rel (%p627) target = $region68
        $region67: #{state_estimator_forward.1} parent=11 // pred_region
          _
        $region68: #{state_estimator_forward.1} parent=11 // pred_fallthru
          _
        // Predicated region
        $region69: #{state_estimator_forward.1} parent=11 // pred_check
          %p630 = pneg %p400
        $region70: #{state_estimator_forward.1} parent=11 // pred_check_branch
          %632 = sbr.rel (%p630) target = $region72
        $region71: #{state_estimator_forward.1} parent=11 // pred_region
          _
        $region72: #{state_estimator_forward.1} parent=11 // pred_fallthru
          _
        // Predicated region
        $region73: #{state_estimator_forward.1} parent=11 // pred_check
          %p633 = pneg %p421
        $region74: #{state_estimator_forward.1} parent=11 // pred_check_branch
          %635 = sbr.rel (%p633) target = $region76
        $region75: #{state_estimator_forward.1} parent=11 // pred_region
          _
        $region76: #{state_estimator_forward.1} parent=11 // pred_fallthru
          _
        // Predicated region
        $region77: #{state_estimator_forward.1} parent=11 // pred_check
          %p636 = pneg %p442
        $region78: #{state_estimator_forward.1} parent=11 // pred_check_branch
          %638 = sbr.rel (%p636) target = $region80
        $region79: #{state_estimator_forward.1} parent=11 // pred_region
          _
        $region80: #{state_estimator_forward.1} parent=11 // pred_fallthru
          _
        // Predicated region
        $region81: #{state_estimator_forward.1} parent=11 // pred_check
          %p639 = pneg %p463
        $region82: #{state_estimator_forward.1} parent=11 // pred_check_branch
          %641 = sbr.rel (%p639) target = $region84
        $region83: #{state_estimator_forward.1} parent=11 // pred_region
          _
        $region84: #{state_estimator_forward.1} parent=11 // pred_fallthru
          _
        // Predicated region
        $region85: #{state_estimator_forward.1} parent=11 // pred_check
          %p642 = pneg %p484
        $region86: #{state_estimator_forward.1} parent=11 // pred_check_branch
          %644 = sbr.rel (%p642) target = $region88
        $region87: #{state_estimator_forward.1} parent=11 // pred_region
          _
        $region88: #{state_estimator_forward.1} parent=11 // pred_fallthru
          _
        // Predicated region
        $region89: #{state_estimator_forward.1} parent=11 // pred_check
          %p645 = pneg %p505
        $region90: #{state_estimator_forward.1} parent=11 // pred_check_branch
          %647 = sbr.rel (%p645) target = $region92
        $region91: #{state_estimator_forward.1} parent=11 // pred_region
          _
        $region92: #{state_estimator_forward.1} parent=11 // pred_fallthru
          _
        // Predicated region
        $region93: #{state_estimator_forward.1} parent=11 // pred_check
          %p648 = pneg %p526
        $region94: #{state_estimator_forward.1} parent=11 // pred_check_branch
          %650 = sbr.rel (%p648) target = $region96
        $region95: #{state_estimator_forward.1} parent=11 // pred_region
          _
        $region96: #{state_estimator_forward.1} parent=11 // pred_fallthru
          _
        // Predicated region
        $region97: #{state_estimator_forward.1} parent=11 // pred_check
          %p651 = pneg %p547
        $region98: #{state_estimator_forward.1} parent=11 // pred_check_branch
          %653 = sbr.rel (%p651) target = $region100
        $region99: #{state_estimator_forward.1} parent=11 // pred_region
          _
        $region100: #{state_estimator_forward.1} parent=11 // pred_fallthru
          _
      $region12: #{state_estimator_forward.1} parent=5 // pred_fallthru
        _
      %p654 = scmp.lt.s32.totalorder %s33, 2
      // Predicated region
      $region101: #{state_estimator_forward.1} parent=5 // pred_check
        %p655 = pneg %p654
      $region102: #{state_estimator_forward.1} parent=5 // pred_check_branch
        %657 = sbr.rel (%p655) target = $region104
      $region103: #{state_estimator_forward.1} parent=5 // pred_region
        // Predicated region
        $region105: #{state_estimator_forward.1} parent=103 // pred_check
          %p658 = pneg %p53
        $region106: #{state_estimator_forward.1} parent=103 // pred_check_branch
          %660 = sbr.rel (%p658) target = $region108
        $region107: #{state_estimator_forward.1} parent=103 // pred_region
          %p661 = scmp.lt.s32.totalorder %s33, 1
          %s662 = scalar_select %p661, %s33, 1
          %s663 = smul.addr %s662, 24
          %s664 = smul.addr %s663, 2
          %s665 = scalar_lea.vmem %s0, %s664
        $region108: #{state_estimator_forward.1} parent=103 // pred_fallthru
          _
        // Predicated region
        $region109: #{state_estimator_forward.1} parent=103 // pred_check
          %p666 = pneg %p79
        $region110: #{state_estimator_forward.1} parent=103 // pred_check_branch
          %668 = sbr.rel (%p666) target = $region112
        $region111: #{state_estimator_forward.1} parent=103 // pred_region
          %p669 = scmp.lt.s32.totalorder %s33, 1
          %s670 = scalar_select %p669, %s33, 1
          %s671 = scalar_lea.vmem %s1, %s670
        $region112: #{state_estimator_forward.1} parent=103 // pred_fallthru
          _
      $region104: #{state_estimator_forward.1} parent=5 // pred_fallthru
        _
      %p672 = scmp.le.s32.totalorder 1, %s33
      %p673 = scmp.lt.s32.totalorder %s33, 3
      %p674 = pnand %p672, %p673
      %p675 = pneg %p674
      // Predicated region
      $region113: #{state_estimator_forward.1} parent=5 // pred_check
        _
      $region114: #{state_estimator_forward.1} parent=5 // pred_check_branch
        %677 = sbr.rel (%p674) target = $region116
      $region115: #{state_estimator_forward.1} parent=5 // pred_region
        %s678 = ssub.s32 %s33, 1
        %p679 = scmp.lt.s32.totalorder %s38, 1
        %s680 = scalar_select %p679, %s38, 1
        %s681 = smul.addr %s680, 24
        %s682 = smul.addr %s681, 2
        %s683 = scalar_lea.vmem %s0, %s682
        %p684 = pneg %p59
        %p685 = pneg %p56
        %p686 = scmp.lt.s32.totalorder %s38, 1
        %s687 = scalar_select %p686, %s38, 1
        %s688 = scalar_lea.vmem %s1, %s687
        %p689 = pneg %p85
        %p690 = pneg %p82
        %p691 = pneg %p106
        %p692 = pneg %p103
        %p693 = pneg %p127
        %p694 = pneg %p124
        %p695 = pneg %p148
        %p696 = pneg %p145
        %p697 = pneg %p169
        %p698 = pneg %p166
        %p699 = pneg %p190
        %p700 = pneg %p187
        %p701 = pneg %p211
        %p702 = pneg %p208
        %p703 = pneg %p232
        %p704 = pneg %p229
        %p705 = pneg %p253
        %p706 = pneg %p250
        %p707 = pneg %p274
        %p708 = pneg %p271
        %p709 = pneg %p295
        %p710 = pneg %p292
        %p711 = pneg %p316
        %p712 = pneg %p313
        %p713 = pneg %p337
        %p714 = pneg %p334
        %p715 = pneg %p358
        %p716 = pneg %p355
        %p717 = pneg %p379
        %p718 = pneg %p376
        %p719 = pneg %p400
        %p720 = pneg %p397
        %p721 = pneg %p421
        %p722 = pneg %p418
        %p723 = pneg %p442
        %p724 = pneg %p439
        %p725 = pneg %p463
        %p726 = pneg %p460
        %p727 = pneg %p484
        %p728 = pneg %p481
        %p729 = pneg %p505
        %p730 = pneg %p502
        %p731 = pneg %p526
        %p732 = pneg %p523
        %p733 = pneg %p547
        %p734 = pneg %p544
        %p735 = pneg %p573
        %p736 = pneg %p570
        %s737 = sand.u32 %s560, 1
        %s738 = scalar_lea.sflag [#allocation3], %s737
        %s739 = sand.u32 %s560, 1
        %s740 = scalar_lea.vmem [#allocation2], %s739
        %p741 = scmp.lt.s32.totalorder %s38, 1
        %s742 = scalar_select %p741, %s38, 1
        %s743 = smul.addr %s742, 24
        %s744 = smul.addr %s743, 2
        %s745 = scalar_lea.vmem %s0, %s744
        %p746 = scmp.lt.s32.totalorder %s38, 1
        %s747 = scalar_select %p746, %s38, 1
        %s748 = scalar_lea.vmem %s1, %s747
        %v750 = vld [vmem:[%s745] sm:$0xff]
        %v751 = vld [vmem:[%s745 + $0x8] sm:$0xff]
        %v752 = vld [vmem:[%s745 + $0x10] sm:$0xff]
        %v753 = vld [vmem:[%s745 + $0x18] sm:$0xff]
        %v754 = vld [vmem:[%s745 + $0x20] sm:$0xff]
        %v755 = vld [vmem:[%s745 + $0x28] sm:$0xff]
        %v756 = vld [vmem:[%s2] sm:$0xf]
        %v757 = vld [vmem:[%s2 + $0x4] sm:$0xf]
        %v758 = vld [vmem:[%s2 + $0x8] sm:$0xf]
        %v759 = vld [vmem:[%s2 + $0xc] sm:$0xf]
        %v760 = vld [vmem:[%s2 + $0x10] sm:$0xf]
        %v761 = vld [vmem:[%s2 + $0x14] sm:$0xf]
        %v762 = vld [vmem:[%s2 + $0x18] sm:$0xf]
        %v763 = vld [vmem:[%s2 + $0x1c] sm:$0xf]
        %v764 = vld [vmem:[%s2 + $0x20] sm:$0xf]
        %v765 = vld [vmem:[%s2 + $0x24] sm:$0xf]
        %v766 = vld [vmem:[%s2 + $0x28] sm:$0xf]
        %v767 = vld [vmem:[%s2 + $0x2c] sm:$0xf]
        %v768 = vld [vmem:[%s2 + $0x30] sm:$0xf]
        %v769 = vld [vmem:[%s2 + $0x34] sm:$0xf]
        %v770 = vld [vmem:[%s2 + $0x38] sm:$0xf]
        %v771 = vld [vmem:[%s2 + $0x3c] sm:$0xf]
        %v772 = vld [vmem:[%s2 + $0x40] sm:$0xf]
        %v773 = vld [vmem:[%s2 + $0x44] sm:$0xf]
        %v774 = vld [vmem:[%s2 + $0x48] sm:$0xf]
        %v775 = vld [vmem:[%s2 + $0x4c] sm:$0xf]
        %v776 = vld [vmem:[%s2 + $0x50] sm:$0xf]
        %v777 = vld [vmem:[%s2 + $0x54] sm:$0xf]
        %v778 = vld [vmem:[%s2 + $0x58] sm:$0xf]
        %v779 = vld [vmem:[%s2 + $0x5c] sm:$0xf]
        %v780 = vld [vmem:[%s2 + $0x60] sm:$0xf]
        %v781 = vld [vmem:[%s2 + $0x64] sm:$0xf]
        %v782 = vld [vmem:[%s2 + $0x68] sm:$0xf]
        %v783 = vld [vmem:[%s2 + $0x6c] sm:$0xf]
        %v784 = vld [vmem:[%s2 + $0x70] sm:$0xf]
        %v785 = vld [vmem:[%s2 + $0x74] sm:$0xf]
        %v786 = vld [vmem:[%s2 + $0x78] sm:$0xf]
        %v787 = vld [vmem:[%s2 + $0x7c] sm:$0xf]
        %v788 = vld [vmem:[%s2 + $0x80] sm:$0xf]
        %v789 = vld [vmem:[%s2 + $0x84] sm:$0xf]
        %v790 = vld [vmem:[%s2 + $0x88] sm:$0xf]
        %v791 = vld [vmem:[%s2 + $0x8c] sm:$0xf]
        %v792 = vld [vmem:[%s2 + $0x90] sm:$0xf]
        %v793 = vld [vmem:[%s2 + $0x94] sm:$0xf]
        %v794 = vld [vmem:[%s2 + $0x98] sm:$0xf]
        %v795 = vld [vmem:[%s2 + $0x9c] sm:$0xf]
        %v796 = vld [vmem:[%s2 + $0xa0] sm:$0xf]
        %v797 = vld [vmem:[%s2 + $0xa4] sm:$0xf]
        %v798 = vld [vmem:[%s2 + $0xa8] sm:$0xf]
        %v799 = vld [vmem:[%s2 + $0xac] sm:$0xf]
        %v800 = vld [vmem:[%s2 + $0xb0] sm:$0xf]
        %v801 = vld [vmem:[%s2 + $0xb4] sm:$0xf]
        %v802 = vld [vmem:[%s2 + $0xb8] sm:$0xf]
        %v803 = vld [vmem:[%s2 + $0xbc] sm:$0xf]
        %v804 = vld [vmem:[%s2 + $0xc0] sm:$0xf]
        %v805 = vld [vmem:[%s2 + $0xc4] sm:$0xf]
        %v806 = vld [vmem:[%s2 + $0xc8] sm:$0xf]
        %v807 = vld [vmem:[%s2 + $0xcc] sm:$0xf]
        %v808 = vld [vmem:[%s2 + $0xd0] sm:$0xf]
        %v809 = vld [vmem:[%s2 + $0xd4] sm:$0xf]
        %v810 = vld [vmem:[%s2 + $0xd8] sm:$0xf]
        %v811 = vld [vmem:[%s2 + $0xdc] sm:$0xf]
        %v812 = vld [vmem:[%s2 + $0xe0] sm:$0xf]
        %v813 = vld [vmem:[%s2 + $0xe4] sm:$0xf]
        %v814 = vld [vmem:[%s2 + $0xe8] sm:$0xf]
        %v815 = vld [vmem:[%s2 + $0xec] sm:$0xf]
        %v816 = vld [vmem:[%s2 + $0xf0] sm:$0xf]
        %v817 = vld [vmem:[%s2 + $0xf4] sm:$0xf]
        %v818 = vld [vmem:[%s2 + $0xf8] sm:$0xf]
        %v819 = vld [vmem:[%s2 + $0xfc] sm:$0xf]
        %v820 = vld [vmem:[%s2 + $0x100] sm:$0xf]
        %v821 = vld [vmem:[%s2 + $0x104] sm:$0xf]
        %v822 = vld [vmem:[%s2 + $0x108] sm:$0xf]
        %v823 = vld [vmem:[%s2 + $0x10c] sm:$0xf]
        %v824 = vld [vmem:[%s2 + $0x110] sm:$0xf]
        %v825 = vld [vmem:[%s2 + $0x114] sm:$0xf]
        %v826 = vld [vmem:[%s2 + $0x118] sm:$0xf]
        %v827 = vld [vmem:[%s2 + $0x11c] sm:$0xf]
        %v828 = vld [vmem:[%s2 + $0x120] sm:$0xf]
        %v829 = vld [vmem:[%s2 + $0x124] sm:$0xf]
        %v830 = vld [vmem:[%s2 + $0x128] sm:$0xf]
        %v831 = vld [vmem:[%s2 + $0x12c] sm:$0xf]
        %v832 = vld [vmem:[%s2 + $0x130] sm:$0xf]
        %v833 = vld [vmem:[%s2 + $0x134] sm:$0xf]
        %v834 = vld [vmem:[%s2 + $0x138] sm:$0xf]
        %v835 = vld [vmem:[%s2 + $0x13c] sm:$0xf]
        %v836 = vld [vmem:[%s2 + $0x140] sm:$0xf]
        %v837 = vld [vmem:[%s2 + $0x144] sm:$0xf]
        %v838 = vld [vmem:[%s2 + $0x148] sm:$0xf]
        %v839 = vld [vmem:[%s2 + $0x14c] sm:$0xf]
        %v840 = vld [vmem:[%s2 + $0x150] sm:$0xf]
        %v841 = vld [vmem:[%s2 + $0x154] sm:$0xf]
        %v842 = vld [vmem:[%s2 + $0x158] sm:$0xf]
        %v843 = vld [vmem:[%s2 + $0x15c] sm:$0xf]
        %v844 = vld [vmem:[%s2 + $0x160] sm:$0xf]
        %v845 = vld [vmem:[%s2 + $0x164] sm:$0xf]
        %v846 = vld [vmem:[%s2 + $0x168] sm:$0xf]
        %v847 = vld [vmem:[%s2 + $0x16c] sm:$0xf]
        %v848 = vld [vmem:[%s2 + $0x170] sm:$0xf]
        %v849 = vld [vmem:[%s2 + $0x174] sm:$0xf]
        %v850 = vld [vmem:[%s2 + $0x178] sm:$0xf]
        %v851 = vld [vmem:[%s2 + $0x17c] sm:$0xf]
        %v852 = vld [vmem:[%s2 + $0x180] sm:$0xf]
        %v853 = vld [vmem:[%s2 + $0x184] sm:$0xf]
        %v854 = vld [vmem:[%s2 + $0x188] sm:$0xf]
        %v855 = vld [vmem:[%s2 + $0x18c] sm:$0xf]
        %v856 = vld [vmem:[%s2 + $0x190] sm:$0xf]
        %v857 = vld [vmem:[%s2 + $0x194] sm:$0xf]
        %v858 = vld [vmem:[%s2 + $0x198] sm:$0xf]
        %v859 = vld [vmem:[%s2 + $0x19c] sm:$0xf]
        %v860 = vld [vmem:[%s2 + $0x1a0] sm:$0xf]
        %v861 = vld [vmem:[%s2 + $0x1a4] sm:$0xf]
        %v862 = vld [vmem:[%s2 + $0x1a8] sm:$0xf]
        %v863 = vld [vmem:[%s2 + $0x1ac] sm:$0xf]
        %v864 = vld [vmem:[%s2 + $0x1b0] sm:$0xf]
        %v865 = vld [vmem:[%s2 + $0x1b4] sm:$0xf]
        %v866 = vld [vmem:[%s2 + $0x1b8] sm:$0xf]
        %v867 = vld [vmem:[%s2 + $0x1bc] sm:$0xf]
        %v868 = vld [vmem:[%s2 + $0x1c0] sm:$0xf]
        %v869 = vld [vmem:[%s2 + $0x1c4] sm:$0xf]
        %v870 = vld [vmem:[%s2 + $0x1c8] sm:$0xf]
        %v871 = vld [vmem:[%s2 + $0x1cc] sm:$0xf]
        %v872 = vld [vmem:[%s2 + $0x1d0] sm:$0xf]
        %v873 = vld [vmem:[%s2 + $0x1d4] sm:$0xf]
        %v874 = vld [vmem:[%s2 + $0x1d8] sm:$0xf]
        %v875 = vld [vmem:[%s2 + $0x1dc] sm:$0xf]
        %v876 = vld [vmem:[%s2 + $0x1e0] sm:$0xf]
        %v877 = vld [vmem:[%s2 + $0x1e4] sm:$0xf]
        %v878 = vld [vmem:[%s2 + $0x1e8] sm:$0xf]
        %v879 = vld [vmem:[%s2 + $0x1ec] sm:$0xf]
        %v880 = vld [vmem:[%s2 + $0x1f0] sm:$0xf]
        %v881 = vld [vmem:[%s2 + $0x1f4] sm:$0xf]
        %v882 = vld [vmem:[%s2 + $0x1f8] sm:$0xf]
        %v883 = vld [vmem:[%s2 + $0x1fc] sm:$0xf]
        %v884 = vld [vmem:[%s2 + $0x200] sm:$0xf]
        %v885 = vld [vmem:[%s2 + $0x204] sm:$0xf]
        %v886 = vld [vmem:[%s2 + $0x208] sm:$0xf]
        %v887 = vld [vmem:[%s2 + $0x20c] sm:$0xf]
        %v888 = vld [vmem:[%s2 + $0x210] sm:$0xf]
        %v889 = vld [vmem:[%s2 + $0x214] sm:$0xf]
        %v890 = vld [vmem:[%s2 + $0x218] sm:$0xf]
        %v891 = vld [vmem:[%s2 + $0x21c] sm:$0xf]
        %v892 = vld [vmem:[%s2 + $0x220] sm:$0xf]
        %v893 = vld [vmem:[%s2 + $0x224] sm:$0xf]
        %v894 = vld [vmem:[%s2 + $0x228] sm:$0xf]
        %v895 = vld [vmem:[%s2 + $0x22c] sm:$0xf]
        %v896 = vld [vmem:[%s2 + $0x230] sm:$0xf]
        %v897 = vld [vmem:[%s2 + $0x234] sm:$0xf]
        %v898 = vld [vmem:[%s2 + $0x238] sm:$0xf]
        %v899 = vld [vmem:[%s2 + $0x23c] sm:$0xf]
        %v900 = vld [vmem:[%s2 + $0x240] sm:$0xf]
        %v901 = vld [vmem:[%s2 + $0x244] sm:$0xf]
        %v902 = vld [vmem:[%s2 + $0x248] sm:$0xf]
        %v903 = vld [vmem:[%s2 + $0x24c] sm:$0xf]
        %v904 = vld [vmem:[%s2 + $0x250] sm:$0xf]
        %v905 = vld [vmem:[%s2 + $0x254] sm:$0xf]
        %v906 = vld [vmem:[%s2 + $0x258] sm:$0xf]
        %v907 = vld [vmem:[%s2 + $0x25c] sm:$0xf]
        %v908 = vld [vmem:[%s2 + $0x260] sm:$0xf]
        %v909 = vld [vmem:[%s2 + $0x264] sm:$0xf]
        %v910 = vld [vmem:[%s2 + $0x268] sm:$0xf]
        %v911 = vld [vmem:[%s2 + $0x26c] sm:$0xf]
        %v912 = vld [vmem:[%s2 + $0x270] sm:$0xf]
        %v913 = vld [vmem:[%s2 + $0x274] sm:$0xf]
        %v914 = vld [vmem:[%s2 + $0x278] sm:$0xf]
        %v915 = vld [vmem:[%s2 + $0x27c] sm:$0xf]
        %v916 = vld [vmem:[%s2 + $0x280] sm:$0xf]
        %v917 = vld [vmem:[%s2 + $0x284] sm:$0xf]
        %v918 = vld [vmem:[%s2 + $0x288] sm:$0xf]
        %v919 = vld [vmem:[%s2 + $0x28c] sm:$0xf]
        %v920 = vld [vmem:[%s2 + $0x290] sm:$0xf]
        %v921 = vld [vmem:[%s2 + $0x294] sm:$0xf]
        %v922 = vld [vmem:[%s2 + $0x298] sm:$0xf]
        %v923 = vld [vmem:[%s2 + $0x29c] sm:$0xf]
        %v924 = vld [vmem:[%s2 + $0x2a0] sm:$0xf]
        %v925 = vld [vmem:[%s2 + $0x2a4] sm:$0xf]
        %v926 = vld [vmem:[%s2 + $0x2a8] sm:$0xf]
        %v927 = vld [vmem:[%s2 + $0x2ac] sm:$0xf]
        %v928 = vld [vmem:[%s2 + $0x2b0] sm:$0xf]
        %v929 = vld [vmem:[%s2 + $0x2b4] sm:$0xf]
        %v930 = vld [vmem:[%s2 + $0x2b8] sm:$0xf]
        %v931 = vld [vmem:[%s2 + $0x2bc] sm:$0xf]
        %v932 = vld [vmem:[%s2 + $0x2c0] sm:$0xf]
        %v933 = vld [vmem:[%s2 + $0x2c4] sm:$0xf]
        %v934 = vld [vmem:[%s2 + $0x2c8] sm:$0xf]
        %v935 = vld [vmem:[%s2 + $0x2cc] sm:$0xf]
        %v936 = vld [vmem:[%s2 + $0x2d0] sm:$0xf]
        %v937 = vld [vmem:[%s2 + $0x2d4] sm:$0xf]
        %v938 = vld [vmem:[%s2 + $0x2d8] sm:$0xf]
        %v939 = vld [vmem:[%s2 + $0x2dc] sm:$0xf]
        %v940 = vld [vmem:[%s2 + $0x2e0] sm:$0xf]
        %v941 = vld [vmem:[%s2 + $0x2e4] sm:$0xf]
        %v942 = vld [vmem:[%s2 + $0x2e8] sm:$0xf]
        %v943 = vld [vmem:[%s2 + $0x2ec] sm:$0xf]
        %v944 = vld [vmem:[%s2 + $0x2f0] sm:$0xf]
        %v945 = vld [vmem:[%s2 + $0x2f4] sm:$0xf]
        %v946 = vld [vmem:[%s2 + $0x2f8] sm:$0xf]
        %v947 = vld [vmem:[%s2 + $0x2fc] sm:$0xf]
        %v948 = vld [vmem:[%s2 + $0x300] sm:$0xf]
        %v949 = vld [vmem:[%s2 + $0x304] sm:$0xf]
        %v950 = vld [vmem:[%s2 + $0x308] sm:$0xf]
        %v951 = vld [vmem:[%s2 + $0x30c] sm:$0xf]
        %v952 = vld [vmem:[%s2 + $0x310] sm:$0xf]
        %v953 = vld [vmem:[%s2 + $0x314] sm:$0xf]
        %v954 = vld [vmem:[%s2 + $0x318] sm:$0xf]
        %v955 = vld [vmem:[%s2 + $0x31c] sm:$0xf]
        %v956 = vld [vmem:[%s2 + $0x320] sm:$0xf]
        %v957 = vld [vmem:[%s2 + $0x324] sm:$0xf]
        %v958 = vld [vmem:[%s2 + $0x328] sm:$0xf]
        %v959 = vld [vmem:[%s2 + $0x32c] sm:$0xf]
        %v960 = vld [vmem:[%s2 + $0x330] sm:$0xf]
        %v961 = vld [vmem:[%s2 + $0x334] sm:$0xf]
        %v962 = vld [vmem:[%s2 + $0x338] sm:$0xf]
        %v963 = vld [vmem:[%s2 + $0x33c] sm:$0xf]
        %v964 = vld [vmem:[%s2 + $0x340] sm:$0xf]
        %v965 = vld [vmem:[%s2 + $0x344] sm:$0xf]
        %v966 = vld [vmem:[%s2 + $0x348] sm:$0xf]
        %v967 = vld [vmem:[%s2 + $0x34c] sm:$0xf]
        %v968 = vld [vmem:[%s2 + $0x350] sm:$0xf]
        %v969 = vld [vmem:[%s2 + $0x354] sm:$0xf]
        %v970 = vld [vmem:[%s2 + $0x358] sm:$0xf]
        %v971 = vld [vmem:[%s2 + $0x35c] sm:$0xf]
        %v972 = vld [vmem:[%s2 + $0x360] sm:$0xf]
        %v973 = vld [vmem:[%s2 + $0x364] sm:$0xf]
        %v974 = vld [vmem:[%s2 + $0x368] sm:$0xf]
        %v975 = vld [vmem:[%s2 + $0x36c] sm:$0xf]
        %v976 = vld [vmem:[%s2 + $0x370] sm:$0xf]
        %v977 = vld [vmem:[%s2 + $0x374] sm:$0xf]
        %v978 = vld [vmem:[%s2 + $0x378] sm:$0xf]
        %v979 = vld [vmem:[%s2 + $0x37c] sm:$0xf]
        %v980 = vld [vmem:[%s2 + $0x380] sm:$0xf]
        %v981 = vld [vmem:[%s2 + $0x384] sm:$0xf]
        %v982 = vld [vmem:[%s2 + $0x388] sm:$0xf]
        %v983 = vld [vmem:[%s2 + $0x38c] sm:$0xf]
        %v984 = vld [vmem:[%s2 + $0x390] sm:$0xf]
        %v985 = vld [vmem:[%s2 + $0x394] sm:$0xf]
        %v986 = vld [vmem:[%s2 + $0x398] sm:$0xf]
        %v987 = vld [vmem:[%s2 + $0x39c] sm:$0xf]
        %v988 = vld [vmem:[%s2 + $0x3a0] sm:$0xf]
        %v989 = vld [vmem:[%s2 + $0x3a4] sm:$0xf]
        %v990 = vld [vmem:[%s2 + $0x3a8] sm:$0xf]
        %v991 = vld [vmem:[%s2 + $0x3ac] sm:$0xf]
        %v992 = vld [vmem:[%s2 + $0x3b0] sm:$0xf]
        %v993 = vld [vmem:[%s2 + $0x3b4] sm:$0xf]
        %v994 = vld [vmem:[%s2 + $0x3b8] sm:$0xf]
        %v995 = vld [vmem:[%s2 + $0x3bc] sm:$0xf]
        %v996 = vld [vmem:[%s2 + $0x3c0] sm:$0xf]
        %v997 = vld [vmem:[%s2 + $0x3c4] sm:$0xf]
        %v998 = vld [vmem:[%s2 + $0x3c8] sm:$0xf]
        %v999 = vld [vmem:[%s2 + $0x3cc] sm:$0xf]
        %v1000 = vld [vmem:[%s2 + $0x3d0] sm:$0xf]
        %v1001 = vld [vmem:[%s2 + $0x3d4] sm:$0xf]
        %v1002 = vld [vmem:[%s2 + $0x3d8] sm:$0xf]
        %v1003 = vld [vmem:[%s2 + $0x3dc] sm:$0xf]
        %v1004 = vld [vmem:[%s2 + $0x3e0] sm:$0xf]
        %v1005 = vld [vmem:[%s2 + $0x3e4] sm:$0xf]
        %v1006 = vld [vmem:[%s2 + $0x3e8] sm:$0xf]
        %v1007 = vld [vmem:[%s2 + $0x3ec] sm:$0xf]
        %v1008 = vld [vmem:[%s2 + $0x3f0] sm:$0xf]
        %v1009 = vld [vmem:[%s2 + $0x3f4] sm:$0xf]
        %v1010 = vld [vmem:[%s2 + $0x3f8] sm:$0xf]
        %v1011 = vld [vmem:[%s2 + $0x3fc] sm:$0xf]
        %v1012 = vld [vmem:[%s2 + $0x400] sm:$0xf]
        %v1013 = vld [vmem:[%s2 + $0x404] sm:$0xf]
        %v1014 = vld [vmem:[%s2 + $0x408] sm:$0xf]
        %v1015 = vld [vmem:[%s2 + $0x40c] sm:$0xf]
        %v1016 = vld [vmem:[%s2 + $0x410] sm:$0xf]
        %v1017 = vld [vmem:[%s2 + $0x414] sm:$0xf]
        %v1018 = vld [vmem:[%s2 + $0x418] sm:$0xf]
        %v1019 = vld [vmem:[%s2 + $0x41c] sm:$0xf]
        %v1020 = vld [vmem:[%s2 + $0x420] sm:$0xf]
        %v1021 = vld [vmem:[%s2 + $0x424] sm:$0xf]
        %v1022 = vld [vmem:[%s2 + $0x428] sm:$0xf]
        %v1023 = vld [vmem:[%s2 + $0x42c] sm:$0xf]
        %v1024 = vld [vmem:[%s2 + $0x430] sm:$0xf]
        %v1025 = vld [vmem:[%s2 + $0x434] sm:$0xf]
        %v1026 = vld [vmem:[%s2 + $0x438] sm:$0xf]
        %v1027 = vld [vmem:[%s2 + $0x43c] sm:$0xf]
        %v1028 = vld [vmem:[%s2 + $0x440] sm:$0xf]
        %v1029 = vld [vmem:[%s2 + $0x444] sm:$0xf]
        %v1030 = vld [vmem:[%s2 + $0x448] sm:$0xf]
        %v1031 = vld [vmem:[%s2 + $0x44c] sm:$0xf]
        %v1032 = vld [vmem:[%s2 + $0x450] sm:$0xf]
        %v1033 = vld [vmem:[%s2 + $0x454] sm:$0xf]
        %v1034 = vld [vmem:[%s2 + $0x458] sm:$0xf]
        %v1035 = vld [vmem:[%s2 + $0x45c] sm:$0xf]
        %v1036 = vld [vmem:[%s2 + $0x460] sm:$0xf]
        %v1037 = vld [vmem:[%s2 + $0x464] sm:$0xf]
        %v1038 = vld [vmem:[%s2 + $0x468] sm:$0xf]
        %v1039 = vld [vmem:[%s2 + $0x46c] sm:$0xf]
        %v1040 = vld [vmem:[%s2 + $0x470] sm:$0xf]
        %v1041 = vld [vmem:[%s2 + $0x474] sm:$0xf]
        %v1042 = vld [vmem:[%s2 + $0x478] sm:$0xf]
        %v1043 = vld [vmem:[%s2 + $0x47c] sm:$0xf]
        %v1044 = vld [vmem:[%s2 + $0x480] sm:$0xf]
        %v1045 = vld [vmem:[%s2 + $0x484] sm:$0xf]
        %v1046 = vld [vmem:[%s2 + $0x488] sm:$0xf]
        %v1047 = vld [vmem:[%s2 + $0x48c] sm:$0xf]
        %v1048 = vld [vmem:[%s2 + $0x490] sm:$0xf]
        %v1049 = vld [vmem:[%s2 + $0x494] sm:$0xf]
        %v1050 = vld [vmem:[%s2 + $0x498] sm:$0xf]
        %v1051 = vld [vmem:[%s2 + $0x49c] sm:$0xf]
        %v1052 = vld [vmem:[%s2 + $0x4a0] sm:$0xf]
        %v1053 = vld [vmem:[%s2 + $0x4a4] sm:$0xf]
        %v1054 = vld [vmem:[%s2 + $0x4a8] sm:$0xf]
        %v1055 = vld [vmem:[%s2 + $0x4ac] sm:$0xf]
        %v1056 = vld [vmem:[%s2 + $0x4b0] sm:$0xf]
        %v1057 = vld [vmem:[%s2 + $0x4b4] sm:$0xf]
        %v1058 = vld [vmem:[%s2 + $0x4b8] sm:$0xf]
        %v1059 = vld [vmem:[%s2 + $0x4bc] sm:$0xf]
        %v1060 = vld [vmem:[%s2 + $0x4c0] sm:$0xf]
        %v1061 = vld [vmem:[%s2 + $0x4c4] sm:$0xf]
        %v1062 = vld [vmem:[%s2 + $0x4c8] sm:$0xf]
        %v1063 = vld [vmem:[%s2 + $0x4cc] sm:$0xf]
        %v1064 = vld [vmem:[%s2 + $0x4d0] sm:$0xf]
        %v1065 = vld [vmem:[%s2 + $0x4d4] sm:$0xf]
        %v1066 = vld [vmem:[%s2 + $0x4d8] sm:$0xf]
        %v1067 = vld [vmem:[%s2 + $0x4dc] sm:$0xf]
        %v1068 = vld [vmem:[%s2 + $0x4e0] sm:$0xf]
        %v1069 = vld [vmem:[%s2 + $0x4e4] sm:$0xf]
        %v1070 = vld [vmem:[%s2 + $0x4e8] sm:$0xf]
        %v1071 = vld [vmem:[%s2 + $0x4ec] sm:$0xf]
        %v1072 = vld [vmem:[%s2 + $0x4f0] sm:$0xf]
        %v1073 = vld [vmem:[%s2 + $0x4f4] sm:$0xf]
        %v1074 = vld [vmem:[%s2 + $0x4f8] sm:$0xf]
        %v1075 = vld [vmem:[%s2 + $0x4fc] sm:$0xf]
        %v1076 = vld [vmem:[%s2 + $0x500] sm:$0xf]
        %v1077 = vld [vmem:[%s2 + $0x504] sm:$0xf]
        %v1078 = vld [vmem:[%s2 + $0x508] sm:$0xf]
        %v1079 = vld [vmem:[%s2 + $0x50c] sm:$0xf]
        %v1080 = vld [vmem:[%s2 + $0x510] sm:$0xf]
        %v1081 = vld [vmem:[%s2 + $0x514] sm:$0xf]
        %v1082 = vld [vmem:[%s2 + $0x518] sm:$0xf]
        %v1083 = vld [vmem:[%s2 + $0x51c] sm:$0xf]
        %v1084 = vld [vmem:[%s2 + $0x520] sm:$0xf]
        %v1085 = vld [vmem:[%s2 + $0x524] sm:$0xf]
        %v1086 = vld [vmem:[%s2 + $0x528] sm:$0xf]
        %v1087 = vld [vmem:[%s2 + $0x52c] sm:$0xf]
        %v1088 = vld [vmem:[%s2 + $0x530] sm:$0xf]
        %v1089 = vld [vmem:[%s2 + $0x534] sm:$0xf]
        %v1090 = vld [vmem:[%s2 + $0x538] sm:$0xf]
        %v1091 = vld [vmem:[%s2 + $0x53c] sm:$0xf]
        %v1092 = vld [vmem:[%s2 + $0x540] sm:$0xf]
        %v1093 = vld [vmem:[%s2 + $0x544] sm:$0xf]
        %v1094 = vld [vmem:[%s2 + $0x548] sm:$0xf]
        %v1095 = vld [vmem:[%s2 + $0x54c] sm:$0xf]
        %v1096 = vld [vmem:[%s2 + $0x550] sm:$0xf]
        %v1097 = vld [vmem:[%s2 + $0x554] sm:$0xf]
        %v1098 = vld [vmem:[%s2 + $0x558] sm:$0xf]
        %v1099 = vld [vmem:[%s2 + $0x55c] sm:$0xf]
        %v1100 = vld [vmem:[%s2 + $0x560] sm:$0xf]
        %v1101 = vld [vmem:[%s2 + $0x564] sm:$0xf]
        %v1102 = vld [vmem:[%s2 + $0x568] sm:$0xf]
        %v1103 = vld [vmem:[%s2 + $0x56c] sm:$0xf]
        %v1104 = vld [vmem:[%s2 + $0x570] sm:$0xf]
        %v1105 = vld [vmem:[%s2 + $0x574] sm:$0xf]
        %v1106 = vld [vmem:[%s2 + $0x578] sm:$0xf]
        %v1107 = vld [vmem:[%s2 + $0x57c] sm:$0xf]
        %v1108 = vld [vmem:[%s2 + $0x580] sm:$0xf]
        %v1109 = vld [vmem:[%s2 + $0x584] sm:$0xf]
        %v1110 = vld [vmem:[%s2 + $0x588] sm:$0xf]
        %v1111 = vld [vmem:[%s2 + $0x58c] sm:$0xf]
        %v1112 = vld [vmem:[%s2 + $0x590] sm:$0xf]
        %v1113 = vld [vmem:[%s2 + $0x594] sm:$0xf]
        %v1114 = vld [vmem:[%s2 + $0x598] sm:$0xf]
        %v1115 = vld [vmem:[%s2 + $0x59c] sm:$0xf]
        %v1116 = vld [vmem:[%s2 + $0x5a0] sm:$0xf]
        %v1117 = vld [vmem:[%s2 + $0x5a4] sm:$0xf]
        %v1118 = vld [vmem:[%s2 + $0x5a8] sm:$0xf]
        %v1119 = vld [vmem:[%s2 + $0x5ac] sm:$0xf]
        %v1120 = vld [vmem:[%s2 + $0x5b0] sm:$0xf]
        %v1121 = vld [vmem:[%s2 + $0x5b4] sm:$0xf]
        %v1122 = vld [vmem:[%s2 + $0x5b8] sm:$0xf]
        %v1123 = vld [vmem:[%s2 + $0x5bc] sm:$0xf]
        %v1124 = vld [vmem:[%s2 + $0x5c0] sm:$0xf]
        %v1125 = vld [vmem:[%s2 + $0x5c4] sm:$0xf]
        %v1126 = vld [vmem:[%s2 + $0x5c8] sm:$0xf]
        %v1127 = vld [vmem:[%s2 + $0x5cc] sm:$0xf]
        %v1128 = vld [vmem:[%s2 + $0x5d0] sm:$0xf]
        %v1129 = vld [vmem:[%s2 + $0x5d4] sm:$0xf]
        %v1130 = vld [vmem:[%s2 + $0x5d8] sm:$0xf]
        %v1131 = vld [vmem:[%s2 + $0x5dc] sm:$0xf]
        %v1132 = vld [vmem:[%s2 + $0x5e0] sm:$0xf]
        %v1133 = vld [vmem:[%s2 + $0x5e4] sm:$0xf]
        %v1134 = vld [vmem:[%s2 + $0x5e8] sm:$0xf]
        %v1135 = vld [vmem:[%s2 + $0x5ec] sm:$0xf]
        %v1136 = vld [vmem:[%s2 + $0x5f0] sm:$0xf]
        %v1137 = vld [vmem:[%s2 + $0x5f4] sm:$0xf]
        %v1138 = vld [vmem:[%s2 + $0x5f8] sm:$0xf]
        %v1139 = vld [vmem:[%s2 + $0x5fc] sm:$0xf]
        %1141 = vst [vmem:[#allocation1] ss:$4 sm:$0xff] %v750
        %s1143 = scalar_lea.vmem [#allocation1], 32
        %1144 = vst [vmem:[%s1143] ss:$4 sm:$0xff] %v751
        %v1145 = vld.sshfl [vmem:[#allocation1] sm:$0xff pattern:$0x73625140]
        %v1146 = vld.sshfl [vmem:[#allocation1 + $0x8] sm:$0xff pattern:$0x73625140]
        %v1147 = vld.sshfl [vmem:[#allocation1 + $0x10] sm:$0xff pattern:$0x73625140]
        %v1148 = vld.sshfl [vmem:[#allocation1 + $0x18] sm:$0xff pattern:$0x73625140]
        %v1149 = vld.sshfl [vmem:[#allocation1 + $0x20] sm:$0xff pattern:$0x73625140]
        %v1150 = vld.sshfl [vmem:[#allocation1 + $0x28] sm:$0xff pattern:$0x73625140]
        %v1151 = vld.sshfl [vmem:[#allocation1 + $0x30] sm:$0xff pattern:$0x73625140]
        %v1152 = vld.sshfl [vmem:[#allocation1 + $0x38] sm:$0xff pattern:$0x73625140]
        %1154 = vst [vmem:[#allocation1] ss:$4 sm:$0xff] %v752
        %1156 = vst [vmem:[%s1143] ss:$4 sm:$0xff] %v753
        %v1157 = vld.sshfl [vmem:[#allocation1] sm:$0xff pattern:$0x73625140]
        %v1158 = vld.sshfl [vmem:[#allocation1 + $0x8] sm:$0xff pattern:$0x73625140]
        %v1159 = vld.sshfl [vmem:[#allocation1 + $0x10] sm:$0xff pattern:$0x73625140]
        %v1160 = vld.sshfl [vmem:[#allocation1 + $0x18] sm:$0xff pattern:$0x73625140]
        %v1161 = vld.sshfl [vmem:[#allocation1 + $0x20] sm:$0xff pattern:$0x73625140]
        %v1162 = vld.sshfl [vmem:[#allocation1 + $0x28] sm:$0xff pattern:$0x73625140]
        %v1163 = vld.sshfl [vmem:[#allocation1 + $0x30] sm:$0xff pattern:$0x73625140]
        %v1164 = vld.sshfl [vmem:[#allocation1 + $0x38] sm:$0xff pattern:$0x73625140]
        %1166 = vst [vmem:[#allocation1] ss:$4 sm:$0xff] %v754
        %1168 = vst [vmem:[%s1143] ss:$4 sm:$0xff] %v755
        %v1169 = vld.sshfl [vmem:[#allocation1] sm:$0xff pattern:$0x73625140]
        %v1170 = vld.sshfl [vmem:[#allocation1 + $0x8] sm:$0xff pattern:$0x73625140]
        %v1171 = vld.sshfl [vmem:[#allocation1 + $0x10] sm:$0xff pattern:$0x73625140]
        %v1172 = vld.sshfl [vmem:[#allocation1 + $0x18] sm:$0xff pattern:$0x73625140]
        %v1173 = vld.sshfl [vmem:[#allocation1 + $0x20] sm:$0xff pattern:$0x73625140]
        %v1174 = vld.sshfl [vmem:[#allocation1 + $0x28] sm:$0xff pattern:$0x73625140]
        %v1175 = vld.sshfl [vmem:[#allocation1 + $0x30] sm:$0xff pattern:$0x73625140]
        %v1176 = vld.sshfl [vmem:[#allocation1 + $0x38] sm:$0xff pattern:$0x73625140]
        %v1585 = vunpack.c.l.b16 %v756
        %v1586 = vunpack.c.l.b16 %v757
        %v1587 = vunpack.c.l.b16 %v758
        %v1588 = vunpack.c.l.b16 %v759
        %v1589 = vunpack.c.l.b16 %v760
        %v1590 = vunpack.c.l.b16 %v761
        %v1591 = vunpack.c.l.b16 %v762
        %v1592 = vunpack.c.l.b16 %v763
        %v1593 = vunpack.c.l.b16 %v764
        %v1594 = vunpack.c.l.b16 %v765
        %v1595 = vunpack.c.l.b16 %v766
        %v1596 = vunpack.c.l.b16 %v767
        %v1597 = vunpack.c.l.b16 %v768
        %v1598 = vunpack.c.l.b16 %v769
        %v1599 = vunpack.c.l.b16 %v770
        %v1600 = vunpack.c.l.b16 %v771
        %v1601 = vunpack.c.l.b16 %v772
        %v1602 = vunpack.c.l.b16 %v773
        %v1603 = vunpack.c.l.b16 %v774
        %v1604 = vunpack.c.l.b16 %v775
        %v1605 = vunpack.c.l.b16 %v776
        %v1606 = vunpack.c.l.b16 %v777
        %v1607 = vunpack.c.l.b16 %v778
        %v1608 = vunpack.c.l.b16 %v779
        %v1609 = vunpack.c.l.b16 %v780
        %v1610 = vunpack.c.l.b16 %v781
        %v1611 = vunpack.c.l.b16 %v782
        %v1612 = vunpack.c.l.b16 %v783
        %v1613 = vunpack.c.l.b16 %v784
        %v1614 = vunpack.c.l.b16 %v785
        %v1615 = vunpack.c.l.b16 %v786
        %v1616 = vunpack.c.l.b16 %v787
        %v1617 = vunpack.c.l.b16 %v788
        %v1618 = vunpack.c.l.b16 %v789
        %v1619 = vunpack.c.l.b16 %v790
        %v1620 = vunpack.c.l.b16 %v791
        %v1621 = vunpack.c.l.b16 %v792
        %v1622 = vunpack.c.l.b16 %v793
        %v1623 = vunpack.c.l.b16 %v794
        %v1624 = vunpack.c.l.b16 %v795
        %v1625 = vunpack.c.l.b16 %v796
        %v1626 = vunpack.c.l.b16 %v797
        %v1627 = vunpack.c.l.b16 %v798
        %v1628 = vunpack.c.l.b16 %v799
        %v1629 = vunpack.c.l.b16 %v800
        %v1630 = vunpack.c.l.b16 %v801
        %v1631 = vunpack.c.l.b16 %v802
        %v1632 = vunpack.c.l.b16 %v803
        %v1633 = vunpack.c.l.b16 %v804
        %v1634 = vunpack.c.l.b16 %v805
        %v1635 = vunpack.c.l.b16 %v806
        %v1636 = vunpack.c.l.b16 %v807
        %v1637 = vunpack.c.l.b16 %v808
        %v1638 = vunpack.c.l.b16 %v809
        %v1639 = vunpack.c.l.b16 %v810
        %v1640 = vunpack.c.l.b16 %v811
        %v1641 = vunpack.c.l.b16 %v812
        %v1642 = vunpack.c.l.b16 %v813
        %v1643 = vunpack.c.l.b16 %v814
        %v1644 = vunpack.c.l.b16 %v815
        %v1645 = vunpack.c.l.b16 %v816
        %v1646 = vunpack.c.l.b16 %v817
        %v1647 = vunpack.c.l.b16 %v818
        %v1648 = vunpack.c.l.b16 %v819
        %v1649 = vunpack.c.l.b16 %v820
        %v1650 = vunpack.c.l.b16 %v821
        %v1651 = vunpack.c.l.b16 %v822
        %v1652 = vunpack.c.l.b16 %v823
        %v1653 = vunpack.c.l.b16 %v824
        %v1654 = vunpack.c.l.b16 %v825
        %v1655 = vunpack.c.l.b16 %v826
        %v1656 = vunpack.c.l.b16 %v827
        %v1657 = vunpack.c.l.b16 %v828
        %v1658 = vunpack.c.l.b16 %v829
        %v1659 = vunpack.c.l.b16 %v830
        %v1660 = vunpack.c.l.b16 %v831
        %v1661 = vunpack.c.l.b16 %v832
        %v1662 = vunpack.c.l.b16 %v833
        %v1663 = vunpack.c.l.b16 %v834
        %v1664 = vunpack.c.l.b16 %v835
        %v1665 = vunpack.c.l.b16 %v836
        %v1666 = vunpack.c.l.b16 %v837
        %v1667 = vunpack.c.l.b16 %v838
        %v1668 = vunpack.c.l.b16 %v839
        %v1669 = vunpack.c.l.b16 %v840
        %v1670 = vunpack.c.l.b16 %v841
        %v1671 = vunpack.c.l.b16 %v842
        %v1672 = vunpack.c.l.b16 %v843
        %v1673 = vunpack.c.l.b16 %v844
        %v1674 = vunpack.c.l.b16 %v845
        %v1675 = vunpack.c.l.b16 %v846
        %v1676 = vunpack.c.l.b16 %v847
        %v1677 = vunpack.c.l.b16 %v848
        %v1678 = vunpack.c.l.b16 %v849
        %v1679 = vunpack.c.l.b16 %v850
        %v1680 = vunpack.c.l.b16 %v851
        %v1681 = vunpack.c.l.b16 %v852
        %v1682 = vunpack.c.l.b16 %v853
        %v1683 = vunpack.c.l.b16 %v854
        %v1684 = vunpack.c.l.b16 %v855
        %v1685 = vunpack.c.l.b16 %v856
        %v1686 = vunpack.c.l.b16 %v857
        %v1687 = vunpack.c.l.b16 %v858
        %v1688 = vunpack.c.l.b16 %v859
        %v1689 = vunpack.c.l.b16 %v860
        %v1690 = vunpack.c.l.b16 %v861
        %v1691 = vunpack.c.l.b16 %v862
        %v1692 = vunpack.c.l.b16 %v863
        %v1693 = vunpack.c.l.b16 %v864
        %v1694 = vunpack.c.l.b16 %v865
        %v1695 = vunpack.c.l.b16 %v866
        %v1696 = vunpack.c.l.b16 %v867
        %v1697 = vunpack.c.l.b16 %v868
        %v1698 = vunpack.c.l.b16 %v869
        %v1699 = vunpack.c.l.b16 %v870
        %v1700 = vunpack.c.l.b16 %v871
        %v1701 = vunpack.c.l.b16 %v872
        %v1702 = vunpack.c.l.b16 %v873
        %v1703 = vunpack.c.l.b16 %v874
        %v1704 = vunpack.c.l.b16 %v875
        %v1705 = vunpack.c.l.b16 %v876
        %v1706 = vunpack.c.l.b16 %v877
        %v1707 = vunpack.c.l.b16 %v878
        %v1708 = vunpack.c.l.b16 %v879
        %v1709 = vunpack.c.l.b16 %v880
        %v1710 = vunpack.c.l.b16 %v881
        %v1711 = vunpack.c.l.b16 %v882
        %v1712 = vunpack.c.l.b16 %v883
        %v1713 = vunpack.c.l.b16 %v884
        %v1714 = vunpack.c.l.b16 %v885
        %v1715 = vunpack.c.l.b16 %v886
        %v1716 = vunpack.c.l.b16 %v887
        %v1717 = vunpack.c.l.b16 %v888
        %v1718 = vunpack.c.l.b16 %v889
        %v1719 = vunpack.c.l.b16 %v890
        %v1720 = vunpack.c.l.b16 %v891
        %v1721 = vunpack.c.l.b16 %v892
        %v1722 = vunpack.c.l.b16 %v893
        %v1723 = vunpack.c.l.b16 %v894
        %v1724 = vunpack.c.l.b16 %v895
        %v1725 = vunpack.c.l.b16 %v896
        %v1726 = vunpack.c.l.b16 %v897
        %v1727 = vunpack.c.l.b16 %v898
        %v1728 = vunpack.c.l.b16 %v899
        %v1729 = vunpack.c.l.b16 %v900
        %v1730 = vunpack.c.l.b16 %v901
        %v1731 = vunpack.c.l.b16 %v902
        %v1732 = vunpack.c.l.b16 %v903
        %v1733 = vunpack.c.l.b16 %v904
        %v1734 = vunpack.c.l.b16 %v905
        %v1735 = vunpack.c.l.b16 %v906
        %v1736 = vunpack.c.l.b16 %v907
        %v1737 = vunpack.c.l.b16 %v908
        %v1738 = vunpack.c.l.b16 %v909
        %v1739 = vunpack.c.l.b16 %v910
        %v1740 = vunpack.c.l.b16 %v911
        %v1741 = vunpack.c.l.b16 %v912
        %v1742 = vunpack.c.l.b16 %v913
        %v1743 = vunpack.c.l.b16 %v914
        %v1744 = vunpack.c.l.b16 %v915
        %v1745 = vunpack.c.l.b16 %v916
        %v1746 = vunpack.c.l.b16 %v917
        %v1747 = vunpack.c.l.b16 %v918
        %v1748 = vunpack.c.l.b16 %v919
        %v1749 = vunpack.c.l.b16 %v920
        %v1750 = vunpack.c.l.b16 %v921
        %v1751 = vunpack.c.l.b16 %v922
        %v1752 = vunpack.c.l.b16 %v923
        %v1753 = vunpack.c.l.b16 %v924
        %v1754 = vunpack.c.l.b16 %v925
        %v1755 = vunpack.c.l.b16 %v926
        %v1756 = vunpack.c.l.b16 %v927
        %v1757 = vunpack.c.l.b16 %v928
        %v1758 = vunpack.c.l.b16 %v929
        %v1759 = vunpack.c.l.b16 %v930
        %v1760 = vunpack.c.l.b16 %v931
        %v1761 = vunpack.c.l.b16 %v932
        %v1762 = vunpack.c.l.b16 %v933
        %v1763 = vunpack.c.l.b16 %v934
        %v1764 = vunpack.c.l.b16 %v935
        %v1765 = vunpack.c.l.b16 %v936
        %v1766 = vunpack.c.l.b16 %v937
        %v1767 = vunpack.c.l.b16 %v938
        %v1768 = vunpack.c.l.b16 %v939
        %v1769 = vunpack.c.l.b16 %v940
        %v1770 = vunpack.c.l.b16 %v941
        %v1771 = vunpack.c.l.b16 %v942
        %v1772 = vunpack.c.l.b16 %v943
        %v1773 = vunpack.c.l.b16 %v944
        %v1774 = vunpack.c.l.b16 %v945
        %v1775 = vunpack.c.l.b16 %v946
        %v1776 = vunpack.c.l.b16 %v947
        %v1777 = vunpack.c.l.b16 %v948
        %v1778 = vunpack.c.l.b16 %v949
        %v1779 = vunpack.c.l.b16 %v950
        %v1780 = vunpack.c.l.b16 %v951
        %v1781 = vunpack.c.l.b16 %v952
        %v1782 = vunpack.c.l.b16 %v953
        %v1783 = vunpack.c.l.b16 %v954
        %v1784 = vunpack.c.l.b16 %v955
        %v1785 = vunpack.c.l.b16 %v956
        %v1786 = vunpack.c.l.b16 %v957
        %v1787 = vunpack.c.l.b16 %v958
        %v1788 = vunpack.c.l.b16 %v959
        %v1789 = vunpack.c.l.b16 %v960
        %v1790 = vunpack.c.l.b16 %v961
        %v1791 = vunpack.c.l.b16 %v962
        %v1792 = vunpack.c.l.b16 %v963
        %v1793 = vunpack.c.l.b16 %v964
        %v1794 = vunpack.c.l.b16 %v965
        %v1795 = vunpack.c.l.b16 %v966
        %v1796 = vunpack.c.l.b16 %v967
        %v1797 = vunpack.c.l.b16 %v968
        %v1798 = vunpack.c.l.b16 %v969
        %v1799 = vunpack.c.l.b16 %v970
        %v1800 = vunpack.c.l.b16 %v971
        %v1801 = vunpack.c.l.b16 %v972
        %v1802 = vunpack.c.l.b16 %v973
        %v1803 = vunpack.c.l.b16 %v974
        %v1804 = vunpack.c.l.b16 %v975
        %v1805 = vunpack.c.l.b16 %v976
        %v1806 = vunpack.c.l.b16 %v977
        %v1807 = vunpack.c.l.b16 %v978
        %v1808 = vunpack.c.l.b16 %v979
        %v1809 = vunpack.c.l.b16 %v980
        %v1810 = vunpack.c.l.b16 %v981
        %v1811 = vunpack.c.l.b16 %v982
        %v1812 = vunpack.c.l.b16 %v983
        %v1813 = vunpack.c.l.b16 %v984
        %v1814 = vunpack.c.l.b16 %v985
        %v1815 = vunpack.c.l.b16 %v986
        %v1816 = vunpack.c.l.b16 %v987
        %v1817 = vunpack.c.l.b16 %v988
        %v1818 = vunpack.c.l.b16 %v989
        %v1819 = vunpack.c.l.b16 %v990
        %v1820 = vunpack.c.l.b16 %v991
        %v1821 = vunpack.c.l.b16 %v992
        %v1822 = vunpack.c.l.b16 %v993
        %v1823 = vunpack.c.l.b16 %v994
        %v1824 = vunpack.c.l.b16 %v995
        %v1825 = vunpack.c.l.b16 %v996
        %v1826 = vunpack.c.l.b16 %v997
        %v1827 = vunpack.c.l.b16 %v998
        %v1828 = vunpack.c.l.b16 %v999
        %v1829 = vunpack.c.l.b16 %v1000
        %v1830 = vunpack.c.l.b16 %v1001
        %v1831 = vunpack.c.l.b16 %v1002
        %v1832 = vunpack.c.l.b16 %v1003
        %v1833 = vunpack.c.l.b16 %v1004
        %v1834 = vunpack.c.l.b16 %v1005
        %v1835 = vunpack.c.l.b16 %v1006
        %v1836 = vunpack.c.l.b16 %v1007
        %v1837 = vunpack.c.l.b16 %v1008
        %v1838 = vunpack.c.l.b16 %v1009
        %v1839 = vunpack.c.l.b16 %v1010
        %v1840 = vunpack.c.l.b16 %v1011
        %v1841 = vunpack.c.l.b16 %v1012
        %v1842 = vunpack.c.l.b16 %v1013
        %v1843 = vunpack.c.l.b16 %v1014
        %v1844 = vunpack.c.l.b16 %v1015
        %v1845 = vunpack.c.l.b16 %v1016
        %v1846 = vunpack.c.l.b16 %v1017
        %v1847 = vunpack.c.l.b16 %v1018
        %v1848 = vunpack.c.l.b16 %v1019
        %v1849 = vunpack.c.l.b16 %v1020
        %v1850 = vunpack.c.l.b16 %v1021
        %v1851 = vunpack.c.l.b16 %v1022
        %v1852 = vunpack.c.l.b16 %v1023
        %v1853 = vunpack.c.l.b16 %v1024
        %v1854 = vunpack.c.l.b16 %v1025
        %v1855 = vunpack.c.l.b16 %v1026
        %v1856 = vunpack.c.l.b16 %v1027
        %v1857 = vunpack.c.l.b16 %v1028
        %v1858 = vunpack.c.l.b16 %v1029
        %v1859 = vunpack.c.l.b16 %v1030
        %v1860 = vunpack.c.l.b16 %v1031
        %v1861 = vunpack.c.l.b16 %v1032
        %v1862 = vunpack.c.l.b16 %v1033
        %v1863 = vunpack.c.l.b16 %v1034
        %v1864 = vunpack.c.l.b16 %v1035
        %v1865 = vunpack.c.l.b16 %v1036
        %v1866 = vunpack.c.l.b16 %v1037
        %v1867 = vunpack.c.l.b16 %v1038
        %v1868 = vunpack.c.l.b16 %v1039
        %v1869 = vunpack.c.l.b16 %v1040
        %v1870 = vunpack.c.l.b16 %v1041
        %v1871 = vunpack.c.l.b16 %v1042
        %v1872 = vunpack.c.l.b16 %v1043
        %v1873 = vunpack.c.l.b16 %v1044
        %v1874 = vunpack.c.l.b16 %v1045
        %v1875 = vunpack.c.l.b16 %v1046
        %v1876 = vunpack.c.l.b16 %v1047
        %v1877 = vunpack.c.l.b16 %v1048
        %v1878 = vunpack.c.l.b16 %v1049
        %v1879 = vunpack.c.l.b16 %v1050
        %v1880 = vunpack.c.l.b16 %v1051
        %v1881 = vunpack.c.l.b16 %v1052
        %v1882 = vunpack.c.l.b16 %v1053
        %v1883 = vunpack.c.l.b16 %v1054
        %v1884 = vunpack.c.l.b16 %v1055
        %v1885 = vunpack.c.l.b16 %v1056
        %v1886 = vunpack.c.l.b16 %v1057
        %v1887 = vunpack.c.l.b16 %v1058
        %v1888 = vunpack.c.l.b16 %v1059
        %v1889 = vunpack.c.l.b16 %v1060
        %v1890 = vunpack.c.l.b16 %v1061
        %v1891 = vunpack.c.l.b16 %v1062
        %v1892 = vunpack.c.l.b16 %v1063
        %v1893 = vunpack.c.l.b16 %v1064
        %v1894 = vunpack.c.l.b16 %v1065
        %v1895 = vunpack.c.l.b16 %v1066
        %v1896 = vunpack.c.l.b16 %v1067
        %v1897 = vunpack.c.l.b16 %v1068
        %v1898 = vunpack.c.l.b16 %v1069
        %v1899 = vunpack.c.l.b16 %v1070
        %v1900 = vunpack.c.l.b16 %v1071
        %v1901 = vunpack.c.l.b16 %v1072
        %v1902 = vunpack.c.l.b16 %v1073
        %v1903 = vunpack.c.l.b16 %v1074
        %v1904 = vunpack.c.l.b16 %v1075
        %v1905 = vunpack.c.l.b16 %v1076
        %v1906 = vunpack.c.l.b16 %v1077
        %v1907 = vunpack.c.l.b16 %v1078
        %v1908 = vunpack.c.l.b16 %v1079
        %v1909 = vunpack.c.l.b16 %v1080
        %v1910 = vunpack.c.l.b16 %v1081
        %v1911 = vunpack.c.l.b16 %v1082
        %v1912 = vunpack.c.l.b16 %v1083
        %v1913 = vunpack.c.l.b16 %v1084
        %v1914 = vunpack.c.l.b16 %v1085
        %v1915 = vunpack.c.l.b16 %v1086
        %v1916 = vunpack.c.l.b16 %v1087
        %v1917 = vunpack.c.l.b16 %v1088
        %v1918 = vunpack.c.l.b16 %v1089
        %v1919 = vunpack.c.l.b16 %v1090
        %v1920 = vunpack.c.l.b16 %v1091
        %v1921 = vunpack.c.l.b16 %v1092
        %v1922 = vunpack.c.l.b16 %v1093
        %v1923 = vunpack.c.l.b16 %v1094
        %v1924 = vunpack.c.l.b16 %v1095
        %v1925 = vunpack.c.l.b16 %v1096
        %v1926 = vunpack.c.l.b16 %v1097
        %v1927 = vunpack.c.l.b16 %v1098
        %v1928 = vunpack.c.l.b16 %v1099
        %v1929 = vunpack.c.l.b16 %v1100
        %v1930 = vunpack.c.l.b16 %v1101
        %v1931 = vunpack.c.l.b16 %v1102
        %v1932 = vunpack.c.l.b16 %v1103
        %v1933 = vunpack.c.l.b16 %v1104
        %v1934 = vunpack.c.l.b16 %v1105
        %v1935 = vunpack.c.l.b16 %v1106
        %v1936 = vunpack.c.l.b16 %v1107
        %v1937 = vunpack.c.l.b16 %v1108
        %v1938 = vunpack.c.l.b16 %v1109
        %v1939 = vunpack.c.l.b16 %v1110
        %v1940 = vunpack.c.l.b16 %v1111
        %v1941 = vunpack.c.l.b16 %v1112
        %v1942 = vunpack.c.l.b16 %v1113
        %v1943 = vunpack.c.l.b16 %v1114
        %v1944 = vunpack.c.l.b16 %v1115
        %v1945 = vunpack.c.l.b16 %v1116
        %v1946 = vunpack.c.l.b16 %v1117
        %v1947 = vunpack.c.l.b16 %v1118
        %v1948 = vunpack.c.l.b16 %v1119
        %v1949 = vunpack.c.l.b16 %v1120
        %v1950 = vunpack.c.l.b16 %v1121
        %v1951 = vunpack.c.l.b16 %v1122
        %v1952 = vunpack.c.l.b16 %v1123
        %v1953 = vunpack.c.l.b16 %v1124
        %v1954 = vunpack.c.l.b16 %v1125
        %v1955 = vunpack.c.l.b16 %v1126
        %v1956 = vunpack.c.l.b16 %v1127
        %v1957 = vunpack.c.l.b16 %v1128
        %v1958 = vunpack.c.l.b16 %v1129
        %v1959 = vunpack.c.l.b16 %v1130
        %v1960 = vunpack.c.l.b16 %v1131
        %v1961 = vunpack.c.l.b16 %v1132
        %v1962 = vunpack.c.l.b16 %v1133
        %v1963 = vunpack.c.l.b16 %v1134
        %v1964 = vunpack.c.l.b16 %v1135
        %v1965 = vunpack.c.l.b16 %v1136
        %v1966 = vunpack.c.l.b16 %v1137
        %v1967 = vunpack.c.l.b16 %v1138
        %v1968 = vunpack.c.l.b16 %v1139
        %v1969 = vpack.c.b16 %v1586, %v1585
        %v1970 = vpack.c.b16 %v1588, %v1587
        %v1971 = vpack.c.b16 %v1590, %v1589
        %v1972 = vpack.c.b16 %v1592, %v1591
        %v1973 = vpack.c.b16 %v1594, %v1593
        %v1974 = vpack.c.b16 %v1596, %v1595
        %v1975 = vpack.c.b16 %v1598, %v1597
        %v1976 = vpack.c.b16 %v1600, %v1599
        %v1977 = vpack.c.b16 %v1602, %v1601
        %v1978 = vpack.c.b16 %v1604, %v1603
        %v1979 = vpack.c.b16 %v1606, %v1605
        %v1980 = vpack.c.b16 %v1608, %v1607
        %v1981 = vpack.c.b16 %v1610, %v1609
        %v1982 = vpack.c.b16 %v1612, %v1611
        %v1983 = vpack.c.b16 %v1614, %v1613
        %v1984 = vpack.c.b16 %v1616, %v1615
        %v1985 = vpack.c.b16 %v1618, %v1617
        %v1986 = vpack.c.b16 %v1620, %v1619
        %v1987 = vpack.c.b16 %v1622, %v1621
        %v1988 = vpack.c.b16 %v1624, %v1623
        %v1989 = vpack.c.b16 %v1626, %v1625
        %v1990 = vpack.c.b16 %v1628, %v1627
        %v1991 = vpack.c.b16 %v1630, %v1629
        %v1992 = vpack.c.b16 %v1632, %v1631
        %v1993 = vpack.c.b16 %v1634, %v1633
        %v1994 = vpack.c.b16 %v1636, %v1635
        %v1995 = vpack.c.b16 %v1638, %v1637
        %v1996 = vpack.c.b16 %v1640, %v1639
        %v1997 = vpack.c.b16 %v1642, %v1641
        %v1998 = vpack.c.b16 %v1644, %v1643
        %v1999 = vpack.c.b16 %v1646, %v1645
        %v2000 = vpack.c.b16 %v1648, %v1647
        %v2001 = vpack.c.b16 %v1650, %v1649
        %v2002 = vpack.c.b16 %v1652, %v1651
        %v2003 = vpack.c.b16 %v1654, %v1653
        %v2004 = vpack.c.b16 %v1656, %v1655
        %v2005 = vpack.c.b16 %v1658, %v1657
        %v2006 = vpack.c.b16 %v1660, %v1659
        %v2007 = vpack.c.b16 %v1662, %v1661
        %v2008 = vpack.c.b16 %v1664, %v1663
        %v2009 = vpack.c.b16 %v1666, %v1665
        %v2010 = vpack.c.b16 %v1668, %v1667
        %v2011 = vpack.c.b16 %v1670, %v1669
        %v2012 = vpack.c.b16 %v1672, %v1671
        %v2013 = vpack.c.b16 %v1674, %v1673
        %v2014 = vpack.c.b16 %v1676, %v1675
        %v2015 = vpack.c.b16 %v1678, %v1677
        %v2016 = vpack.c.b16 %v1680, %v1679
        %v2017 = vpack.c.b16 %v1682, %v1681
        %v2018 = vpack.c.b16 %v1684, %v1683
        %v2019 = vpack.c.b16 %v1686, %v1685
        %v2020 = vpack.c.b16 %v1688, %v1687
        %v2021 = vpack.c.b16 %v1690, %v1689
        %v2022 = vpack.c.b16 %v1692, %v1691
        %v2023 = vpack.c.b16 %v1694, %v1693
        %v2024 = vpack.c.b16 %v1696, %v1695
        %v2025 = vpack.c.b16 %v1698, %v1697
        %v2026 = vpack.c.b16 %v1700, %v1699
        %v2027 = vpack.c.b16 %v1702, %v1701
        %v2028 = vpack.c.b16 %v1704, %v1703
        %v2029 = vpack.c.b16 %v1706, %v1705
        %v2030 = vpack.c.b16 %v1708, %v1707
        %v2031 = vpack.c.b16 %v1710, %v1709
        %v2032 = vpack.c.b16 %v1712, %v1711
        %v2033 = vpack.c.b16 %v1714, %v1713
        %v2034 = vpack.c.b16 %v1716, %v1715
        %v2035 = vpack.c.b16 %v1718, %v1717
        %v2036 = vpack.c.b16 %v1720, %v1719
        %v2037 = vpack.c.b16 %v1722, %v1721
        %v2038 = vpack.c.b16 %v1724, %v1723
        %v2039 = vpack.c.b16 %v1726, %v1725
        %v2040 = vpack.c.b16 %v1728, %v1727
        %v2041 = vpack.c.b16 %v1730, %v1729
        %v2042 = vpack.c.b16 %v1732, %v1731
        %v2043 = vpack.c.b16 %v1734, %v1733
        %v2044 = vpack.c.b16 %v1736, %v1735
        %v2045 = vpack.c.b16 %v1738, %v1737
        %v2046 = vpack.c.b16 %v1740, %v1739
        %v2047 = vpack.c.b16 %v1742, %v1741
        %v2048 = vpack.c.b16 %v1744, %v1743
        %v2049 = vpack.c.b16 %v1746, %v1745
        %v2050 = vpack.c.b16 %v1748, %v1747
        %v2051 = vpack.c.b16 %v1750, %v1749
        %v2052 = vpack.c.b16 %v1752, %v1751
        %v2053 = vpack.c.b16 %v1754, %v1753
        %v2054 = vpack.c.b16 %v1756, %v1755
        %v2055 = vpack.c.b16 %v1758, %v1757
        %v2056 = vpack.c.b16 %v1760, %v1759
        %v2057 = vpack.c.b16 %v1762, %v1761
        %v2058 = vpack.c.b16 %v1764, %v1763
        %v2059 = vpack.c.b16 %v1766, %v1765
        %v2060 = vpack.c.b16 %v1768, %v1767
        %v2061 = vpack.c.b16 %v1770, %v1769
        %v2062 = vpack.c.b16 %v1772, %v1771
        %v2063 = vpack.c.b16 %v1774, %v1773
        %v2064 = vpack.c.b16 %v1776, %v1775
        %v2065 = vpack.c.b16 %v1778, %v1777
        %v2066 = vpack.c.b16 %v1780, %v1779
        %v2067 = vpack.c.b16 %v1782, %v1781
        %v2068 = vpack.c.b16 %v1784, %v1783
        %v2069 = vpack.c.b16 %v1786, %v1785
        %v2070 = vpack.c.b16 %v1788, %v1787
        %v2071 = vpack.c.b16 %v1790, %v1789
        %v2072 = vpack.c.b16 %v1792, %v1791
        %v2073 = vpack.c.b16 %v1794, %v1793
        %v2074 = vpack.c.b16 %v1796, %v1795
        %v2075 = vpack.c.b16 %v1798, %v1797
        %v2076 = vpack.c.b16 %v1800, %v1799
        %v2077 = vpack.c.b16 %v1802, %v1801
        %v2078 = vpack.c.b16 %v1804, %v1803
        %v2079 = vpack.c.b16 %v1806, %v1805
        %v2080 = vpack.c.b16 %v1808, %v1807
        %v2081 = vpack.c.b16 %v1810, %v1809
        %v2082 = vpack.c.b16 %v1812, %v1811
        %v2083 = vpack.c.b16 %v1814, %v1813
        %v2084 = vpack.c.b16 %v1816, %v1815
        %v2085 = vpack.c.b16 %v1818, %v1817
        %v2086 = vpack.c.b16 %v1820, %v1819
        %v2087 = vpack.c.b16 %v1822, %v1821
        %v2088 = vpack.c.b16 %v1824, %v1823
        %v2089 = vpack.c.b16 %v1826, %v1825
        %v2090 = vpack.c.b16 %v1828, %v1827
        %v2091 = vpack.c.b16 %v1830, %v1829
        %v2092 = vpack.c.b16 %v1832, %v1831
        %v2093 = vpack.c.b16 %v1834, %v1833
        %v2094 = vpack.c.b16 %v1836, %v1835
        %v2095 = vpack.c.b16 %v1838, %v1837
        %v2096 = vpack.c.b16 %v1840, %v1839
        %v2097 = vpack.c.b16 %v1842, %v1841
        %v2098 = vpack.c.b16 %v1844, %v1843
        %v2099 = vpack.c.b16 %v1846, %v1845
        %v2100 = vpack.c.b16 %v1848, %v1847
        %v2101 = vpack.c.b16 %v1850, %v1849
        %v2102 = vpack.c.b16 %v1852, %v1851
        %v2103 = vpack.c.b16 %v1854, %v1853
        %v2104 = vpack.c.b16 %v1856, %v1855
        %v2105 = vpack.c.b16 %v1858, %v1857
        %v2106 = vpack.c.b16 %v1860, %v1859
        %v2107 = vpack.c.b16 %v1862, %v1861
        %v2108 = vpack.c.b16 %v1864, %v1863
        %v2109 = vpack.c.b16 %v1866, %v1865
        %v2110 = vpack.c.b16 %v1868, %v1867
        %v2111 = vpack.c.b16 %v1870, %v1869
        %v2112 = vpack.c.b16 %v1872, %v1871
        %v2113 = vpack.c.b16 %v1874, %v1873
        %v2114 = vpack.c.b16 %v1876, %v1875
        %v2115 = vpack.c.b16 %v1878, %v1877
        %v2116 = vpack.c.b16 %v1880, %v1879
        %v2117 = vpack.c.b16 %v1882, %v1881
        %v2118 = vpack.c.b16 %v1884, %v1883
        %v2119 = vpack.c.b16 %v1886, %v1885
        %v2120 = vpack.c.b16 %v1888, %v1887
        %v2121 = vpack.c.b16 %v1890, %v1889
        %v2122 = vpack.c.b16 %v1892, %v1891
        %v2123 = vpack.c.b16 %v1894, %v1893
        %v2124 = vpack.c.b16 %v1896, %v1895
        %v2125 = vpack.c.b16 %v1898, %v1897
        %v2126 = vpack.c.b16 %v1900, %v1899
        %v2127 = vpack.c.b16 %v1902, %v1901
        %v2128 = vpack.c.b16 %v1904, %v1903
        %v2129 = vpack.c.b16 %v1906, %v1905
        %v2130 = vpack.c.b16 %v1908, %v1907
        %v2131 = vpack.c.b16 %v1910, %v1909
        %v2132 = vpack.c.b16 %v1912, %v1911
        %v2133 = vpack.c.b16 %v1914, %v1913
        %v2134 = vpack.c.b16 %v1916, %v1915
        %v2135 = vpack.c.b16 %v1918, %v1917
        %v2136 = vpack.c.b16 %v1920, %v1919
        %v2137 = vpack.c.b16 %v1922, %v1921
        %v2138 = vpack.c.b16 %v1924, %v1923
        %v2139 = vpack.c.b16 %v1926, %v1925
        %v2140 = vpack.c.b16 %v1928, %v1927
        %v2141 = vpack.c.b16 %v1930, %v1929
        %v2142 = vpack.c.b16 %v1932, %v1931
        %v2143 = vpack.c.b16 %v1934, %v1933
        %v2144 = vpack.c.b16 %v1936, %v1935
        %v2145 = vpack.c.b16 %v1938, %v1937
        %v2146 = vpack.c.b16 %v1940, %v1939
        %v2147 = vpack.c.b16 %v1942, %v1941
        %v2148 = vpack.c.b16 %v1944, %v1943
        %v2149 = vpack.c.b16 %v1946, %v1945
        %v2150 = vpack.c.b16 %v1948, %v1947
        %v2151 = vpack.c.b16 %v1950, %v1949
        %v2152 = vpack.c.b16 %v1952, %v1951
        %v2153 = vpack.c.b16 %v1954, %v1953
        %v2154 = vpack.c.b16 %v1956, %v1955
        %v2155 = vpack.c.b16 %v1958, %v1957
        %v2156 = vpack.c.b16 %v1960, %v1959
        %v2157 = vpack.c.b16 %v1962, %v1961
        %v2158 = vpack.c.b16 %v1964, %v1963
        %v2159 = vpack.c.b16 %v1966, %v1965
        %v2160 = vpack.c.b16 %v1968, %v1967
        %2353 = vmatpush.bf16.msra.mxu0 %v1976
        %2354 = vmatpush.bf16.msra.mxu0 %v1975
        %2355 = vmatpush.bf16.msra.mxu0 %v1974
        %2356 = vmatpush.bf16.msra.mxu0 %v1973
        %2357 = vmatpush.bf16.msra.mxu0 %v1972
        %2358 = vmatpush.bf16.msra.mxu0 %v1971
        %2359 = vmatpush.bf16.msra.mxu0 %v1970
        %2360 = vmatpush.bf16.msra.mxu0 %v1969
        %2361 = vmatmul.bf16.gmra.mxu0 %v1145
        %v2362 = vpop.f32.mrf.mxu0
        %v2363 = vadd.f32 0.0, %v2362
        %v2364 = vpop.f32.mrf.mxu0
        %2365 = vdwg.mxu0
        %2366 = vmatpush.bf16.msra.mxu0 %v1984
        %2367 = vmatpush.bf16.msra.mxu0 %v1983
        %2368 = vmatpush.bf16.msra.mxu0 %v1982
        %2369 = vmatpush.bf16.msra.mxu0 %v1981
        %2370 = vmatpush.bf16.msra.mxu0 %v1980
        %2371 = vmatpush.bf16.msra.mxu0 %v1979
        %2372 = vmatpush.bf16.msra.mxu0 %v1978
        %2373 = vmatpush.bf16.msra.mxu0 %v1977
        %2374 = vmatmul.bf16.gmra.mxu0 %v1146
        %v2375 = vpop.f32.mrf.mxu0
        %v2376 = vadd.f32 %v2363, %v2375
        %v2377 = vpop.f32.mrf.mxu0
        %2378 = vdwg.mxu0
        %2379 = vmatpush.bf16.msra.mxu0 %v1992
        %2380 = vmatpush.bf16.msra.mxu0 %v1991
        %2381 = vmatpush.bf16.msra.mxu0 %v1990
        %2382 = vmatpush.bf16.msra.mxu0 %v1989
        %2383 = vmatpush.bf16.msra.mxu0 %v1988
        %2384 = vmatpush.bf16.msra.mxu0 %v1987
        %2385 = vmatpush.bf16.msra.mxu0 %v1986
        %2386 = vmatpush.bf16.msra.mxu0 %v1985
        %2387 = vmatmul.bf16.gmra.mxu0 %v1147
        %v2388 = vpop.f32.mrf.mxu0
        %v2389 = vadd.f32 %v2376, %v2388
        %v2390 = vpop.f32.mrf.mxu0
        %2391 = vdwg.mxu0
        %2392 = vmatpush.bf16.msra.mxu0 %v2000
        %2393 = vmatpush.bf16.msra.mxu0 %v1999
        %2394 = vmatpush.bf16.msra.mxu0 %v1998
        %2395 = vmatpush.bf16.msra.mxu0 %v1997
        %2396 = vmatpush.bf16.msra.mxu0 %v1996
        %2397 = vmatpush.bf16.msra.mxu0 %v1995
        %2398 = vmatpush.bf16.msra.mxu0 %v1994
        %2399 = vmatpush.bf16.msra.mxu0 %v1993
        %2400 = vmatmul.bf16.gmra.mxu0 %v1148
        %v2401 = vpop.f32.mrf.mxu0
        %v2402 = vadd.f32 %v2389, %v2401
        %v2403 = vpop.f32.mrf.mxu0
        %2404 = vdwg.mxu0
        %2405 = vmatpush.bf16.msra.mxu0 %v2008
        %2406 = vmatpush.bf16.msra.mxu0 %v2007
        %2407 = vmatpush.bf16.msra.mxu0 %v2006
        %2408 = vmatpush.bf16.msra.mxu0 %v2005
        %2409 = vmatpush.bf16.msra.mxu0 %v2004
        %2410 = vmatpush.bf16.msra.mxu0 %v2003
        %2411 = vmatpush.bf16.msra.mxu0 %v2002
        %2412 = vmatpush.bf16.msra.mxu0 %v2001
        %2413 = vmatmul.bf16.gmra.mxu0 %v1149
        %v2414 = vpop.f32.mrf.mxu0
        %v2415 = vadd.f32 %v2402, %v2414
        %v2416 = vpop.f32.mrf.mxu0
        %2417 = vdwg.mxu0
        %2418 = vmatpush.bf16.msra.mxu0 %v2016
        %2419 = vmatpush.bf16.msra.mxu0 %v2015
        %2420 = vmatpush.bf16.msra.mxu0 %v2014
        %2421 = vmatpush.bf16.msra.mxu0 %v2013
        %2422 = vmatpush.bf16.msra.mxu0 %v2012
        %2423 = vmatpush.bf16.msra.mxu0 %v2011
        %2424 = vmatpush.bf16.msra.mxu0 %v2010
        %2425 = vmatpush.bf16.msra.mxu0 %v2009
        %2426 = vmatmul.bf16.gmra.mxu0 %v1150
        %v2427 = vpop.f32.mrf.mxu0
        %v2428 = vadd.f32 %v2415, %v2427
        %v2429 = vpop.f32.mrf.mxu0
        %2430 = vdwg.mxu0
        %2431 = vmatpush.bf16.msra.mxu0 %v2024
        %2432 = vmatpush.bf16.msra.mxu0 %v2023
        %2433 = vmatpush.bf16.msra.mxu0 %v2022
        %2434 = vmatpush.bf16.msra.mxu0 %v2021
        %2435 = vmatpush.bf16.msra.mxu0 %v2020
        %2436 = vmatpush.bf16.msra.mxu0 %v2019
        %2437 = vmatpush.bf16.msra.mxu0 %v2018
        %2438 = vmatpush.bf16.msra.mxu0 %v2017
        %2439 = vmatmul.bf16.gmra.mxu0 %v1151
        %v2440 = vpop.f32.mrf.mxu0
        %v2441 = vadd.f32 %v2428, %v2440
        %v2442 = vpop.f32.mrf.mxu0
        %2443 = vdwg.mxu0
        %2444 = vmatpush.bf16.msra.mxu0 %v2032
        %2445 = vmatpush.bf16.msra.mxu0 %v2031
        %2446 = vmatpush.bf16.msra.mxu0 %v2030
        %2447 = vmatpush.bf16.msra.mxu0 %v2029
        %2448 = vmatpush.bf16.msra.mxu0 %v2028
        %2449 = vmatpush.bf16.msra.mxu0 %v2027
        %2450 = vmatpush.bf16.msra.mxu0 %v2026
        %2451 = vmatpush.bf16.msra.mxu0 %v2025
        %2452 = vmatmul.bf16.gmra.mxu0 %v1152
        %v2453 = vpop.f32.mrf.mxu0
        %v2454 = vadd.f32 %v2441, %v2453
        %v2455 = vpop.f32.mrf.mxu0
        %2456 = vdwg.mxu0
        %2457 = vmatpush.bf16.msra.mxu0 %v2040
        %2458 = vmatpush.bf16.msra.mxu0 %v2039
        %2459 = vmatpush.bf16.msra.mxu0 %v2038
        %2460 = vmatpush.bf16.msra.mxu0 %v2037
        %2461 = vmatpush.bf16.msra.mxu0 %v2036
        %2462 = vmatpush.bf16.msra.mxu0 %v2035
        %2463 = vmatpush.bf16.msra.mxu0 %v2034
        %2464 = vmatpush.bf16.msra.mxu0 %v2033
        %2465 = vmatmul.bf16.gmra.mxu0 %v1157
        %v2466 = vpop.f32.mrf.mxu0
        %v2467 = vadd.f32 %v2454, %v2466
        %v2468 = vpop.f32.mrf.mxu0
        %2469 = vdwg.mxu0
        %2470 = vmatpush.bf16.msra.mxu0 %v2048
        %2471 = vmatpush.bf16.msra.mxu0 %v2047
        %2472 = vmatpush.bf16.msra.mxu0 %v2046
        %2473 = vmatpush.bf16.msra.mxu0 %v2045
        %2474 = vmatpush.bf16.msra.mxu0 %v2044
        %2475 = vmatpush.bf16.msra.mxu0 %v2043
        %2476 = vmatpush.bf16.msra.mxu0 %v2042
        %2477 = vmatpush.bf16.msra.mxu0 %v2041
        %2478 = vmatmul.bf16.gmra.mxu0 %v1158
        %v2479 = vpop.f32.mrf.mxu0
        %v2480 = vadd.f32 %v2467, %v2479
        %v2481 = vpop.f32.mrf.mxu0
        %2482 = vdwg.mxu0
        %2483 = vmatpush.bf16.msra.mxu0 %v2056
        %2484 = vmatpush.bf16.msra.mxu0 %v2055
        %2485 = vmatpush.bf16.msra.mxu0 %v2054
        %2486 = vmatpush.bf16.msra.mxu0 %v2053
        %2487 = vmatpush.bf16.msra.mxu0 %v2052
        %2488 = vmatpush.bf16.msra.mxu0 %v2051
        %2489 = vmatpush.bf16.msra.mxu0 %v2050
        %2490 = vmatpush.bf16.msra.mxu0 %v2049
        %2491 = vmatmul.bf16.gmra.mxu0 %v1159
        %v2492 = vpop.f32.mrf.mxu0
        %v2493 = vadd.f32 %v2480, %v2492
        %v2494 = vpop.f32.mrf.mxu0
        %2495 = vdwg.mxu0
        %2496 = vmatpush.bf16.msra.mxu0 %v2064
        %2497 = vmatpush.bf16.msra.mxu0 %v2063
        %2498 = vmatpush.bf16.msra.mxu0 %v2062
        %2499 = vmatpush.bf16.msra.mxu0 %v2061
        %2500 = vmatpush.bf16.msra.mxu0 %v2060
        %2501 = vmatpush.bf16.msra.mxu0 %v2059
        %2502 = vmatpush.bf16.msra.mxu0 %v2058
        %2503 = vmatpush.bf16.msra.mxu0 %v2057
        %2504 = vmatmul.bf16.gmra.mxu0 %v1160
        %v2505 = vpop.f32.mrf.mxu0
        %v2506 = vadd.f32 %v2493, %v2505
        %v2507 = vpop.f32.mrf.mxu0
        %2508 = vdwg.mxu0
        %2509 = vmatpush.bf16.msra.mxu0 %v2072
        %2510 = vmatpush.bf16.msra.mxu0 %v2071
        %2511 = vmatpush.bf16.msra.mxu0 %v2070
        %2512 = vmatpush.bf16.msra.mxu0 %v2069
        %2513 = vmatpush.bf16.msra.mxu0 %v2068
        %2514 = vmatpush.bf16.msra.mxu0 %v2067
        %2515 = vmatpush.bf16.msra.mxu0 %v2066
        %2516 = vmatpush.bf16.msra.mxu0 %v2065
        %2517 = vmatmul.bf16.gmra.mxu0 %v1161
        %v2518 = vpop.f32.mrf.mxu0
        %v2519 = vadd.f32 %v2506, %v2518
        %v2520 = vpop.f32.mrf.mxu0
        %2521 = vdwg.mxu0
        %2522 = vmatpush.bf16.msra.mxu0 %v2080
        %2523 = vmatpush.bf16.msra.mxu0 %v2079
        %2524 = vmatpush.bf16.msra.mxu0 %v2078
        %2525 = vmatpush.bf16.msra.mxu0 %v2077
        %2526 = vmatpush.bf16.msra.mxu0 %v2076
        %2527 = vmatpush.bf16.msra.mxu0 %v2075
        %2528 = vmatpush.bf16.msra.mxu0 %v2074
        %2529 = vmatpush.bf16.msra.mxu0 %v2073
        %2530 = vmatmul.bf16.gmra.mxu0 %v1162
        %v2531 = vpop.f32.mrf.mxu0
        %v2532 = vadd.f32 %v2519, %v2531
        %v2533 = vpop.f32.mrf.mxu0
        %2534 = vdwg.mxu0
        %2535 = vmatpush.bf16.msra.mxu0 %v2088
        %2536 = vmatpush.bf16.msra.mxu0 %v2087
        %2537 = vmatpush.bf16.msra.mxu0 %v2086
        %2538 = vmatpush.bf16.msra.mxu0 %v2085
        %2539 = vmatpush.bf16.msra.mxu0 %v2084
        %2540 = vmatpush.bf16.msra.mxu0 %v2083
        %2541 = vmatpush.bf16.msra.mxu0 %v2082
        %2542 = vmatpush.bf16.msra.mxu0 %v2081
        %2543 = vmatmul.bf16.gmra.mxu0 %v1163
        %v2544 = vpop.f32.mrf.mxu0
        %v2545 = vadd.f32 %v2532, %v2544
        %v2546 = vpop.f32.mrf.mxu0
        %2547 = vdwg.mxu0
        %2548 = vmatpush.bf16.msra.mxu0 %v2096
        %2549 = vmatpush.bf16.msra.mxu0 %v2095
        %2550 = vmatpush.bf16.msra.mxu0 %v2094
        %2551 = vmatpush.bf16.msra.mxu0 %v2093
        %2552 = vmatpush.bf16.msra.mxu0 %v2092
        %2553 = vmatpush.bf16.msra.mxu0 %v2091
        %2554 = vmatpush.bf16.msra.mxu0 %v2090
        %2555 = vmatpush.bf16.msra.mxu0 %v2089
        %2556 = vmatmul.bf16.gmra.mxu0 %v1164
        %v2557 = vpop.f32.mrf.mxu0
        %v2558 = vadd.f32 %v2545, %v2557
        %v2559 = vpop.f32.mrf.mxu0
        %2560 = vdwg.mxu0
        %2561 = vmatpush.bf16.msra.mxu0 %v2104
        %2562 = vmatpush.bf16.msra.mxu0 %v2103
        %2563 = vmatpush.bf16.msra.mxu0 %v2102
        %2564 = vmatpush.bf16.msra.mxu0 %v2101
        %2565 = vmatpush.bf16.msra.mxu0 %v2100
        %2566 = vmatpush.bf16.msra.mxu0 %v2099
        %2567 = vmatpush.bf16.msra.mxu0 %v2098
        %2568 = vmatpush.bf16.msra.mxu0 %v2097
        %2569 = vmatmul.bf16.gmra.mxu0 %v1169
        %v2570 = vpop.f32.mrf.mxu0
        %v2571 = vadd.f32 %v2558, %v2570
        %v2572 = vpop.f32.mrf.mxu0
        %2573 = vdwg.mxu0
        %2574 = vmatpush.bf16.msra.mxu0 %v2112
        %2575 = vmatpush.bf16.msra.mxu0 %v2111
        %2576 = vmatpush.bf16.msra.mxu0 %v2110
        %2577 = vmatpush.bf16.msra.mxu0 %v2109
        %2578 = vmatpush.bf16.msra.mxu0 %v2108
        %2579 = vmatpush.bf16.msra.mxu0 %v2107
        %2580 = vmatpush.bf16.msra.mxu0 %v2106
        %2581 = vmatpush.bf16.msra.mxu0 %v2105
        %2582 = vmatmul.bf16.gmra.mxu0 %v1170
        %v2583 = vpop.f32.mrf.mxu0
        %v2584 = vadd.f32 %v2571, %v2583
        %v2585 = vpop.f32.mrf.mxu0
        %2586 = vdwg.mxu0
        %2587 = vmatpush.bf16.msra.mxu0 %v2120
        %2588 = vmatpush.bf16.msra.mxu0 %v2119
        %2589 = vmatpush.bf16.msra.mxu0 %v2118
        %2590 = vmatpush.bf16.msra.mxu0 %v2117
        %2591 = vmatpush.bf16.msra.mxu0 %v2116
        %2592 = vmatpush.bf16.msra.mxu0 %v2115
        %2593 = vmatpush.bf16.msra.mxu0 %v2114
        %2594 = vmatpush.bf16.msra.mxu0 %v2113
        %2595 = vmatmul.bf16.gmra.mxu0 %v1171
        %v2596 = vpop.f32.mrf.mxu0
        %v2597 = vadd.f32 %v2584, %v2596
        %v2598 = vpop.f32.mrf.mxu0
        %2599 = vdwg.mxu0
        %2600 = vmatpush.bf16.msra.mxu0 %v2128
        %2601 = vmatpush.bf16.msra.mxu0 %v2127
        %2602 = vmatpush.bf16.msra.mxu0 %v2126
        %2603 = vmatpush.bf16.msra.mxu0 %v2125
        %2604 = vmatpush.bf16.msra.mxu0 %v2124
        %2605 = vmatpush.bf16.msra.mxu0 %v2123
        %2606 = vmatpush.bf16.msra.mxu0 %v2122
        %2607 = vmatpush.bf16.msra.mxu0 %v2121
        %2608 = vmatmul.bf16.gmra.mxu0 %v1172
        %v2609 = vpop.f32.mrf.mxu0
        %v2610 = vadd.f32 %v2597, %v2609
        %v2611 = vpop.f32.mrf.mxu0
        %2612 = vdwg.mxu0
        %2613 = vmatpush.bf16.msra.mxu0 %v2136
        %2614 = vmatpush.bf16.msra.mxu0 %v2135
        %2615 = vmatpush.bf16.msra.mxu0 %v2134
        %2616 = vmatpush.bf16.msra.mxu0 %v2133
        %2617 = vmatpush.bf16.msra.mxu0 %v2132
        %2618 = vmatpush.bf16.msra.mxu0 %v2131
        %2619 = vmatpush.bf16.msra.mxu0 %v2130
        %2620 = vmatpush.bf16.msra.mxu0 %v2129
        %2621 = vmatmul.bf16.gmra.mxu0 %v1173
        %v2622 = vpop.f32.mrf.mxu0
        %v2623 = vadd.f32 %v2610, %v2622
        %v2624 = vpop.f32.mrf.mxu0
        %2625 = vdwg.mxu0
        %2626 = vmatpush.bf16.msra.mxu0 %v2144
        %2627 = vmatpush.bf16.msra.mxu0 %v2143
        %2628 = vmatpush.bf16.msra.mxu0 %v2142
        %2629 = vmatpush.bf16.msra.mxu0 %v2141
        %2630 = vmatpush.bf16.msra.mxu0 %v2140
        %2631 = vmatpush.bf16.msra.mxu0 %v2139
        %2632 = vmatpush.bf16.msra.mxu0 %v2138
        %2633 = vmatpush.bf16.msra.mxu0 %v2137
        %2634 = vmatmul.bf16.gmra.mxu0 %v1174
        %v2635 = vpop.f32.mrf.mxu0
        %v2636 = vadd.f32 %v2623, %v2635
        %v2637 = vpop.f32.mrf.mxu0
        %2638 = vdwg.mxu0
        %2639 = vmatpush.bf16.msra.mxu0 %v2152
        %2640 = vmatpush.bf16.msra.mxu0 %v2151
        %2641 = vmatpush.bf16.msra.mxu0 %v2150
        %2642 = vmatpush.bf16.msra.mxu0 %v2149
        %2643 = vmatpush.bf16.msra.mxu0 %v2148
        %2644 = vmatpush.bf16.msra.mxu0 %v2147
        %2645 = vmatpush.bf16.msra.mxu0 %v2146
        %2646 = vmatpush.bf16.msra.mxu0 %v2145
        %2647 = vmatmul.bf16.gmra.mxu0 %v1175
        %v2648 = vpop.f32.mrf.mxu0
        %v2649 = vadd.f32 %v2636, %v2648
        %v2650 = vpop.f32.mrf.mxu0
        %2651 = vdwg.mxu0
        %2652 = vmatpush.bf16.msra.mxu0 %v2160
        %2653 = vmatpush.bf16.msra.mxu0 %v2159
        %2654 = vmatpush.bf16.msra.mxu0 %v2158
        %2655 = vmatpush.bf16.msra.mxu0 %v2157
        %2656 = vmatpush.bf16.msra.mxu0 %v2156
        %2657 = vmatpush.bf16.msra.mxu0 %v2155
        %2658 = vmatpush.bf16.msra.mxu0 %v2154
        %2659 = vmatpush.bf16.msra.mxu0 %v2153
        %2660 = vmatmul.bf16.gmra.mxu0 %v1176
        %v2661 = vpop.f32.mrf.mxu0
        %v2662 = vadd.f32 %v2649, %v2661
        %v2663 = vpop.f32.mrf.mxu0
        %2664 = vdwg.mxu0
        %v2665 = vld [vmem:[%s3] sm:$0x1]
        %v2667 = vrot.slane %v2662, 7
        %vm2669 = vcmask 1040384
        %v2670 = vsel %vm2669, %v2665, %v2667
        %v2671 = vld [vmem:[%s4] sm:$0x1f]
        %v2672 = vadd.f32 %v2670, %v2671
        %v2673 = vld [vmem:[%s5] sm:$0x3]
        %vm2674 = vcmask 520192
        %v2675 = vsel %vm2674, %v2672, 0.0
        %2676 = vadd.xlane.f32.xlu0 %v2675
        %v2677 = vpop.xlane.xlu0 %2676
        %v2678 = vrcp.pop 64.0
        %v2679 = vmul.f32 64.0, %v2678
        %v2680 = vsub.f32 1.0, %v2679
        %v2681 = vmul.f32 %v2678, %v2680
        %v2682 = vadd.f32 %v2678, %v2681
        %vm2683 = vweird.f32 %v2678
        %v2684 = vsel %vm2683, %v2678, %v2682
        %v2685 = vmul.f32 %v2677, %v2684
        %v2686 = vsub.f32 %v2672, %v2685
        %v2687 = vmul.f32 %v2686, %v2686
        %v2688 = vsel %vm2674, %v2687, 0.0
        %2689 = vadd.xlane.f32.xlu0 %v2688
        %v2690 = vpop.xlane.xlu0 %2689
        %v2691 = vmul.f32 %v2690, %v2684
        %v2692 = vadd.f32 %v2691, 1e-05
        %v2693 = vrsqrt.pop %v2692
        %v2694 = vmul.f32 %v2693, %v2692
        %v2695 = vmul.f32 %v2694, %v2693
        %v2696 = vmul.f32 0.5, %v2695
        %v2697 = vsub.f32 1.5, %v2696
        %v2698 = vmul.f32 %v2693, %v2697
        %vm2699 = vweird.f32 %v2692
        %vm2700 = vweird.f32 %v2693
        %vm2701 = vmor %vm2699, %vm2700
        %v2702 = vsel %vm2701, %v2693, %v2698
        %v2703 = vmul.f32 %v2686, %v2702
        %v2704 = vperm.slane %v2673, 0
        %v2705 = vmul.f32 %v2703, %v2704
        %v2706 = vperm.slane %v2673, 1
        %v2707 = vadd.f32 %v2705, %v2706
        %v2708 = vld [vmem:[%s6] sm:$0x3]
        %v2709 = vsel %vm2674, %v2707, 0.0
        %2710 = vadd.xlane.f32.xlu0 %v2709
        %v2711 = vpop.xlane.xlu0 %2710
        %v2712 = vmul.f32 %v2711, %v2684
        %v2713 = vsub.f32 %v2707, %v2712
        %v2714 = vmul.f32 %v2713, %v2713
        %v2715 = vsel %vm2674, %v2714, 0.0
        %2716 = vadd.xlane.f32.xlu0 %v2715
        %v2717 = vpop.xlane.xlu0 %2716
        %v2718 = vmul.f32 %v2717, %v2684
        %v2719 = vadd.f32 %v2718, 1e-05
        %v2720 = vrsqrt.pop %v2719
        %v2721 = vmul.f32 %v2720, %v2719
        %v2722 = vmul.f32 %v2721, %v2720
        %v2723 = vmul.f32 0.5, %v2722
        %v2724 = vsub.f32 1.5, %v2723
        %v2725 = vmul.f32 %v2720, %v2724
        %vm2726 = vweird.f32 %v2719
        %vm2727 = vweird.f32 %v2720
        %vm2728 = vmor %vm2726, %vm2727
        %v2729 = vsel %vm2728, %v2720, %v2725
        %v2730 = vmul.f32 %v2713, %v2729
        %v2731 = vperm.slane %v2708, 0
        %v2732 = vmul.f32 %v2730, %v2731
        %v2733 = vperm.slane %v2708, 1
        %v2734 = vadd.f32 %v2732, %v2733
        %v2735 = vld [vmem:[%s7] sm:$0xff]
        %v2736 = vld [vmem:[%s7 + $0x8] sm:$0xff]
        %v2737 = vld [vmem:[%s7 + $0x10] sm:$0xff]
        %v2738 = vld [vmem:[%s7 + $0x18] sm:$0xff]
        %v2739 = vld [vmem:[%s7 + $0x20] sm:$0xff]
        %v2740 = vld [vmem:[%s7 + $0x28] sm:$0xff]
        %v2741 = vld [vmem:[%s7 + $0x30] sm:$0xff]
        %v2742 = vld [vmem:[%s7 + $0x38] sm:$0xff]
        %v2743 = vpack.c.bf16 %v2734, %v2734
        %v2744 = vld [vmem:[%s8] sm:$0x3]
        %v2746 = vperm.slane %v2744, 0
        %v2747 = vperm.slane %v2744, 1
        %v2758 = vunpack.c.l.b16 %v2735
        %v2759 = vunpack.c.h.b16 %v2735
        %v2760 = vunpack.c.l.b16 %v2736
        %v2761 = vunpack.c.h.b16 %v2736
        %v2762 = vunpack.c.l.b16 %v2737
        %v2763 = vunpack.c.h.b16 %v2737
        %v2764 = vunpack.c.l.b16 %v2738
        %v2765 = vunpack.c.h.b16 %v2738
        %v2766 = vunpack.c.l.b16 %v2739
        %v2767 = vunpack.c.h.b16 %v2739
        %v2768 = vunpack.c.l.b16 %v2740
        %v2769 = vunpack.c.h.b16 %v2740
        %v2770 = vunpack.c.l.b16 %v2741
        %v2771 = vunpack.c.h.b16 %v2741
        %v2772 = vunpack.c.l.b16 %v2742
        %v2773 = vunpack.c.h.b16 %v2742
        %v2774 = vpack.c.b16 %v2760, %v2758
        %v2775 = vpack.c.b16 %v2761, %v2759
        %v2776 = vpack.c.b16 %v2764, %v2762
        %v2777 = vpack.c.b16 %v2765, %v2763
        %v2778 = vpack.c.b16 %v2768, %v2766
        %v2779 = vpack.c.b16 %v2769, %v2767
        %v2780 = vpack.c.b16 %v2772, %v2770
        %v2781 = vpack.c.b16 %v2773, %v2771
        %vm2790 = vcmask 523264
        %v2792 = vsel %vm2790, %v2743, 0
        %2794 = vmatpush.bf16.msra.mxu0 0
        %2795 = vmatpush.bf16.msra.mxu0 0
        %2796 = vmatpush.bf16.msra.mxu0 0
        %2797 = vmatpush.bf16.msra.mxu0 0
        %2798 = vmatpush.bf16.msra.mxu0 %v2780
        %2799 = vmatpush.bf16.msra.mxu0 %v2778
        %2800 = vmatpush.bf16.msra.mxu0 %v2776
        %2801 = vmatpush.bf16.msra.mxu0 %v2774
        %2802 = vmatmul.bf16.gmra.mxu0 %v2792
        %v2803 = vpop.f32.mrf.mxu0
        %v2804 = vadd.f32 %v2746, %v2803
        %v2805 = vpop.f32.mrf.mxu0
        %2806 = vdwg.mxu0
        %2807 = vmatpush.bf16.msra.mxu0 0
        %2808 = vmatpush.bf16.msra.mxu0 0
        %2809 = vmatpush.bf16.msra.mxu0 0
        %2810 = vmatpush.bf16.msra.mxu0 0
        %2811 = vmatpush.bf16.msra.mxu0 %v2781
        %2812 = vmatpush.bf16.msra.mxu0 %v2779
        %2813 = vmatpush.bf16.msra.mxu0 %v2777
        %2814 = vmatpush.bf16.msra.mxu0 %v2775
        %2815 = vmatmul.bf16.gmra.mxu0 %v2792
        %v2816 = vpop.f32.mrf.mxu0
        %v2817 = vadd.f32 %v2747, %v2816
        %v2818 = vpop.f32.mrf.mxu0
        %2819 = vdwg.mxu0
        %v2820 = vld [vmem:[%s9] sm:$0xf]
        %v2821 = vld [vmem:[%s9 + $0x4] sm:$0xf]
        %v2822 = vld [vmem:[%s9 + $0x8] sm:$0xf]
        %v2823 = vld [vmem:[%s9 + $0xc] sm:$0xf]
        %v2824 = vld [vmem:[%s9 + $0x10] sm:$0xf]
        %v2825 = vld [vmem:[%s9 + $0x14] sm:$0xf]
        %v2826 = vld [vmem:[%s9 + $0x18] sm:$0xf]
        %v2827 = vld [vmem:[%s9 + $0x1c] sm:$0xf]
        %v2828 = vpack.c.bf16 %v2804, %v2804
        %2830 = vrot.lane.b32.xlu0 %v2828, 64
        %v2831 = vpop.permute.xlu0 %2830
        %vm2832 = vcmask 261120
        %v2834 = vsel %vm2832, %v2828, 0
        %v2837 = vsel %vm2832, %v2831, 0
        %2839 = vmatpush.bf16.xpose.msra.mxu0 0
        %2840 = vmatpush.bf16.xpose.msra.mxu0 0
        %2841 = vmatpush.bf16.xpose.msra.mxu0 0
        %2842 = vmatpush.bf16.xpose.msra.mxu0 0
        %2843 = vmatpush.bf16.xpose.msra.mxu0 0
        %2844 = vmatpush.bf16.xpose.msra.mxu0 0
        %2845 = vmatpush.bf16.xpose.msra.mxu0 0
        %2846 = vmatpush.bf16.xpose.msra.mxu0 %v2837
        %2847 = vmatmul.bf16.gmra.mxu0 %v2834
        %v2848 = vpop.f32.mrf.mxu0
        %v2849 = vadd.f32 0.0, %v2848
        %v2850 = vpop.f32.mrf.mxu0
        %2851 = vdwg.mxu0
        %v2852 = vmul.f32 %v2849, 0.17677669
        %vm2853 = vcmask 36864
        %v2854 = vsel %vm2853, %v2852, -inf
        %2855 = vmax.xlane.f32.xlu0 %v2854
        %v2856 = vpop.xlane.xlu0 %2855
        %v2857 = vsub.f32 %v2852, %v2856
        %v2858 = vmul.f32 %v2857, 1.442695
        %v2859 = vpow.pop %v2858
        %v2860 = vsel %vm2853, %v2859, 0.0
        %2861 = vadd.xlane.f32.xlu0 %v2860
        %v2862 = vpop.xlane.xlu0 %2861
        %v2863 = vrcp.pop %v2862
        %v2864 = vpack.c.bf16 %v2859, %v2859
        %v2865 = vpack.c.bf16 %v2817, %v2817
        %vm2866 = vcmask 39936
        %v2868 = vsel %vm2866, %v2864, 0
        %vm2870 = vcmask 1041408
        %vm2871 = vcmask 1042432
        %v2872 = vsel %vm2870, 4294967295, 65535
        %v2873 = vsel %vm2871, %v2872, 0
        %v2875 = vand.u32 %v2865, %v2873
        %2877 = vmatpush.bf16.msra.mxu0 0
        %2878 = vmatpush.bf16.msra.mxu0 0
        %2879 = vmatpush.bf16.msra.mxu0 0
        %2880 = vmatpush.bf16.msra.mxu0 0
        %2881 = vmatpush.bf16.msra.mxu0 0
        %2882 = vmatpush.bf16.msra.mxu0 0
        %2883 = vmatpush.bf16.msra.mxu0 0
        %2884 = vmatpush.bf16.msra.mxu0 %v2875
        %2885 = vmatmul.bf16.gmra.mxu0 %v2868
        %v2886 = vpop.f32.mrf.mxu0
        %v2887 = vadd.f32 0.0, %v2886
        %v2888 = vpop.f32.mrf.mxu0
        %2889 = vdwg.mxu0
        %v2890 = vmul.f32 %v2887, %v2863
        %v2891 = vpack.c.bf16 %v2890, %v2890
        %2892 = vrot.lane.b32.xlu0 %v2828, 96
        %v2893 = vpop.permute.xlu0 %2892
        %2894 = vrot.lane.b32.xlu0 %v2828, 32
        %v2895 = vpop.permute.xlu0 %2894
        %v2897 = vsel %vm2832, %v2893, 0
        %v2900 = vsel %vm2832, %v2895, 0
        %2902 = vmatpush.bf16.xpose.msra.mxu0 0
        %2903 = vmatpush.bf16.xpose.msra.mxu0 0
        %2904 = vmatpush.bf16.xpose.msra.mxu0 0
        %2905 = vmatpush.bf16.xpose.msra.mxu0 0
        %2906 = vmatpush.bf16.xpose.msra.mxu0 0
        %2907 = vmatpush.bf16.xpose.msra.mxu0 0
        %2908 = vmatpush.bf16.xpose.msra.mxu0 0
        %2909 = vmatpush.bf16.xpose.msra.mxu0 %v2900
        %2910 = vmatmul.bf16.gmra.mxu0 %v2897
        %v2911 = vpop.f32.mrf.mxu0
        %v2912 = vadd.f32 0.0, %v2911
        %v2913 = vpop.f32.mrf.mxu0
        %2914 = vdwg.mxu0
        %v2915 = vmul.f32 %v2912, 0.17677669
        %v2916 = vsel %vm2853, %v2915, -inf
        %2917 = vmax.xlane.f32.xlu0 %v2916
        %v2918 = vpop.xlane.xlu0 %2917
        %v2919 = vsub.f32 %v2915, %v2918
        %v2920 = vmul.f32 %v2919, 1.442695
        %v2921 = vpow.pop %v2920
        %v2922 = vsel %vm2853, %v2921, 0.0
        %2923 = vadd.xlane.f32.xlu0 %v2922
        %v2924 = vpop.xlane.xlu0 %2923
        %v2925 = vrcp.pop %v2924
        %v2926 = vpack.c.bf16 %v2921, %v2921
        %2928 = vrot.lane.b32.xlu0 %v2865, 96
        %v2929 = vpop.permute.xlu0 %2928
        %v2931 = vsel %vm2866, %v2926, 0
        %v2934 = vand.u32 %v2929, %v2873
        %2936 = vmatpush.bf16.msra.mxu0 0
        %2937 = vmatpush.bf16.msra.mxu0 0
        %2938 = vmatpush.bf16.msra.mxu0 0
        %2939 = vmatpush.bf16.msra.mxu0 0
        %2940 = vmatpush.bf16.msra.mxu0 0
        %2941 = vmatpush.bf16.msra.mxu0 0
        %2942 = vmatpush.bf16.msra.mxu0 0
        %2943 = vmatpush.bf16.msra.mxu0 %v2934
        %2944 = vmatmul.bf16.gmra.mxu0 %v2931
        %v2945 = vpop.f32.mrf.mxu0
        %v2946 = vadd.f32 0.0, %v2945
        %v2947 = vpop.f32.mrf.mxu0
        %2948 = vdwg.mxu0
        %v2949 = vmul.f32 %v2946, %v2925
        %v2950 = vpack.c.bf16 %v2949, %v2949
        %v2955 = vunpack.c.l.b16 %v2824
        %v2956 = vunpack.c.l.b16 %v2825
        %v2957 = vunpack.c.l.b16 %v2826
        %v2958 = vunpack.c.l.b16 %v2827
        %v2959 = vpack.c.b16 %v2956, %v2955
        %v2960 = vpack.c.b16 %v2958, %v2957
        %v2964 = vsel %vm2832, %v2950, 0
        %2966 = vmatpush.bf16.msra.mxu0 0
        %2967 = vmatpush.bf16.msra.mxu0 0
        %2968 = vmatpush.bf16.msra.mxu0 0
        %2969 = vmatpush.bf16.msra.mxu0 0
        %2970 = vmatpush.bf16.msra.mxu0 0
        %2971 = vmatpush.bf16.msra.mxu0 0
        %2972 = vmatpush.bf16.msra.mxu0 %v2960
        %2973 = vmatpush.bf16.msra.mxu0 %v2959
        %2974 = vmatmul.bf16.gmra.mxu0 %v2964
        %v2975 = vpop.f32.mrf.mxu0
        %v2976 = vadd.f32 0.0, %v2975
        %v2977 = vpop.f32.mrf.mxu0
        %2978 = vdwg.mxu0
        %v2983 = vunpack.c.l.b16 %v2820
        %v2984 = vunpack.c.l.b16 %v2821
        %v2985 = vunpack.c.l.b16 %v2822
        %v2986 = vunpack.c.l.b16 %v2823
        %v2987 = vpack.c.b16 %v2984, %v2983
        %v2988 = vpack.c.b16 %v2986, %v2985
        %v2992 = vsel %vm2832, %v2891, 0
        %2994 = vmatpush.bf16.msra.mxu0 0
        %2995 = vmatpush.bf16.msra.mxu0 0
        %2996 = vmatpush.bf16.msra.mxu0 0
        %2997 = vmatpush.bf16.msra.mxu0 0
        %2998 = vmatpush.bf16.msra.mxu0 0
        %2999 = vmatpush.bf16.msra.mxu0 0
        %3000 = vmatpush.bf16.msra.mxu0 %v2988
        %3001 = vmatpush.bf16.msra.mxu0 %v2987
        %3002 = vmatmul.bf16.gmra.mxu0 %v2992
        %v3003 = vpop.f32.mrf.mxu0
        %v3004 = vadd.f32 %v2976, %v3003
        %v3005 = vpop.f32.mrf.mxu0
        %3006 = vdwg.mxu0
        %v3007 = vadd.f32 %v2707, %v3004
        %v3008 = vld [vmem:[%s10] sm:$0x1]
        %v3010 = vperm.slane %v3008, 0
        %v3012 = vadd.f32 %v3007, %v3010
        %v3013 = vld [vmem:[%s11] sm:$0x3]
        %v3014 = vsel %vm2674, %v3012, 0.0
        %3015 = vadd.xlane.f32.xlu0 %v3014
        %v3016 = vpop.xlane.xlu0 %3015
        %v3017 = vmul.f32 %v3016, %v2684
        %v3018 = vsub.f32 %v3012, %v3017
        %v3019 = vmul.f32 %v3018, %v3018
        %v3020 = vsel %vm2674, %v3019, 0.0
        %3021 = vadd.xlane.f32.xlu0 %v3020
        %v3022 = vpop.xlane.xlu0 %3021
        %v3023 = vmul.f32 %v3022, %v2684
        %v3024 = vadd.f32 %v3023, 1e-05
        %v3025 = vrsqrt.pop %v3024
        %v3026 = vmul.f32 %v3025, %v3024
        %v3027 = vmul.f32 %v3026, %v3025
        %v3028 = vmul.f32 0.5, %v3027
        %v3029 = vsub.f32 1.5, %v3028
        %v3030 = vmul.f32 %v3025, %v3029
        %vm3031 = vweird.f32 %v3024
        %vm3032 = vweird.f32 %v3025
        %vm3033 = vmor %vm3031, %vm3032
        %v3034 = vsel %vm3033, %v3025, %v3030
        %v3035 = vmul.f32 %v3018, %v3034
        %v3036 = vperm.slane %v3013, 0
        %v3037 = vmul.f32 %v3035, %v3036
        %v3038 = vperm.slane %v3013, 1
        %v3039 = vadd.f32 %v3037, %v3038
        %v3040 = vld [vmem:[%s12] sm:$0xff]
        %v3041 = vld [vmem:[%s12 + $0x8] sm:$0xff]
        %v3042 = vld [vmem:[%s12 + $0x10] sm:$0xff]
        %v3043 = vld [vmem:[%s12 + $0x18] sm:$0xff]
        %v3044 = vld [vmem:[%s12 + $0x20] sm:$0xff]
        %v3045 = vld [vmem:[%s12 + $0x28] sm:$0xff]
        %v3046 = vld [vmem:[%s12 + $0x30] sm:$0xff]
        %v3047 = vld [vmem:[%s12 + $0x38] sm:$0xff]
        %v3048 = vpack.c.bf16 %v3039, %v3039
        %v3049 = vld [vmem:[%s13] sm:$0x3]
        %v3051 = vperm.slane %v3049, 0
        %v3052 = vperm.slane %v3049, 1
        %v3063 = vunpack.c.l.b16 %v3040
        %v3064 = vunpack.c.h.b16 %v3040
        %v3065 = vunpack.c.l.b16 %v3041
        %v3066 = vunpack.c.h.b16 %v3041
        %v3067 = vunpack.c.l.b16 %v3042
        %v3068 = vunpack.c.h.b16 %v3042
        %v3069 = vunpack.c.l.b16 %v3043
        %v3070 = vunpack.c.h.b16 %v3043
        %v3071 = vunpack.c.l.b16 %v3044
        %v3072 = vunpack.c.h.b16 %v3044
        %v3073 = vunpack.c.l.b16 %v3045
        %v3074 = vunpack.c.h.b16 %v3045
        %v3075 = vunpack.c.l.b16 %v3046
        %v3076 = vunpack.c.h.b16 %v3046
        %v3077 = vunpack.c.l.b16 %v3047
        %v3078 = vunpack.c.h.b16 %v3047
        %v3079 = vpack.c.b16 %v3065, %v3063
        %v3080 = vpack.c.b16 %v3066, %v3064
        %v3081 = vpack.c.b16 %v3069, %v3067
        %v3082 = vpack.c.b16 %v3070, %v3068
        %v3083 = vpack.c.b16 %v3073, %v3071
        %v3084 = vpack.c.b16 %v3074, %v3072
        %v3085 = vpack.c.b16 %v3077, %v3075
        %v3086 = vpack.c.b16 %v3078, %v3076
        %v3096 = vsel %vm2790, %v3048, 0
        %3098 = vmatpush.bf16.msra.mxu0 0
        %3099 = vmatpush.bf16.msra.mxu0 0
        %3100 = vmatpush.bf16.msra.mxu0 0
        %3101 = vmatpush.bf16.msra.mxu0 0
        %3102 = vmatpush.bf16.msra.mxu0 %v3085
        %3103 = vmatpush.bf16.msra.mxu0 %v3083
        %3104 = vmatpush.bf16.msra.mxu0 %v3081
        %3105 = vmatpush.bf16.msra.mxu0 %v3079
        %3106 = vmatmul.bf16.gmra.mxu0 %v3096
        %v3107 = vpop.f32.mrf.mxu0
        %v3108 = vadd.f32 %v3051, %v3107
        %v3109 = vpop.f32.mrf.mxu0
        %3110 = vdwg.mxu0
        %3111 = vmatpush.bf16.msra.mxu0 0
        %3112 = vmatpush.bf16.msra.mxu0 0
        %3113 = vmatpush.bf16.msra.mxu0 0
        %3114 = vmatpush.bf16.msra.mxu0 0
        %3115 = vmatpush.bf16.msra.mxu0 %v3086
        %3116 = vmatpush.bf16.msra.mxu0 %v3084
        %3117 = vmatpush.bf16.msra.mxu0 %v3082
        %3118 = vmatpush.bf16.msra.mxu0 %v3080
        %3119 = vmatmul.bf16.gmra.mxu0 %v3096
        %v3120 = vpop.f32.mrf.mxu0
        %v3121 = vadd.f32 %v3052, %v3120
        %v3122 = vpop.f32.mrf.mxu0
        %3123 = vdwg.mxu0
        %v3124 = vmul.f32 %v3108, 1.702
        %v3125 = vmul.f32 %v3121, 1.702
        %v3126 = vxor.u32 %v3124, 2147483648
        %v3127 = vxor.u32 %v3125, 2147483648
        %v3128 = vmul.f32 %v3126, 1.442695
        %v3129 = vpow.pop %v3128
        %v3130 = vmul.f32 %v3127, 1.442695
        %v3131 = vpow.pop %v3130
        %v3132 = vadd.f32 %v3129, 1.0
        %v3133 = vadd.f32 %v3131, 1.0
        %v3134 = vrcp.pop %v3132
        %v3135 = vmul.f32 %v3132, %v3134
        %v3136 = vsub.f32 1.0, %v3135
        %v3137 = vmul.f32 %v3134, %v3136
        %v3138 = vadd.f32 %v3134, %v3137
        %vm3139 = vweird.f32 %v3132
        %vm3140 = vweird.f32 %v3134
        %vm3141 = vmor %vm3139, %vm3140
        %v3142 = vsel %vm3141, %v3134, %v3138
        %v3143 = vand.u32 2147483647, %v3132
        %vm3144 = vcmp.eq.f32.partialorder %v3143, 8.507059e+37
        %v3145 = vand.u32 %v3132, 2147483648
        %v3146 = vor.u32 1.1754944e-38, %v3145
        %v3147 = vsel %vm3144, %v3146, %v3142
        %v3148 = vmul.f32 1.0, %v3147
        %v3149 = vrcp.pop %v3133
        %v3150 = vmul.f32 %v3133, %v3149
        %v3151 = vsub.f32 1.0, %v3150
        %v3152 = vmul.f32 %v3149, %v3151
        %v3153 = vadd.f32 %v3149, %v3152
        %vm3154 = vweird.f32 %v3133
        %vm3155 = vweird.f32 %v3149
        %vm3156 = vmor %vm3154, %vm3155
        %v3157 = vsel %vm3156, %v3149, %v3153
        %v3158 = vand.u32 2147483647, %v3133
        %vm3159 = vcmp.eq.f32.partialorder %v3158, 8.507059e+37
        %v3160 = vand.u32 %v3133, 2147483648
        %v3161 = vor.u32 1.1754944e-38, %v3160
        %v3162 = vsel %vm3159, %v3161, %v3157
        %v3163 = vmul.f32 1.0, %v3162
        %v3164 = vmul.f32 %v3108, %v3148
        %v3165 = vmul.f32 %v3121, %v3163
        %v3166 = vld [vmem:[%s14] sm:$0xf]
        %v3167 = vld [vmem:[%s14 + $0x4] sm:$0xf]
        %v3168 = vld [vmem:[%s14 + $0x8] sm:$0xf]
        %v3169 = vld [vmem:[%s14 + $0xc] sm:$0xf]
        %v3170 = vld [vmem:[%s14 + $0x10] sm:$0xf]
        %v3171 = vld [vmem:[%s14 + $0x14] sm:$0xf]
        %v3172 = vld [vmem:[%s14 + $0x18] sm:$0xf]
        %v3173 = vld [vmem:[%s14 + $0x1c] sm:$0xf]
        %v3174 = vld [vmem:[%s14 + $0x20] sm:$0xf]
        %v3175 = vld [vmem:[%s14 + $0x24] sm:$0xf]
        %v3176 = vld [vmem:[%s14 + $0x28] sm:$0xf]
        %v3177 = vld [vmem:[%s14 + $0x2c] sm:$0xf]
        %v3178 = vld [vmem:[%s14 + $0x30] sm:$0xf]
        %v3179 = vld [vmem:[%s14 + $0x34] sm:$0xf]
        %v3180 = vld [vmem:[%s14 + $0x38] sm:$0xf]
        %v3181 = vld [vmem:[%s14 + $0x3c] sm:$0xf]
        %v3182 = vld [vmem:[%s14 + $0x40] sm:$0xf]
        %v3183 = vld [vmem:[%s14 + $0x44] sm:$0xf]
        %v3184 = vld [vmem:[%s14 + $0x48] sm:$0xf]
        %v3185 = vld [vmem:[%s14 + $0x4c] sm:$0xf]
        %v3186 = vld [vmem:[%s14 + $0x50] sm:$0xf]
        %v3187 = vld [vmem:[%s14 + $0x54] sm:$0xf]
        %v3188 = vld [vmem:[%s14 + $0x58] sm:$0xf]
        %v3189 = vld [vmem:[%s14 + $0x5c] sm:$0xf]
        %v3190 = vld [vmem:[%s14 + $0x60] sm:$0xf]
        %v3191 = vld [vmem:[%s14 + $0x64] sm:$0xf]
        %v3192 = vld [vmem:[%s14 + $0x68] sm:$0xf]
        %v3193 = vld [vmem:[%s14 + $0x6c] sm:$0xf]
        %v3194 = vld [vmem:[%s14 + $0x70] sm:$0xf]
        %v3195 = vld [vmem:[%s14 + $0x74] sm:$0xf]
        %v3196 = vld [vmem:[%s14 + $0x78] sm:$0xf]
        %v3197 = vld [vmem:[%s14 + $0x7c] sm:$0xf]
        %v3198 = vpack.c.bf16 %v3164, %v3164
        %v3199 = vpack.c.bf16 %v3165, %v3165
        %v3232 = vunpack.c.l.b16 %v3166
        %v3233 = vunpack.c.l.b16 %v3167
        %v3234 = vunpack.c.l.b16 %v3168
        %v3235 = vunpack.c.l.b16 %v3169
        %v3236 = vunpack.c.l.b16 %v3170
        %v3237 = vunpack.c.l.b16 %v3171
        %v3238 = vunpack.c.l.b16 %v3172
        %v3239 = vunpack.c.l.b16 %v3173
        %v3240 = vunpack.c.l.b16 %v3174
        %v3241 = vunpack.c.l.b16 %v3175
        %v3242 = vunpack.c.l.b16 %v3176
        %v3243 = vunpack.c.l.b16 %v3177
        %v3244 = vunpack.c.l.b16 %v3178
        %v3245 = vunpack.c.l.b16 %v3179
        %v3246 = vunpack.c.l.b16 %v3180
        %v3247 = vunpack.c.l.b16 %v3181
        %v3248 = vunpack.c.l.b16 %v3182
        %v3249 = vunpack.c.l.b16 %v3183
        %v3250 = vunpack.c.l.b16 %v3184
        %v3251 = vunpack.c.l.b16 %v3185
        %v3252 = vunpack.c.l.b16 %v3186
        %v3253 = vunpack.c.l.b16 %v3187
        %v3254 = vunpack.c.l.b16 %v3188
        %v3255 = vunpack.c.l.b16 %v3189
        %v3256 = vunpack.c.l.b16 %v3190
        %v3257 = vunpack.c.l.b16 %v3191
        %v3258 = vunpack.c.l.b16 %v3192
        %v3259 = vunpack.c.l.b16 %v3193
        %v3260 = vunpack.c.l.b16 %v3194
        %v3261 = vunpack.c.l.b16 %v3195
        %v3262 = vunpack.c.l.b16 %v3196
        %v3263 = vunpack.c.l.b16 %v3197
        %v3264 = vpack.c.b16 %v3233, %v3232
        %v3265 = vpack.c.b16 %v3235, %v3234
        %v3266 = vpack.c.b16 %v3237, %v3236
        %v3267 = vpack.c.b16 %v3239, %v3238
        %v3268 = vpack.c.b16 %v3241, %v3240
        %v3269 = vpack.c.b16 %v3243, %v3242
        %v3270 = vpack.c.b16 %v3245, %v3244
        %v3271 = vpack.c.b16 %v3247, %v3246
        %v3272 = vpack.c.b16 %v3249, %v3248
        %v3273 = vpack.c.b16 %v3251, %v3250
        %v3274 = vpack.c.b16 %v3253, %v3252
        %v3275 = vpack.c.b16 %v3255, %v3254
        %v3276 = vpack.c.b16 %v3257, %v3256
        %v3277 = vpack.c.b16 %v3259, %v3258
        %v3278 = vpack.c.b16 %v3261, %v3260
        %v3279 = vpack.c.b16 %v3263, %v3262
        %3296 = vmatpush.bf16.msra.mxu0 %v3271
        %3297 = vmatpush.bf16.msra.mxu0 %v3270
        %3298 = vmatpush.bf16.msra.mxu0 %v3269
        %3299 = vmatpush.bf16.msra.mxu0 %v3268
        %3300 = vmatpush.bf16.msra.mxu0 %v3267
        %3301 = vmatpush.bf16.msra.mxu0 %v3266
        %3302 = vmatpush.bf16.msra.mxu0 %v3265
        %3303 = vmatpush.bf16.msra.mxu0 %v3264
        %3304 = vmatmul.bf16.gmra.mxu0 %v3198
        %v3305 = vpop.f32.mrf.mxu0
        %v3306 = vadd.f32 0.0, %v3305
        %v3307 = vpop.f32.mrf.mxu0
        %3308 = vdwg.mxu0
        %3309 = vmatpush.bf16.msra.mxu0 %v3279
        %3310 = vmatpush.bf16.msra.mxu0 %v3278
        %3311 = vmatpush.bf16.msra.mxu0 %v3277
        %3312 = vmatpush.bf16.msra.mxu0 %v3276
        %3313 = vmatpush.bf16.msra.mxu0 %v3275
        %3314 = vmatpush.bf16.msra.mxu0 %v3274
        %3315 = vmatpush.bf16.msra.mxu0 %v3273
        %3316 = vmatpush.bf16.msra.mxu0 %v3272
        %3317 = vmatmul.bf16.gmra.mxu0 %v3199
        %v3318 = vpop.f32.mrf.mxu0
        %v3319 = vadd.f32 %v3306, %v3318
        %v3320 = vpop.f32.mrf.mxu0
        %3321 = vdwg.mxu0
        %v3322 = vadd.f32 %v3012, %v3319
        %v3323 = vld [vmem:[%s15] sm:$0x1]
        %v3325 = vperm.slane %v3323, 0
        %v3327 = vadd.f32 %v3322, %v3325
        %s3328 = scalar_lea.vmem %s6, 2
        %v3329 = vld [vmem:[%s3328] sm:$0x3]
        %v3330 = vsel %vm2674, %v3327, 0.0
        %3331 = vadd.xlane.f32.xlu0 %v3330
        %v3332 = vpop.xlane.xlu0 %3331
        %v3333 = vmul.f32 %v3332, %v2684
        %v3334 = vsub.f32 %v3327, %v3333
        %v3335 = vmul.f32 %v3334, %v3334
        %v3336 = vsel %vm2674, %v3335, 0.0
        %3337 = vadd.xlane.f32.xlu0 %v3336
        %v3338 = vpop.xlane.xlu0 %3337
        %v3339 = vmul.f32 %v3338, %v2684
        %v3340 = vadd.f32 %v3339, 1e-05
        %v3341 = vrsqrt.pop %v3340
        %v3342 = vmul.f32 %v3341, %v3340
        %v3343 = vmul.f32 %v3342, %v3341
        %v3344 = vmul.f32 0.5, %v3343
        %v3345 = vsub.f32 1.5, %v3344
        %v3346 = vmul.f32 %v3341, %v3345
        %vm3347 = vweird.f32 %v3340
        %vm3348 = vweird.f32 %v3341
        %vm3349 = vmor %vm3347, %vm3348
        %v3350 = vsel %vm3349, %v3341, %v3346
        %v3351 = vmul.f32 %v3334, %v3350
        %v3352 = vperm.slane %v3329, 0
        %v3353 = vmul.f32 %v3351, %v3352
        %v3354 = vperm.slane %v3329, 1
        %v3355 = vadd.f32 %v3353, %v3354
        %s3356 = scalar_lea.vmem %s7, 64
        %v3357 = vld [vmem:[%s3356] sm:$0xff]
        %v3358 = vld [vmem:[%s3356 + $0x8] sm:$0xff]
        %v3359 = vld [vmem:[%s3356 + $0x10] sm:$0xff]
        %v3360 = vld [vmem:[%s3356 + $0x18] sm:$0xff]
        %v3361 = vld [vmem:[%s3356 + $0x20] sm:$0xff]
        %v3362 = vld [vmem:[%s3356 + $0x28] sm:$0xff]
        %v3363 = vld [vmem:[%s3356 + $0x30] sm:$0xff]
        %v3364 = vld [vmem:[%s3356 + $0x38] sm:$0xff]
        %v3365 = vpack.c.bf16 %v3355, %v3355
        %s3366 = scalar_lea.vmem %s8, 2
        %v3367 = vld [vmem:[%s3366] sm:$0x3]
        %v3369 = vperm.slane %v3367, 0
        %v3370 = vperm.slane %v3367, 1
        %v3381 = vunpack.c.l.b16 %v3357
        %v3382 = vunpack.c.h.b16 %v3357
        %v3383 = vunpack.c.l.b16 %v3358
        %v3384 = vunpack.c.h.b16 %v3358
        %v3385 = vunpack.c.l.b16 %v3359
        %v3386 = vunpack.c.h.b16 %v3359
        %v3387 = vunpack.c.l.b16 %v3360
        %v3388 = vunpack.c.h.b16 %v3360
        %v3389 = vunpack.c.l.b16 %v3361
        %v3390 = vunpack.c.h.b16 %v3361
        %v3391 = vunpack.c.l.b16 %v3362
        %v3392 = vunpack.c.h.b16 %v3362
        %v3393 = vunpack.c.l.b16 %v3363
        %v3394 = vunpack.c.h.b16 %v3363
        %v3395 = vunpack.c.l.b16 %v3364
        %v3396 = vunpack.c.h.b16 %v3364
        %v3397 = vpack.c.b16 %v3383, %v3381
        %v3398 = vpack.c.b16 %v3384, %v3382
        %v3399 = vpack.c.b16 %v3387, %v3385
        %v3400 = vpack.c.b16 %v3388, %v3386
        %v3401 = vpack.c.b16 %v3391, %v3389
        %v3402 = vpack.c.b16 %v3392, %v3390
        %v3403 = vpack.c.b16 %v3395, %v3393
        %v3404 = vpack.c.b16 %v3396, %v3394
        %v3414 = vsel %vm2790, %v3365, 0
        %3416 = vmatpush.bf16.msra.mxu0 0
        %3417 = vmatpush.bf16.msra.mxu0 0
        %3418 = vmatpush.bf16.msra.mxu0 0
        %3419 = vmatpush.bf16.msra.mxu0 0
        %3420 = vmatpush.bf16.msra.mxu0 %v3403
        %3421 = vmatpush.bf16.msra.mxu0 %v3401
        %3422 = vmatpush.bf16.msra.mxu0 %v3399
        %3423 = vmatpush.bf16.msra.mxu0 %v3397
        %3424 = vmatmul.bf16.gmra.mxu0 %v3414
        %v3425 = vpop.f32.mrf.mxu0
        %v3426 = vadd.f32 %v3369, %v3425
        %v3427 = vpop.f32.mrf.mxu0
        %3428 = vdwg.mxu0
        %3429 = vmatpush.bf16.msra.mxu0 0
        %3430 = vmatpush.bf16.msra.mxu0 0
        %3431 = vmatpush.bf16.msra.mxu0 0
        %3432 = vmatpush.bf16.msra.mxu0 0
        %3433 = vmatpush.bf16.msra.mxu0 %v3404
        %3434 = vmatpush.bf16.msra.mxu0 %v3402
        %3435 = vmatpush.bf16.msra.mxu0 %v3400
        %3436 = vmatpush.bf16.msra.mxu0 %v3398
        %3437 = vmatmul.bf16.gmra.mxu0 %v3414
        %v3438 = vpop.f32.mrf.mxu0
        %v3439 = vadd.f32 %v3370, %v3438
        %v3440 = vpop.f32.mrf.mxu0
        %3441 = vdwg.mxu0
        %s3442 = scalar_lea.vmem %s9, 32
        %v3443 = vld [vmem:[%s3442] sm:$0xf]
        %v3444 = vld [vmem:[%s3442 + $0x4] sm:$0xf]
        %v3445 = vld [vmem:[%s3442 + $0x8] sm:$0xf]
        %v3446 = vld [vmem:[%s3442 + $0xc] sm:$0xf]
        %v3447 = vld [vmem:[%s3442 + $0x10] sm:$0xf]
        %v3448 = vld [vmem:[%s3442 + $0x14] sm:$0xf]
        %v3449 = vld [vmem:[%s3442 + $0x18] sm:$0xf]
        %v3450 = vld [vmem:[%s3442 + $0x1c] sm:$0xf]
        %v3451 = vpack.c.bf16 %v3426, %v3426
        %3453 = vrot.lane.b32.xlu0 %v3451, 64
        %v3454 = vpop.permute.xlu0 %3453
        %v3456 = vsel %vm2832, %v3451, 0
        %v3459 = vsel %vm2832, %v3454, 0
        %3461 = vmatpush.bf16.xpose.msra.mxu0 0
        %3462 = vmatpush.bf16.xpose.msra.mxu0 0
        %3463 = vmatpush.bf16.xpose.msra.mxu0 0
        %3464 = vmatpush.bf16.xpose.msra.mxu0 0
        %3465 = vmatpush.bf16.xpose.msra.mxu0 0
        %3466 = vmatpush.bf16.xpose.msra.mxu0 0
        %3467 = vmatpush.bf16.xpose.msra.mxu0 0
        %3468 = vmatpush.bf16.xpose.msra.mxu0 %v3459
        %3469 = vmatmul.bf16.gmra.mxu0 %v3456
        %v3470 = vpop.f32.mrf.mxu0
        %v3471 = vadd.f32 0.0, %v3470
        %v3472 = vpop.f32.mrf.mxu0
        %3473 = vdwg.mxu0
        %v3474 = vmul.f32 %v3471, 0.17677669
        %v3475 = vsel %vm2853, %v3474, -inf
        %3476 = vmax.xlane.f32.xlu0 %v3475
        %v3477 = vpop.xlane.xlu0 %3476
        %v3478 = vsub.f32 %v3474, %v3477
        %v3479 = vmul.f32 %v3478, 1.442695
        %v3480 = vpow.pop %v3479
        %v3481 = vsel %vm2853, %v3480, 0.0
        %3482 = vadd.xlane.f32.xlu0 %v3481
        %v3483 = vpop.xlane.xlu0 %3482
        %v3484 = vrcp.pop %v3483
        %v3485 = vpack.c.bf16 %v3480, %v3480
        %v3486 = vpack.c.bf16 %v3439, %v3439
        %v3488 = vsel %vm2866, %v3485, 0
        %v3491 = vand.u32 %v3486, %v2873
        %3493 = vmatpush.bf16.msra.mxu0 0
        %3494 = vmatpush.bf16.msra.mxu0 0
        %3495 = vmatpush.bf16.msra.mxu0 0
        %3496 = vmatpush.bf16.msra.mxu0 0
        %3497 = vmatpush.bf16.msra.mxu0 0
        %3498 = vmatpush.bf16.msra.mxu0 0
        %3499 = vmatpush.bf16.msra.mxu0 0
        %3500 = vmatpush.bf16.msra.mxu0 %v3491
        %3501 = vmatmul.bf16.gmra.mxu0 %v3488
        %v3502 = vpop.f32.mrf.mxu0
        %v3503 = vadd.f32 0.0, %v3502
        %v3504 = vpop.f32.mrf.mxu0
        %3505 = vdwg.mxu0
        %v3506 = vmul.f32 %v3503, %v3484
        %v3507 = vpack.c.bf16 %v3506, %v3506
        %3508 = vrot.lane.b32.xlu0 %v3451, 96
        %v3509 = vpop.permute.xlu0 %3508
        %3510 = vrot.lane.b32.xlu0 %v3451, 32
        %v3511 = vpop.permute.xlu0 %3510
        %v3513 = vsel %vm2832, %v3509, 0
        %v3516 = vsel %vm2832, %v3511, 0
        %3518 = vmatpush.bf16.xpose.msra.mxu0 0
        %3519 = vmatpush.bf16.xpose.msra.mxu0 0
        %3520 = vmatpush.bf16.xpose.msra.mxu0 0
        %3521 = vmatpush.bf16.xpose.msra.mxu0 0
        %3522 = vmatpush.bf16.xpose.msra.mxu0 0
        %3523 = vmatpush.bf16.xpose.msra.mxu0 0
        %3524 = vmatpush.bf16.xpose.msra.mxu0 0
        %3525 = vmatpush.bf16.xpose.msra.mxu0 %v3516
        %3526 = vmatmul.bf16.gmra.mxu0 %v3513
        %v3527 = vpop.f32.mrf.mxu0
        %v3528 = vadd.f32 0.0, %v3527
        %v3529 = vpop.f32.mrf.mxu0
        %3530 = vdwg.mxu0
        %v3531 = vmul.f32 %v3528, 0.17677669
        %v3532 = vsel %vm2853, %v3531, -inf
        %3533 = vmax.xlane.f32.xlu0 %v3532
        %v3534 = vpop.xlane.xlu0 %3533
        %v3535 = vsub.f32 %v3531, %v3534
        %v3536 = vmul.f32 %v3535, 1.442695
        %v3537 = vpow.pop %v3536
        %v3538 = vsel %vm2853, %v3537, 0.0
        %3539 = vadd.xlane.f32.xlu0 %v3538
        %v3540 = vpop.xlane.xlu0 %3539
        %v3541 = vrcp.pop %v3540
        %v3542 = vpack.c.bf16 %v3537, %v3537
        %3544 = vrot.lane.b32.xlu0 %v3486, 96
        %v3545 = vpop.permute.xlu0 %3544
        %v3547 = vsel %vm2866, %v3542, 0
        %v3550 = vand.u32 %v3545, %v2873
        %3552 = vmatpush.bf16.msra.mxu0 0
        %3553 = vmatpush.bf16.msra.mxu0 0
        %3554 = vmatpush.bf16.msra.mxu0 0
        %3555 = vmatpush.bf16.msra.mxu0 0
        %3556 = vmatpush.bf16.msra.mxu0 0
        %3557 = vmatpush.bf16.msra.mxu0 0
        %3558 = vmatpush.bf16.msra.mxu0 0
        %3559 = vmatpush.bf16.msra.mxu0 %v3550
        %3560 = vmatmul.bf16.gmra.mxu0 %v3547
        %v3561 = vpop.f32.mrf.mxu0
        %v3562 = vadd.f32 0.0, %v3561
        %v3563 = vpop.f32.mrf.mxu0
        %3564 = vdwg.mxu0
        %v3565 = vmul.f32 %v3562, %v3541
        %v3566 = vpack.c.bf16 %v3565, %v3565
        %v3571 = vunpack.c.l.b16 %v3447
        %v3572 = vunpack.c.l.b16 %v3448
        %v3573 = vunpack.c.l.b16 %v3449
        %v3574 = vunpack.c.l.b16 %v3450
        %v3575 = vpack.c.b16 %v3572, %v3571
        %v3576 = vpack.c.b16 %v3574, %v3573
        %v3580 = vsel %vm2832, %v3566, 0
        %3582 = vmatpush.bf16.msra.mxu0 0
        %3583 = vmatpush.bf16.msra.mxu0 0
        %3584 = vmatpush.bf16.msra.mxu0 0
        %3585 = vmatpush.bf16.msra.mxu0 0
        %3586 = vmatpush.bf16.msra.mxu0 0
        %3587 = vmatpush.bf16.msra.mxu0 0
        %3588 = vmatpush.bf16.msra.mxu0 %v3576
        %3589 = vmatpush.bf16.msra.mxu0 %v3575
        %3590 = vmatmul.bf16.gmra.mxu0 %v3580
        %v3591 = vpop.f32.mrf.mxu0
        %v3592 = vadd.f32 0.0, %v3591
        %v3593 = vpop.f32.mrf.mxu0
        %3594 = vdwg.mxu0
        %v3599 = vunpack.c.l.b16 %v3443
        %v3600 = vunpack.c.l.b16 %v3444
        %v3601 = vunpack.c.l.b16 %v3445
        %v3602 = vunpack.c.l.b16 %v3446
        %v3603 = vpack.c.b16 %v3600, %v3599
        %v3604 = vpack.c.b16 %v3602, %v3601
        %v3608 = vsel %vm2832, %v3507, 0
        %3610 = vmatpush.bf16.msra.mxu0 0
        %3611 = vmatpush.bf16.msra.mxu0 0
        %3612 = vmatpush.bf16.msra.mxu0 0
        %3613 = vmatpush.bf16.msra.mxu0 0
        %3614 = vmatpush.bf16.msra.mxu0 0
        %3615 = vmatpush.bf16.msra.mxu0 0
        %3616 = vmatpush.bf16.msra.mxu0 %v3604
        %3617 = vmatpush.bf16.msra.mxu0 %v3603
        %3618 = vmatmul.bf16.gmra.mxu0 %v3608
        %v3619 = vpop.f32.mrf.mxu0
        %v3620 = vadd.f32 %v3592, %v3619
        %v3621 = vpop.f32.mrf.mxu0
        %3622 = vdwg.mxu0
        %v3623 = vadd.f32 %v3327, %v3620
        %s3624 = scalar_lea.vmem %s10, 1
        %v3625 = vld [vmem:[%s3624] sm:$0x1]
        %v3627 = vperm.slane %v3625, 0
        %v3629 = vadd.f32 %v3623, %v3627
        %s3630 = scalar_lea.vmem %s11, 2
        %v3631 = vld [vmem:[%s3630] sm:$0x3]
        %v3632 = vsel %vm2674, %v3629, 0.0
        %3633 = vadd.xlane.f32.xlu0 %v3632
        %v3634 = vpop.xlane.xlu0 %3633
        %v3635 = vmul.f32 %v3634, %v2684
        %v3636 = vsub.f32 %v3629, %v3635
        %v3637 = vmul.f32 %v3636, %v3636
        %v3638 = vsel %vm2674, %v3637, 0.0
        %3639 = vadd.xlane.f32.xlu0 %v3638
        %v3640 = vpop.xlane.xlu0 %3639
        %v3641 = vmul.f32 %v3640, %v2684
        %v3642 = vadd.f32 %v3641, 1e-05
        %v3643 = vrsqrt.pop %v3642
        %v3644 = vmul.f32 %v3643, %v3642
        %v3645 = vmul.f32 %v3644, %v3643
        %v3646 = vmul.f32 0.5, %v3645
        %v3647 = vsub.f32 1.5, %v3646
        %v3648 = vmul.f32 %v3643, %v3647
        %vm3649 = vweird.f32 %v3642
        %vm3650 = vweird.f32 %v3643
        %vm3651 = vmor %vm3649, %vm3650
        %v3652 = vsel %vm3651, %v3643, %v3648
        %v3653 = vmul.f32 %v3636, %v3652
        %v3654 = vperm.slane %v3631, 0
        %v3655 = vmul.f32 %v3653, %v3654
        %v3656 = vperm.slane %v3631, 1
        %v3657 = vadd.f32 %v3655, %v3656
        %s3658 = scalar_lea.vmem %s12, 64
        %v3659 = vld [vmem:[%s3658] sm:$0xff]
        %v3660 = vld [vmem:[%s3658 + $0x8] sm:$0xff]
        %v3661 = vld [vmem:[%s3658 + $0x10] sm:$0xff]
        %v3662 = vld [vmem:[%s3658 + $0x18] sm:$0xff]
        %v3663 = vld [vmem:[%s3658 + $0x20] sm:$0xff]
        %v3664 = vld [vmem:[%s3658 + $0x28] sm:$0xff]
        %v3665 = vld [vmem:[%s3658 + $0x30] sm:$0xff]
        %v3666 = vld [vmem:[%s3658 + $0x38] sm:$0xff]
        %v3667 = vpack.c.bf16 %v3657, %v3657
        %s3668 = scalar_lea.vmem %s13, 2
        %v3669 = vld [vmem:[%s3668] sm:$0x3]
        %v3671 = vperm.slane %v3669, 0
        %v3672 = vperm.slane %v3669, 1
        %v3683 = vunpack.c.l.b16 %v3659
        %v3684 = vunpack.c.h.b16 %v3659
        %v3685 = vunpack.c.l.b16 %v3660
        %v3686 = vunpack.c.h.b16 %v3660
        %v3687 = vunpack.c.l.b16 %v3661
        %v3688 = vunpack.c.h.b16 %v3661
        %v3689 = vunpack.c.l.b16 %v3662
        %v3690 = vunpack.c.h.b16 %v3662
        %v3691 = vunpack.c.l.b16 %v3663
        %v3692 = vunpack.c.h.b16 %v3663
        %v3693 = vunpack.c.l.b16 %v3664
        %v3694 = vunpack.c.h.b16 %v3664
        %v3695 = vunpack.c.l.b16 %v3665
        %v3696 = vunpack.c.h.b16 %v3665
        %v3697 = vunpack.c.l.b16 %v3666
        %v3698 = vunpack.c.h.b16 %v3666
        %v3699 = vpack.c.b16 %v3685, %v3683
        %v3700 = vpack.c.b16 %v3686, %v3684
        %v3701 = vpack.c.b16 %v3689, %v3687
        %v3702 = vpack.c.b16 %v3690, %v3688
        %v3703 = vpack.c.b16 %v3693, %v3691
        %v3704 = vpack.c.b16 %v3694, %v3692
        %v3705 = vpack.c.b16 %v3697, %v3695
        %v3706 = vpack.c.b16 %v3698, %v3696
        %v3716 = vsel %vm2790, %v3667, 0
        %3718 = vmatpush.bf16.msra.mxu0 0
        %3719 = vmatpush.bf16.msra.mxu0 0
        %3720 = vmatpush.bf16.msra.mxu0 0
        %3721 = vmatpush.bf16.msra.mxu0 0
        %3722 = vmatpush.bf16.msra.mxu0 %v3705
        %3723 = vmatpush.bf16.msra.mxu0 %v3703
        %3724 = vmatpush.bf16.msra.mxu0 %v3701
        %3725 = vmatpush.bf16.msra.mxu0 %v3699
        %3726 = vmatmul.bf16.gmra.mxu0 %v3716
        %v3727 = vpop.f32.mrf.mxu0
        %v3728 = vadd.f32 %v3671, %v3727
        %v3729 = vpop.f32.mrf.mxu0
        %3730 = vdwg.mxu0
        %3731 = vmatpush.bf16.msra.mxu0 0
        %3732 = vmatpush.bf16.msra.mxu0 0
        %3733 = vmatpush.bf16.msra.mxu0 0
        %3734 = vmatpush.bf16.msra.mxu0 0
        %3735 = vmatpush.bf16.msra.mxu0 %v3706
        %3736 = vmatpush.bf16.msra.mxu0 %v3704
        %3737 = vmatpush.bf16.msra.mxu0 %v3702
        %3738 = vmatpush.bf16.msra.mxu0 %v3700
        %3739 = vmatmul.bf16.gmra.mxu0 %v3716
        %v3740 = vpop.f32.mrf.mxu0
        %v3741 = vadd.f32 %v3672, %v3740
        %v3742 = vpop.f32.mrf.mxu0
        %3743 = vdwg.mxu0
        %v3744 = vmul.f32 %v3728, 1.702
        %v3745 = vmul.f32 %v3741, 1.702
        %v3746 = vxor.u32 %v3744, 2147483648
        %v3747 = vxor.u32 %v3745, 2147483648
        %v3748 = vmul.f32 %v3746, 1.442695
        %v3749 = vpow.pop %v3748
        %v3750 = vmul.f32 %v3747, 1.442695
        %v3751 = vpow.pop %v3750
        %v3752 = vadd.f32 %v3749, 1.0
        %v3753 = vadd.f32 %v3751, 1.0
        %v3754 = vrcp.pop %v3752
        %v3755 = vmul.f32 %v3752, %v3754
        %v3756 = vsub.f32 1.0, %v3755
        %v3757 = vmul.f32 %v3754, %v3756
        %v3758 = vadd.f32 %v3754, %v3757
        %vm3759 = vweird.f32 %v3752
        %vm3760 = vweird.f32 %v3754
        %vm3761 = vmor %vm3759, %vm3760
        %v3762 = vsel %vm3761, %v3754, %v3758
        %v3763 = vand.u32 2147483647, %v3752
        %vm3764 = vcmp.eq.f32.partialorder %v3763, 8.507059e+37
        %v3765 = vand.u32 %v3752, 2147483648
        %v3766 = vor.u32 1.1754944e-38, %v3765
        %v3767 = vsel %vm3764, %v3766, %v3762
        %v3768 = vmul.f32 1.0, %v3767
        %v3769 = vrcp.pop %v3753
        %v3770 = vmul.f32 %v3753, %v3769
        %v3771 = vsub.f32 1.0, %v3770
        %v3772 = vmul.f32 %v3769, %v3771
        %v3773 = vadd.f32 %v3769, %v3772
        %vm3774 = vweird.f32 %v3753
        %vm3775 = vweird.f32 %v3769
        %vm3776 = vmor %vm3774, %vm3775
        %v3777 = vsel %vm3776, %v3769, %v3773
        %v3778 = vand.u32 2147483647, %v3753
        %vm3779 = vcmp.eq.f32.partialorder %v3778, 8.507059e+37
        %v3780 = vand.u32 %v3753, 2147483648
        %v3781 = vor.u32 1.1754944e-38, %v3780
        %v3782 = vsel %vm3779, %v3781, %v3777
        %v3783 = vmul.f32 1.0, %v3782
        %v3784 = vmul.f32 %v3728, %v3768
        %v3785 = vmul.f32 %v3741, %v3783
        %s3786 = scalar_lea.vmem %s14, 128
        %v3787 = vld [vmem:[%s3786] sm:$0xf]
        %v3788 = vld [vmem:[%s3786 + $0x4] sm:$0xf]
        %v3789 = vld [vmem:[%s3786 + $0x8] sm:$0xf]
        %v3790 = vld [vmem:[%s3786 + $0xc] sm:$0xf]
        %v3791 = vld [vmem:[%s3786 + $0x10] sm:$0xf]
        %v3792 = vld [vmem:[%s3786 + $0x14] sm:$0xf]
        %v3793 = vld [vmem:[%s3786 + $0x18] sm:$0xf]
        %v3794 = vld [vmem:[%s3786 + $0x1c] sm:$0xf]
        %v3795 = vld [vmem:[%s3786 + $0x20] sm:$0xf]
        %v3796 = vld [vmem:[%s3786 + $0x24] sm:$0xf]
        %v3797 = vld [vmem:[%s3786 + $0x28] sm:$0xf]
        %v3798 = vld [vmem:[%s3786 + $0x2c] sm:$0xf]
        %v3799 = vld [vmem:[%s3786 + $0x30] sm:$0xf]
        %v3800 = vld [vmem:[%s3786 + $0x34] sm:$0xf]
        %v3801 = vld [vmem:[%s3786 + $0x38] sm:$0xf]
        %v3802 = vld [vmem:[%s3786 + $0x3c] sm:$0xf]
        %v3803 = vld [vmem:[%s3786 + $0x40] sm:$0xf]
        %v3804 = vld [vmem:[%s3786 + $0x44] sm:$0xf]
        %v3805 = vld [vmem:[%s3786 + $0x48] sm:$0xf]
        %v3806 = vld [vmem:[%s3786 + $0x4c] sm:$0xf]
        %v3807 = vld [vmem:[%s3786 + $0x50] sm:$0xf]
        %v3808 = vld [vmem:[%s3786 + $0x54] sm:$0xf]
        %v3809 = vld [vmem:[%s3786 + $0x58] sm:$0xf]
        %v3810 = vld [vmem:[%s3786 + $0x5c] sm:$0xf]
        %v3811 = vld [vmem:[%s3786 + $0x60] sm:$0xf]
        %v3812 = vld [vmem:[%s3786 + $0x64] sm:$0xf]
        %v3813 = vld [vmem:[%s3786 + $0x68] sm:$0xf]
        %v3814 = vld [vmem:[%s3786 + $0x6c] sm:$0xf]
        %v3815 = vld [vmem:[%s3786 + $0x70] sm:$0xf]
        %v3816 = vld [vmem:[%s3786 + $0x74] sm:$0xf]
        %v3817 = vld [vmem:[%s3786 + $0x78] sm:$0xf]
        %v3818 = vld [vmem:[%s3786 + $0x7c] sm:$0xf]
        %v3819 = vpack.c.bf16 %v3784, %v3784
        %v3820 = vpack.c.bf16 %v3785, %v3785
        %v3853 = vunpack.c.l.b16 %v3787
        %v3854 = vunpack.c.l.b16 %v3788
        %v3855 = vunpack.c.l.b16 %v3789
        %v3856 = vunpack.c.l.b16 %v3790
        %v3857 = vunpack.c.l.b16 %v3791
        %v3858 = vunpack.c.l.b16 %v3792
        %v3859 = vunpack.c.l.b16 %v3793
        %v3860 = vunpack.c.l.b16 %v3794
        %v3861 = vunpack.c.l.b16 %v3795
        %v3862 = vunpack.c.l.b16 %v3796
        %v3863 = vunpack.c.l.b16 %v3797
        %v3864 = vunpack.c.l.b16 %v3798
        %v3865 = vunpack.c.l.b16 %v3799
        %v3866 = vunpack.c.l.b16 %v3800
        %v3867 = vunpack.c.l.b16 %v3801
        %v3868 = vunpack.c.l.b16 %v3802
        %v3869 = vunpack.c.l.b16 %v3803
        %v3870 = vunpack.c.l.b16 %v3804
        %v3871 = vunpack.c.l.b16 %v3805
        %v3872 = vunpack.c.l.b16 %v3806
        %v3873 = vunpack.c.l.b16 %v3807
        %v3874 = vunpack.c.l.b16 %v3808
        %v3875 = vunpack.c.l.b16 %v3809
        %v3876 = vunpack.c.l.b16 %v3810
        %v3877 = vunpack.c.l.b16 %v3811
        %v3878 = vunpack.c.l.b16 %v3812
        %v3879 = vunpack.c.l.b16 %v3813
        %v3880 = vunpack.c.l.b16 %v3814
        %v3881 = vunpack.c.l.b16 %v3815
        %v3882 = vunpack.c.l.b16 %v3816
        %v3883 = vunpack.c.l.b16 %v3817
        %v3884 = vunpack.c.l.b16 %v3818
        %v3885 = vpack.c.b16 %v3854, %v3853
        %v3886 = vpack.c.b16 %v3856, %v3855
        %v3887 = vpack.c.b16 %v3858, %v3857
        %v3888 = vpack.c.b16 %v3860, %v3859
        %v3889 = vpack.c.b16 %v3862, %v3861
        %v3890 = vpack.c.b16 %v3864, %v3863
        %v3891 = vpack.c.b16 %v3866, %v3865
        %v3892 = vpack.c.b16 %v3868, %v3867
        %v3893 = vpack.c.b16 %v3870, %v3869
        %v3894 = vpack.c.b16 %v3872, %v3871
        %v3895 = vpack.c.b16 %v3874, %v3873
        %v3896 = vpack.c.b16 %v3876, %v3875
        %v3897 = vpack.c.b16 %v3878, %v3877
        %v3898 = vpack.c.b16 %v3880, %v3879
        %v3899 = vpack.c.b16 %v3882, %v3881
        %v3900 = vpack.c.b16 %v3884, %v3883
        %3917 = vmatpush.bf16.msra.mxu0 %v3892
        %3918 = vmatpush.bf16.msra.mxu0 %v3891
        %3919 = vmatpush.bf16.msra.mxu0 %v3890
        %3920 = vmatpush.bf16.msra.mxu0 %v3889
        %3921 = vmatpush.bf16.msra.mxu0 %v3888
        %3922 = vmatpush.bf16.msra.mxu0 %v3887
        %3923 = vmatpush.bf16.msra.mxu0 %v3886
        %3924 = vmatpush.bf16.msra.mxu0 %v3885
        %3925 = vmatmul.bf16.gmra.mxu0 %v3819
        %v3926 = vpop.f32.mrf.mxu0
        %v3927 = vadd.f32 0.0, %v3926
        %v3928 = vpop.f32.mrf.mxu0
        %3929 = vdwg.mxu0
        %3930 = vmatpush.bf16.msra.mxu0 %v3900
        %3931 = vmatpush.bf16.msra.mxu0 %v3899
        %3932 = vmatpush.bf16.msra.mxu0 %v3898
        %3933 = vmatpush.bf16.msra.mxu0 %v3897
        %3934 = vmatpush.bf16.msra.mxu0 %v3896
        %3935 = vmatpush.bf16.msra.mxu0 %v3895
        %3936 = vmatpush.bf16.msra.mxu0 %v3894
        %3937 = vmatpush.bf16.msra.mxu0 %v3893
        %3938 = vmatmul.bf16.gmra.mxu0 %v3820
        %v3939 = vpop.f32.mrf.mxu0
        %v3940 = vadd.f32 %v3927, %v3939
        %v3941 = vpop.f32.mrf.mxu0
        %3942 = vdwg.mxu0
        %v3943 = vadd.f32 %v3629, %v3940
        %s3944 = scalar_lea.vmem %s15, 1
        %v3945 = vld [vmem:[%s3944] sm:$0x1]
        %v3947 = vperm.slane %v3945, 0
        %v3949 = vadd.f32 %v3943, %v3947
        %v3950 = vld [vmem:[%s16] sm:$0x3]
        %vm3951 = vcmask 516096
        %v3952 = vsel %vm3951, %v3949, 0.0
        %3953 = vadd.xlane.f32.xlu0 %v3952
        %v3954 = vpop.xlane.xlu0 %3953
        %v3955 = vmul.f32 %v3954, %v2684
        %v3956 = vsub.f32 %v3949, %v3955
        %v3957 = vmul.f32 %v3956, %v3956
        %v3958 = vsel %vm3951, %v3957, 0.0
        %3959 = vadd.xlane.f32.xlu0 %v3958
        %v3960 = vpop.xlane.xlu0 %3959
        %v3961 = vmul.f32 %v3960, %v2684
        %v3962 = vadd.f32 %v3961, 1e-05
        %v3963 = vrsqrt.pop %v3962
        %v3964 = vmul.f32 %v3963, %v3962
        %v3965 = vmul.f32 %v3964, %v3963
        %v3966 = vmul.f32 0.5, %v3965
        %v3967 = vsub.f32 1.5, %v3966
        %v3968 = vmul.f32 %v3963, %v3967
        %vm3969 = vweird.f32 %v3962
        %vm3970 = vweird.f32 %v3963
        %vm3971 = vmor %vm3969, %vm3970
        %v3972 = vsel %vm3971, %v3963, %v3968
        %v3973 = vmul.f32 %v3956, %v3972
        %v3974 = vmul.f32 %v3973, %v3950
        %v3976 = vrot.slane %v3950, 1
        %v3978 = vadd.f32 %v3974, %v3976
        %v3979 = vld [vmem:[%s17] sm:$0xf]
        %v3980 = vld [vmem:[%s17 + $0x4] sm:$0xf]
        %v3981 = vld [vmem:[%s17 + $0x8] sm:$0xf]
        %v3982 = vld [vmem:[%s17 + $0xc] sm:$0xf]
        %v3983 = vld [vmem:[%s17 + $0x10] sm:$0xf]
        %v3984 = vld [vmem:[%s17 + $0x14] sm:$0xf]
        %v3985 = vld [vmem:[%s17 + $0x18] sm:$0xf]
        %v3986 = vld [vmem:[%s17 + $0x1c] sm:$0xf]
        %v3987 = vpack.c.bf16 %v3978, %v3978
        %v3996 = vunpack.c.l.b16 %v3979
        %v3997 = vunpack.c.l.b16 %v3980
        %v3998 = vunpack.c.l.b16 %v3981
        %v3999 = vunpack.c.l.b16 %v3982
        %v4000 = vunpack.c.l.b16 %v3983
        %v4001 = vunpack.c.l.b16 %v3984
        %v4002 = vunpack.c.l.b16 %v3985
        %v4003 = vunpack.c.l.b16 %v3986
        %v4004 = vpack.c.b16 %v3997, %v3996
        %v4005 = vpack.c.b16 %v3999, %v3998
        %v4006 = vpack.c.b16 %v4001, %v4000
        %v4007 = vpack.c.b16 %v4003, %v4002
        %v4013 = vsel %vm2790, %v3987, 0
        %4015 = vmatpush.bf16.msra.mxu0 0
        %4016 = vmatpush.bf16.msra.mxu0 0
        %4017 = vmatpush.bf16.msra.mxu0 0
        %4018 = vmatpush.bf16.msra.mxu0 0
        %4019 = vmatpush.bf16.msra.mxu0 %v4007
        %4020 = vmatpush.bf16.msra.mxu0 %v4006
        %4021 = vmatpush.bf16.msra.mxu0 %v4005
        %4022 = vmatpush.bf16.msra.mxu0 %v4004
        %4023 = vmatmul.bf16.gmra.mxu0 %v4013
        %v4024 = vpop.f32.mrf.mxu0
        %v4025 = vadd.f32 0.0, %v4024
        %v4026 = vpop.f32.mrf.mxu0
        %4027 = vdwg.mxu0
        %v4028 = vld [vmem:[%s18] sm:$0xf]
        %v4029 = vld [vmem:[%s18 + $0x4] sm:$0xf]
        %v4030 = vld [vmem:[%s18 + $0x8] sm:$0xf]
        %v4031 = vld [vmem:[%s18 + $0xc] sm:$0xf]
        %v4032 = vld [vmem:[%s18 + $0x10] sm:$0xf]
        %v4033 = vld [vmem:[%s18 + $0x14] sm:$0xf]
        %v4034 = vld [vmem:[%s18 + $0x18] sm:$0xf]
        %v4035 = vld [vmem:[%s18 + $0x1c] sm:$0xf]
        %v4036 = vpack.c.bf16 %v4025, %v4025
        %v4037 = vld [vmem:[%s19] sm:$0x1]
        %v4046 = vunpack.c.l.b16 %v4028
        %v4047 = vunpack.c.l.b16 %v4029
        %v4048 = vunpack.c.l.b16 %v4030
        %v4049 = vunpack.c.l.b16 %v4031
        %v4050 = vunpack.c.l.b16 %v4032
        %v4051 = vunpack.c.l.b16 %v4033
        %v4052 = vunpack.c.l.b16 %v4034
        %v4053 = vunpack.c.l.b16 %v4035
        %v4054 = vpack.c.b16 %v4047, %v4046
        %v4055 = vpack.c.b16 %v4049, %v4048
        %v4056 = vpack.c.b16 %v4051, %v4050
        %v4057 = vpack.c.b16 %v4053, %v4052
        %v4063 = vsel %vm2790, %v4036, 0
        %4065 = vmatpush.bf16.msra.mxu0 0
        %4066 = vmatpush.bf16.msra.mxu0 0
        %4067 = vmatpush.bf16.msra.mxu0 0
        %4068 = vmatpush.bf16.msra.mxu0 0
        %4069 = vmatpush.bf16.msra.mxu0 %v4057
        %4070 = vmatpush.bf16.msra.mxu0 %v4056
        %4071 = vmatpush.bf16.msra.mxu0 %v4055
        %4072 = vmatpush.bf16.msra.mxu0 %v4054
        %4073 = vmatmul.bf16.gmra.mxu0 %v4063
        %v4074 = vpop.f32.mrf.mxu0
        %v4075 = vadd.f32 %v4037, %v4074
        %v4076 = vpop.f32.mrf.mxu0
        %4077 = vdwg.mxu0
        %v4078 = vmax.f32 %v4075, 0.0
        %v4079 = vld [vmem:[%s748] sm:$0x1]
        %v4080 = vld [vmem:[%s20] sm:$0xf]
        %v4081 = vld [vmem:[%s20 + $0x4] sm:$0xf]
        %v4082 = vld [vmem:[%s20 + $0x8] sm:$0xf]
        %v4083 = vld [vmem:[%s20 + $0xc] sm:$0xf]
        %v4084 = vld [vmem:[%s20 + $0x10] sm:$0xf]
        %v4085 = vpack.c.bf16 %v4078, %v4078
        %v4086 = vpack.c.bf16 %v4079, %v4079
        %vm4087 = vcmask 64512
        %v4089 = vsel %vm4087, %v4086, 0
        %vm4091 = vcmask 1043456
        %v4093 = vsel %vm4091, %v4084, 0
        %4095 = vmatpush.bf16.msra.mxu0 0
        %4096 = vmatpush.bf16.msra.mxu0 0
        %4097 = vmatpush.bf16.msra.mxu0 0
        %4098 = vmatpush.bf16.msra.mxu0 0
        %4099 = vmatpush.bf16.msra.mxu0 0
        %4100 = vmatpush.bf16.msra.mxu0 0
        %4101 = vmatpush.bf16.msra.mxu0 0
        %4102 = vmatpush.bf16.msra.mxu0 %v4093
        %4103 = vmatmul.bf16.gmra.mxu0 %v4089
        %v4104 = vpop.f32.mrf.mxu0
        %v4105 = vadd.f32 0.0, %v4104
        %v4106 = vpop.f32.mrf.mxu0
        %4107 = vdwg.mxu0
        %v4112 = vunpack.c.l.b16 %v4080
        %v4113 = vunpack.c.l.b16 %v4081
        %v4114 = vunpack.c.l.b16 %v4082
        %v4115 = vunpack.c.l.b16 %v4083
        %v4116 = vpack.c.b16 %v4113, %v4112
        %v4117 = vpack.c.b16 %v4115, %v4114
        %v4121 = vsel %vm2832, %v4085, 0
        %4123 = vmatpush.bf16.msra.mxu0 0
        %4124 = vmatpush.bf16.msra.mxu0 0
        %4125 = vmatpush.bf16.msra.mxu0 0
        %4126 = vmatpush.bf16.msra.mxu0 0
        %4127 = vmatpush.bf16.msra.mxu0 0
        %4128 = vmatpush.bf16.msra.mxu0 0
        %4129 = vmatpush.bf16.msra.mxu0 %v4117
        %4130 = vmatpush.bf16.msra.mxu0 %v4116
        %4131 = vmatmul.bf16.gmra.mxu0 %v4121
        %v4132 = vpop.f32.mrf.mxu0
        %v4133 = vadd.f32 %v4105, %v4132
        %v4134 = vpop.f32.mrf.mxu0
        %4135 = vdwg.mxu0
        %v4136 = vld [vmem:[%s21] sm:$0x1]
        %v4137 = vadd.f32 %v4133, %v4136
        %v4138 = vmax.f32 %v4137, 0.0
        %v4139 = vld [vmem:[%s22] sm:$0xf]
        %v4140 = vld [vmem:[%s22 + $0x4] sm:$0xf]
        %v4141 = vld [vmem:[%s22 + $0x8] sm:$0xf]
        %v4142 = vld [vmem:[%s22 + $0xc] sm:$0xf]
        %v4143 = vpack.c.bf16 %v4138, %v4138
        %v4144 = vld [vmem:[%s23] sm:$0x1]
        %v4149 = vunpack.c.l.b16 %v4139
        %v4150 = vunpack.c.l.b16 %v4140
        %v4151 = vunpack.c.l.b16 %v4141
        %v4152 = vunpack.c.l.b16 %v4142
        %v4153 = vpack.c.b16 %v4150, %v4149
        %v4154 = vpack.c.b16 %v4152, %v4151
        %v4158 = vsel %vm2832, %v4143, 0
        %4160 = vmatpush.bf16.msra.mxu0 0
        %4161 = vmatpush.bf16.msra.mxu0 0
        %4162 = vmatpush.bf16.msra.mxu0 0
        %4163 = vmatpush.bf16.msra.mxu0 0
        %4164 = vmatpush.bf16.msra.mxu0 0
        %4165 = vmatpush.bf16.msra.mxu0 0
        %4166 = vmatpush.bf16.msra.mxu0 %v4154
        %4167 = vmatpush.bf16.msra.mxu0 %v4153
        %4168 = vmatmul.bf16.gmra.mxu0 %v4158
        %v4169 = vpop.f32.mrf.mxu0
        %v4170 = vadd.f32 %v4144, %v4169
        %v4171 = vpop.f32.mrf.mxu0
        %4172 = vdwg.mxu0
        %v4173 = vxor.u32 %v4170, 2147483648
        %v4174 = vmul.f32 %v4173, 1.442695
        %v4175 = vpow.pop %v4174
        %v4176 = vadd.f32 %v4175, 1.0
        %v4177 = vrcp.pop %v4176
        %v4178 = vmul.f32 %v4176, %v4177
        %v4179 = vsub.f32 1.0, %v4178
        %v4180 = vmul.f32 %v4177, %v4179
        %v4181 = vadd.f32 %v4177, %v4180
        %vm4182 = vweird.f32 %v4176
        %vm4183 = vweird.f32 %v4177
        %vm4184 = vmor %vm4182, %vm4183
        %v4185 = vsel %vm4184, %v4177, %v4181
        %v4186 = vand.u32 2147483647, %v4176
        %vm4187 = vcmp.eq.f32.partialorder %v4186, 8.507059e+37
        %v4188 = vand.u32 %v4176, 2147483648
        %v4189 = vor.u32 1.1754944e-38, %v4188
        %v4190 = vsel %vm4187, %v4189, %v4185
        %v4191 = vmul.f32 1.0, %v4190
        %vm4192 = vcmask 16384
        %4193 = vst.msk [vmem:[%s740] sm:$0x1] %vm4192, %v4191
        %s4194 = sand.u32 %s560, 1
        %s4195 = scalar_lea.sflag [#allocation3], %s4194
        %s4196 = sand.u32 %s560, 1
        %s4197 = scalar_lea.vmem [#allocation2], %s4196
        // Predicated region
        $region117: #{state_estimator_forward.1} parent=115 // pred_check
          %p4198 = pneg %p570
        $region118: #{state_estimator_forward.1} parent=115 // pred_check_branch
          %4200 = sbr.rel (%p4198) target = $region120
        $region119: #{state_estimator_forward.1} parent=115 // pred_region
          %4202 = vsyncadd %s4195, 0
          %s4203 = scalar_lea.hbm %s24, %s38
          %s4205 = sshll.u32 %s4197, 4
          %s4206 = int_to_ptr.vmem [resolvable:$true] %s4205
          %s4207 = sshll.u32 %s4203, 4
          %s4208 = int_to_ptr.hbm [resolvable:$true] %s4207
          %4210 = dma.vmem_to_hbm [thread:$0]  %s4206, 16, %s4208, %s4195
        $region120: #{state_estimator_forward.1} parent=115 // pred_fallthru
          _
      $region116: #{state_estimator_forward.1} parent=5 // pred_fallthru
        _
      %p4211 = scmp.le.s32.totalorder 2, %s33
      // Predicated region
      $region121: #{state_estimator_forward.1} parent=5 // pred_check
        %p4212 = pneg %p4211
      $region122: #{state_estimator_forward.1} parent=5 // pred_check_branch
        %4214 = sbr.rel (%p4212) target = $region124
      $region123: #{state_estimator_forward.1} parent=5 // pred_region
        %s4215 = ssub.s32 %s33, 2
        // Predicated region
        $region125: #{state_estimator_forward.1} parent=123 // pred_check
          %p4216 = pneg %p576
        $region126: #{state_estimator_forward.1} parent=123 // pred_check_branch
          %4218 = sbr.rel (%p4216) target = $region128
        $region127: #{state_estimator_forward.1} parent=123 // pred_region
          %s4219 = sand.u32 %s561, 1
          %s4220 = scalar_lea.sflag [#allocation3], %s4219
          %s4221 = sand.u32 %s561, 1
          %s4222 = scalar_lea.vmem [#allocation2], %s4221
          %4224 = dma.done %s4220, 16
        $region128: #{state_estimator_forward.1} parent=123 // pred_fallthru
          _
      $region124: #{state_estimator_forward.1} parent=5 // pred_fallthru
        _
    $region6: #{state_estimator_forward.1} parent=1 // loop_footer
      %s37 = sadd.s32 1, %s33
    $region7: #{state_estimator_forward.1} parent=1 // loop_footer_branch
      %32 = sbr.rel target = $region3
    $region8: #{state_estimator_forward.1} parent=1 // loop_exit
      _
    %4225 = vsyncpa [#allocation3], 1
    %s4226 = scalar_lea.sflag [#allocation3], 1
    %4227 = vsyncpa %s4226, 1

</llo_original>
